<compile_context>
chip_gen: v7x
topology: tpu7x:2x2x1
jax: 0.10.0
libtpu: 0.0.40
codegen_flags: <defaults>
</compile_context>

<pallas_src>
import math
from functools import partial

import jax
import jax.numpy as jnp
from jax.experimental import pallas as pl
from jax.experimental.pallas import tpu as pltpu

# ----------------------------- small BERT config -----------------------------
HIDDEN = 128                     # one full 128-lane vreg per row (lane-dense)
N_HEADS = 4
HEAD_DIM = HIDDEN // N_HEADS
N_LAYERS = 2
FFN = 512                        # BERT-like 4x hidden
VOCAB = 512
MAX_POS = 64
N_TYPES = 2
N_CLASSES = 2
CLS_PAD = 128                    # classifier output padded to 128 lanes
LN_EPS = 1e-12
ATTN_SCALE = 1.0 / math.sqrt(HEAD_DIM)

# ------------------------------- slab layout ----------------------------------
SLAB_LANES = max(FFN, 3 * HIDDEN)                       # 512
W_LAYER_ROWS = HIDDEN + HIDDEN + HIDDEN + FFN           # wqkv + wo + w1 + w2 = 896
RW = N_LAYERS * W_LAYER_ROWS + 2 * HIDDEN               # + pool_w + cls_w = 2048
V_HEAD_ROWS = 2                                         # emb_ln_g, emb_ln_b
V_LAYER_ROWS = 8                                        # bqkv,bo,ln1g,ln1b,b1,b2,ln2g,ln2b
RV = V_HEAD_ROWS + N_LAYERS * V_LAYER_ROWS + 2          # + pool_b, cls_b = 20


# ----------------------------- in-kernel helpers ------------------------------
def _layer_norm(x, g, b):
    mu = jnp.mean(x, axis=-1, keepdims=True)
    var = jnp.mean((x - mu) ** 2, axis=-1, keepdims=True)
    return (x - mu) * jax.lax.rsqrt(var + LN_EPS) * g + b


def _gelu(y):
    # tanh-approximate GELU (EUP tanh path).
    # TODO(synk): exact erf-based GELU if bit-exactness to HF BERT is required.
    return 0.5 * y * (1.0 + jnp.tanh(0.7978845608028654 * (y + 0.044715 * y * y * y)))


# ------------------------------- fused kernel ---------------------------------
def _bert_forward_kernel(S, x_ref, mask_ref, w_ref, v_ref, out_ref):
    """One full sequence per grid step; activations stay VMEM/vreg resident.

    x_ref:    (1, S, H)  f32   word+position+type embedding sum
    mask_ref: (1, 1, S)  f32   additive attention mask
    w_ref:    (RW, 512)  bf16  packed weight slab (scale pre-folded into Q)
    v_ref:    (RV, 512)  f32   packed bias / LayerNorm slab
    out_ref:  (1, 1, CLS_PAD) f32 padded logits
    """
    H = HIDDEN
    bf16 = jnp.bfloat16
    f32 = jnp.float32

    # --- embeddings (sum done in glue) -> LayerNorm ---
    x = x_ref[0]                                                    # (S, H) f32
    x = _layer_norm(x, v_ref[0:1, :H], v_ref[1:2, :H])

    # hoist the mask broadcast once (not per head per layer)
    mask_b = jnp.broadcast_to(mask_ref[0], (S, S))                  # (S, S) f32

    for l in range(N_LAYERS):
        wb = l * W_LAYER_ROWS
        vb = V_HEAD_ROWS + l * V_LAYER_ROWS

        # static, tile-aligned views into the weight / bias slabs
        wqkv = w_ref[wb:wb + H, :3 * H]                             # (H, 3H) bf16
        wo = w_ref[wb + H:wb + 2 * H, :H]                           # (H, H)  bf16
        w1 = w_ref[wb + 2 * H:wb + 3 * H, :FFN]                     # (H, FFN) bf16
        w2 = w_ref[wb + 3 * H:wb + 3 * H + FFN, :H]                 # (FFN, H) bf16
        bqkv = v_ref[vb + 0:vb + 1, :3 * H]
        bo = v_ref[vb + 1:vb + 2, :H]
        ln1g = v_ref[vb + 2:vb + 3, :H]
        ln1b = v_ref[vb + 3:vb + 4, :H]
        b1 = v_ref[vb + 4:vb + 5, :FFN]
        b2 = v_ref[vb + 5:vb + 6, :H]
        ln2g = v_ref[vb + 6:vb + 7, :H]
        ln2b = v_ref[vb + 7:vb + 8, :H]

        # --- fused QKV projection: one MXU push -> (S, 3H); cast to bf16 once ---
        qkv = jnp.dot(x.astype(bf16), wqkv, preferred_element_type=f32) + bqkv
        qkv_b = qkv.astype(bf16)

        # --- multi-head self-attention (scale pre-folded into Q weights) ---
        ctx_heads = []
        for h in range(N_HEADS):
            q = qkv_b[:, h * HEAD_DIM:(h + 1) * HEAD_DIM]                     # (S, HD)
            k = qkv_b[:, H + h * HEAD_DIM:H + (h + 1) * HEAD_DIM]
            v = qkv_b[:, 2 * H + h * HEAD_DIM:2 * H + (h + 1) * HEAD_DIM]
            s = jnp.einsum('qd,kd->qk', q, k, preferred_element_type=f32) + mask_b
            s = s - jnp.max(s, axis=-1, keepdims=True)
            p = jnp.exp(s)
            p = p * pl.reciprocal(jnp.sum(p, axis=-1, keepdims=True), approx=True)
            ctx_heads.append(jnp.dot(p.astype(bf16), v, preferred_element_type=f32))
        # merge heads (lane concat) + single K=128 output projection
        ctx = jnp.concatenate(ctx_heads, axis=-1).astype(bf16)                # (S, H)
        attn = jnp.dot(ctx, wo, preferred_element_type=f32) + bo

        # residual + LayerNorm (fused, never leaves VMEM)
        x = _layer_norm(x + attn, ln1g, ln1b)

        # --- feed forward ---
        hdn = _gelu(jnp.dot(x.astype(bf16), w1, preferred_element_type=f32) + b1)
        ffn = jnp.dot(hdn.astype(bf16), w2, preferred_element_type=f32) + b2
        x = _layer_norm(x + ffn, ln2g, ln2b)

    # --- pooler (tanh dense on [CLS]) + classifier (lane-padded to 128) ---
    pwb = N_LAYERS * W_LAYER_ROWS
    pvb = V_HEAD_ROWS + N_LAYERS * V_LAYER_ROWS
    pool_w = w_ref[pwb:pwb + H, :H]
    cls_w = w_ref[pwb + H:pwb + 2 * H, :CLS_PAD]
    pool_b = v_ref[pvb:pvb + 1, :H]
    cls_b = v_ref[pvb + 1:pvb + 2, :CLS_PAD]

    cls = x[0:1, :]                                                  # (1, H) [CLS]
    pooled = jnp.tanh(jnp.dot(cls.astype(bf16), pool_w, preferred_element_type=f32) + pool_b)
    logits = jnp.dot(pooled.astype(bf16), cls_w, preferred_element_type=f32) + cls_b
    out_ref[0] = logits                                              # (1, CLS_PAD)


# --------------------------- parameter initialization --------------------------
def init_params(key):
    def dense(k, fan_in, fan_out):
        return jax.random.normal(k, (fan_in, fan_out), jnp.float32) * 0.02

    keys = iter(jax.random.split(key, 5 + 6 * N_LAYERS))
    p = {
        "word_emb": jax.random.normal(next(keys), (VOCAB, HIDDEN), jnp.float32) * 0.02,
        "pos_emb": jax.random.normal(next(keys), (MAX_POS, HIDDEN), jnp.float32) * 0.02,
        "type_emb": jax.random.normal(next(keys), (N_TYPES, HIDDEN), jnp.float32) * 0.02,
        "emb_ln_g": jnp.ones((1, HIDDEN), jnp.float32),
        "emb_ln_b": jnp.zeros((1, HIDDEN), jnp.float32),
        "layers": [],
        "pool_w": dense(next(keys), HIDDEN, HIDDEN),
        "pool_b": jnp.zeros((1, HIDDEN), jnp.float32),
        "cls_w": dense(next(keys), HIDDEN, N_CLASSES),
        "cls_b": jnp.zeros((1, N_CLASSES), jnp.float32),
    }
    for _ in range(N_LAYERS):
        layer = {
            "wq": dense(next(keys), HIDDEN, HIDDEN), "bq": jnp.zeros((1, HIDDEN), jnp.float32),
            "wk": dense(next(keys), HIDDEN, HIDDEN), "bk": jnp.zeros((1, HIDDEN), jnp.float32),
            "wv": dense(next(keys), HIDDEN, HIDDEN), "bv": jnp.zeros((1, HIDDEN), jnp.float32),
            "wo": dense(next(keys), HIDDEN, HIDDEN), "bo": jnp.zeros((1, HIDDEN), jnp.float32),
            "ln1_g": jnp.ones((1, HIDDEN), jnp.float32), "ln1_b": jnp.zeros((1, HIDDEN), jnp.float32),
            "w1": dense(next(keys), HIDDEN, FFN), "b1": jnp.zeros((1, FFN), jnp.float32),
            "w2": dense(next(keys), FFN, HIDDEN), "b2": jnp.zeros((1, HIDDEN), jnp.float32),
            "ln2_g": jnp.ones((1, HIDDEN), jnp.float32), "ln2_b": jnp.zeros((1, HIDDEN), jnp.float32),
        }
        p["layers"].append(layer)
    return p


def prepack_params(params):
    """ONE-TIME packing (outside the per-call path): all weights into a single
    bf16 slab [RW, 512] and all biases/LN params into a f32 slab [RV, 512].
    Attention scale is folded into the Q columns of wqkv (and into bq)."""
    H = HIDDEN
    W = jnp.zeros((RW, SLAB_LANES), jnp.float32)
    V = jnp.zeros((RV, SLAB_LANES), jnp.float32)

    V = V.at[0, :H].set(params["emb_ln_g"][0])
    V = V.at[1, :H].set(params["emb_ln_b"][0])

    for l, lp in enumerate(params["layers"]):
        wb = l * W_LAYER_ROWS
        vb = V_HEAD_ROWS + l * V_LAYER_ROWS
        wqkv = jnp.concatenate([lp["wq"] * ATTN_SCALE, lp["wk"], lp["wv"]], axis=1)
        bqkv = jnp.concatenate([lp["bq"] * ATTN_SCALE, lp["bk"], lp["bv"]], axis=1)
        W = W.at[wb:wb + H, :3 * H].set(wqkv)
        W = W.at[wb + H:wb + 2 * H, :H].set(lp["wo"])
        W = W.at[wb + 2 * H:wb + 3 * H, :FFN].set(lp["w1"])
        W = W.at[wb + 3 * H:wb + 3 * H + FFN, :H].set(lp["w2"])
        V = V.at[vb + 0, :3 * H].set(bqkv[0])
        V = V.at[vb + 1, :H].set(lp["bo"][0])
        V = V.at[vb + 2, :H].set(lp["ln1_g"][0])
        V = V.at[vb + 3, :H].set(lp["ln1_b"][0])
        V = V.at[vb + 4, :FFN].set(lp["b1"][0])
        V = V.at[vb + 5, :H].set(lp["b2"][0])
        V = V.at[vb + 6, :H].set(lp["ln2_g"][0])
        V = V.at[vb + 7, :H].set(lp["ln2_b"][0])

    pwb = N_LAYERS * W_LAYER_ROWS
    pvb = V_HEAD_ROWS + N_LAYERS * V_LAYER_ROWS
    W = W.at[pwb:pwb + H, :H].set(params["pool_w"])
    W = W.at[pwb + H:pwb + 2 * H, :N_CLASSES].set(params["cls_w"])      # lane-padded
    V = V.at[pvb, :H].set(params["pool_b"][0])
    V = V.at[pvb + 1, :N_CLASSES].set(params["cls_b"][0])

    return {
        "word_emb": params["word_emb"],
        "pos_type_emb": params["pos_emb"] + params["type_emb"][0:1],   # token_type_ids = 0
        "w_slab": W.astype(jnp.bfloat16),
        "v_slab": V,
    }


# ---------------------------------- forward ----------------------------------
def text_classification_forward(packed, input_ids, attention_mask):
    """Returns logits [B, N_CLASSES] (same semantics as module.forward)."""
    B, S = input_ids.shape
    assert S <= MAX_POS, "sequence length exceeds position-embedding table"

    # word-embedding gather (+ pos/type add) stays in glue JAX over activations only;
    # all weight preprocessing is done once in prepack_params.
    # TODO(synk): pull the gather in-kernel via PrefetchScalarGridSpec once B*S grows.
    x = jnp.take(packed["word_emb"], input_ids, axis=0)                 # [B, S, H]
    x = x + packed["pos_type_emb"][:S][None, :, :]
    add_mask = ((1.0 - attention_mask.astype(jnp.float32)) * -10000.0).reshape(B, 1, S)

    logits_pad = pl.pallas_call(
        partial(_bert_forward_kernel, S),
        out_shape=jax.ShapeDtypeStruct((B, 1, CLS_PAD), jnp.float32),
        grid=(B,),
        in_specs=[
            pl.BlockSpec((1, S, HIDDEN), lambda b: (b, 0, 0)),          # per-sequence acts
            pl.BlockSpec((1, 1, S), lambda b: (b, 0, 0)),               # per-sequence mask
            pl.BlockSpec((RW, SLAB_LANES), lambda b: (0, 0)),           # weights: resident
            pl.BlockSpec((RV, SLAB_LANES), lambda b: (0, 0)),           # biases/LN: resident
        ],
        out_specs=pl.BlockSpec((1, 1, CLS_PAD), lambda b: (b, 0, 0)),
        compiler_params=pltpu.CompilerParams(
            dimension_semantics=("parallel",),                          # v7x: 2nd TC used
            vmem_limit_bytes=32 * 1024 * 1024),
    )(x, add_mask, packed["w_slab"], packed["v_slab"])
    return logits_pad[:, 0, :N_CLASSES]


# ------------------------------------ main ------------------------------------
if __name__ == "__main__":
    key = jax.random.PRNGKey(0)
    pkey, ikey = jax.random.split(key)

    params = init_params(pkey)
    packed = prepack_params(params)          # one-time prepack, outside per-call path

    B, S = 2, 16
    input_ids = jax.random.randint(ikey, (B, S), 0, VOCAB, dtype=jnp.int32)
    attention_mask = jnp.concatenate(
        [jnp.ones((B, S - 4), jnp.int32),
         jnp.array([[1, 1, 1, 1], [0, 0, 0, 0]], jnp.int32)], axis=1)   # 2nd seq padded

    fwd = jax.jit(text_classification_forward)
    logits = fwd(packed, input_ids, attention_mask)
    logits = jax.block_until_ready(logits)

    assert logits.shape == (B, N_CLASSES), logits.shape
    assert logits.dtype == jnp.float32
    assert bool(jnp.all(jnp.isfinite(logits)))
    print("KERNEL_OK")
</pallas_src>

<mosaic_0001>
module attributes {stable_mosaic.version = 11 : i64} {
  func.func @_bert_forward_kernel(%arg0: i32, %arg1: memref<1x16x128xf32, #tpu.memory_space<vmem>>, %arg2: memref<1x1x16xf32, #tpu.memory_space<vmem>>, %arg3: memref<2048x512xbf16, #tpu.memory_space<vmem>>, %arg4: memref<20x512xf32, #tpu.memory_space<vmem>>, %arg5: memref<1x1x128xf32, #tpu.memory_space<vmem>>) attributes {dimension_semantics = [#tpu.dimension_semantics<parallel>], iteration_bounds = array<i64: 2>, scalar_prefetch = 0 : i64, scratch_operands = 0 : i64, tpu.core_type = #tpu.core_type<tc>, window_params = [{transform_indices = @transform_0, window_bounds = array<i64: 1, 16, 128>}, {transform_indices = @transform_1, window_bounds = array<i64: 1, 1, 16>}, {pipeline_mode = #tpu.pipeline_mode<synchronous>, transform_indices = @transform_2, window_bounds = array<i64: 2048, 512>}, {pipeline_mode = #tpu.pipeline_mode<synchronous>, transform_indices = @transform_3, window_bounds = array<i64: 20, 512>}, {transform_indices = @transform_4, window_bounds = array<i64: 1, 1, 128>}]} {
    %c0 = arith.constant 0 : index
    %c0_0 = arith.constant 0 : index
    %c0_1 = arith.constant 0 : index
    %0 = vector.load %arg1[%c0, %c0_0, %c0_1] : memref<1x16x128xf32, #tpu.memory_space<vmem>>, vector<1x16x128xf32>
    %1 = vector.shape_cast %0 : vector<1x16x128xf32> to vector<16x128xf32>
    %c0_2 = arith.constant 0 : index
    %c0_3 = arith.constant 0 : index
    %2 = vector.load %arg4[%c0_2, %c0_3] : memref<20x512xf32, #tpu.memory_space<vmem>>, vector<1x128xf32>
    %c1 = arith.constant 1 : index
    %c0_4 = arith.constant 0 : index
    %3 = vector.load %arg4[%c1, %c0_4] : memref<20x512xf32, #tpu.memory_space<vmem>>, vector<1x128xf32>
    %cst = arith.constant dense<0.000000e+00> : vector<16xf32>
    %4 = vector.multi_reduction <add>, %1, %cst [1] : vector<16x128xf32> to vector<16xf32>
    %5 = vector.shape_cast %4 : vector<16xf32> to vector<16x1xf32>
    %cst_5 = arith.constant 1.280000e+02 : f32
    %6 = vector.broadcast %cst_5 : f32 to vector<16x1xf32>
    %7 = arith.divf %5, %6 : vector<16x1xf32>
    %8 = vector.broadcast %7 : vector<16x1xf32> to vector<16x128xf32>
    %9 = arith.subf %1, %8 : vector<16x128xf32>
    %10 = arith.mulf %9, %9 : vector<16x128xf32>
    %cst_6 = arith.constant dense<0.000000e+00> : vector<16xf32>
    %11 = vector.multi_reduction <add>, %10, %cst_6 [1] : vector<16x128xf32> to vector<16xf32>
    %12 = vector.shape_cast %11 : vector<16xf32> to vector<16x1xf32>
    %cst_7 = arith.constant 1.280000e+02 : f32
    %13 = vector.broadcast %cst_7 : f32 to vector<16x1xf32>
    %14 = arith.divf %12, %13 : vector<16x1xf32>
    %15 = vector.broadcast %7 : vector<16x1xf32> to vector<16x128xf32>
    %16 = arith.subf %1, %15 : vector<16x128xf32>
    %cst_8 = arith.constant 9.99999996E-13 : f32
    %17 = vector.broadcast %cst_8 : f32 to vector<16x1xf32>
    %18 = arith.addf %14, %17 : vector<16x1xf32>
    %19 = math.rsqrt %18 : vector<16x1xf32>
    %20 = vector.broadcast %19 : vector<16x1xf32> to vector<16x128xf32>
    %21 = arith.mulf %16, %20 : vector<16x128xf32>
    %22 = vector.broadcast %2 : vector<1x128xf32> to vector<16x128xf32>
    %23 = arith.mulf %21, %22 : vector<16x128xf32>
    %24 = vector.broadcast %3 : vector<1x128xf32> to vector<16x128xf32>
    %25 = arith.addf %23, %24 : vector<16x128xf32>
    %c0_9 = arith.constant 0 : index
    %c0_10 = arith.constant 0 : index
    %c0_11 = arith.constant 0 : index
    %26 = vector.load %arg2[%c0_9, %c0_10, %c0_11] : memref<1x1x16xf32, #tpu.memory_space<vmem>>, vector<1x1x16xf32>
    %27 = vector.shape_cast %26 : vector<1x1x16xf32> to vector<1x16xf32>
    %28 = vector.shape_cast %27 : vector<1x16xf32> to vector<1x16xf32>
    %29 = vector.broadcast %28 : vector<1x16xf32> to vector<16x16xf32>
    %c0_12 = arith.constant 0 : index
    %c0_13 = arith.constant 0 : index
    %30 = vector.load %arg3[%c0_12, %c0_13] : memref<2048x512xbf16, #tpu.memory_space<vmem>>, vector<128x384xbf16>
    %c128 = arith.constant 128 : index
    %c0_14 = arith.constant 0 : index
    %31 = vector.load %arg3[%c128, %c0_14] : memref<2048x512xbf16, #tpu.memory_space<vmem>>, vector<128x128xbf16>
    %c256 = arith.constant 256 : index
    %c0_15 = arith.constant 0 : index
    %32 = vector.load %arg3[%c256, %c0_15] : memref<2048x512xbf16, #tpu.memory_space<vmem>>, vector<128x512xbf16>
    %c384 = arith.constant 384 : index
    %c0_16 = arith.constant 0 : index
    %33 = vector.load %arg3[%c384, %c0_16] : memref<2048x512xbf16, #tpu.memory_space<vmem>>, vector<512x128xbf16>
    %c2 = arith.constant 2 : index
    %c0_17 = arith.constant 0 : index
    %34 = vector.load %arg4[%c2, %c0_17] : memref<20x512xf32, #tpu.memory_space<vmem>>, vector<1x384xf32>
    %c3 = arith.constant 3 : index
    %c0_18 = arith.constant 0 : index
    %35 = vector.load %arg4[%c3, %c0_18] : memref<20x512xf32, #tpu.memory_space<vmem>>, vector<1x128xf32>
    %c4 = arith.constant 4 : index
    %c0_19 = arith.constant 0 : index
    %36 = vector.load %arg4[%c4, %c0_19] : memref<20x512xf32, #tpu.memory_space<vmem>>, vector<1x128xf32>
    %c5 = arith.constant 5 : index
    %c0_20 = arith.constant 0 : index
    %37 = vector.load %arg4[%c5, %c0_20] : memref<20x512xf32, #tpu.memory_space<vmem>>, vector<1x128xf32>
    %c6 = arith.constant 6 : index
    %c0_21 = arith.constant 0 : index
    %38 = vector.load %arg4[%c6, %c0_21] : memref<20x512xf32, #tpu.memory_space<vmem>>, vector<1x512xf32>
    %c7 = arith.constant 7 : index
    %c0_22 = arith.constant 0 : index
    %39 = vector.load %arg4[%c7, %c0_22] : memref<20x512xf32, #tpu.memory_space<vmem>>, vector<1x128xf32>
    %c8 = arith.constant 8 : index
    %c0_23 = arith.constant 0 : index
    %40 = vector.load %arg4[%c8, %c0_23] : memref<20x512xf32, #tpu.memory_space<vmem>>, vector<1x128xf32>
    %c9 = arith.constant 9 : index
    %c0_24 = arith.constant 0 : index
    %41 = vector.load %arg4[%c9, %c0_24] : memref<20x512xf32, #tpu.memory_space<vmem>>, vector<1x128xf32>
    %42 = arith.truncf %25 : vector<16x128xf32> to vector<16x128xbf16>
    %cst_25 = arith.constant dense<0.000000e+00> : vector<16x384xf32>
    %43 = tpu.matmul %42, %30, %cst_25 {dimension_numbers = #tpu.dot_dimension_numbers<[1], [0], [0], [1], [0, 0, 1, 1], [], []>} : vector<16x128xbf16>, vector<128x384xbf16>, vector<16x384xf32> -> vector<16x384xf32>
    %44 = vector.broadcast %34 : vector<1x384xf32> to vector<16x384xf32>
    %45 = arith.addf %43, %44 : vector<16x384xf32>
    %46 = arith.truncf %45 : vector<16x384xf32> to vector<16x384xbf16>
    %47 = vector.extract_strided_slice %46 {offsets = [0, 0], sizes = [16, 32], strides = [1, 1]} : vector<16x384xbf16> to vector<16x32xbf16>
    %48 = vector.extract_strided_slice %46 {offsets = [0, 128], sizes = [16, 32], strides = [1, 1]} : vector<16x384xbf16> to vector<16x32xbf16>
    %49 = vector.extract_strided_slice %46 {offsets = [0, 256], sizes = [16, 32], strides = [1, 1]} : vector<16x384xbf16> to vector<16x32xbf16>
    "tpu.trace_start"() <{level = 10 : i32, message = "qd,kd->qk"}> : () -> ()
    %cst_26 = arith.constant dense<0.000000e+00> : vector<16x16xf32>
    %50 = tpu.matmul %47, %48, %cst_26 {dimension_numbers = #tpu.dot_dimension_numbers<[1], [1], [0], [0], [0, 0, 1, 0], [], []>} : vector<16x32xbf16>, vector<16x32xbf16>, vector<16x16xf32> -> vector<16x16xf32>
    "tpu.trace_stop"() : () -> ()
    %51 = arith.addf %50, %29 : vector<16x16xf32>
    %cst_27 = arith.constant dense<0xFF800000> : vector<16xf32>
    %52 = vector.multi_reduction <maximumf>, %51, %cst_27 [1] : vector<16x16xf32> to vector<16xf32>
    %53 = vector.shape_cast %52 : vector<16xf32> to vector<16x1xf32>
    %54 = vector.broadcast %53 : vector<16x1xf32> to vector<16x16xf32>
    %55 = arith.subf %51, %54 : vector<16x16xf32>
    %56 = math.exp %55 : vector<16x16xf32>
    %cst_28 = arith.constant dense<0.000000e+00> : vector<16xf32>
    %57 = vector.multi_reduction <add>, %56, %cst_28 [1] : vector<16x16xf32> to vector<16xf32>
    %58 = vector.shape_cast %57 : vector<16xf32> to vector<16x1xf32>
    %59 = tpu.reciprocal %58 {approx = true} : vector<16x1xf32> -> vector<16x1xf32>
    %60 = vector.broadcast %59 : vector<16x1xf32> to vector<16x16xf32>
    %61 = arith.mulf %56, %60 : vector<16x16xf32>
    %62 = arith.truncf %61 : vector<16x16xf32> to vector<16x16xbf16>
    %cst_29 = arith.constant dense<0.000000e+00> : vector<16x32xf32>
    %63 = tpu.matmul %62, %49, %cst_29 {dimension_numbers = #tpu.dot_dimension_numbers<[1], [0], [0], [1], [0, 0, 1, 1], [], []>} : vector<16x16xbf16>, vector<16x32xbf16>, vector<16x32xf32> -> vector<16x32xf32>
    %64 = vector.extract_strided_slice %46 {offsets = [0, 32], sizes = [16, 32], strides = [1, 1]} : vector<16x384xbf16> to vector<16x32xbf16>
    %65 = vector.extract_strided_slice %46 {offsets = [0, 160], sizes = [16, 32], strides = [1, 1]} : vector<16x384xbf16> to vector<16x32xbf16>
    %66 = vector.extract_strided_slice %46 {offsets = [0, 288], sizes = [16, 32], strides = [1, 1]} : vector<16x384xbf16> to vector<16x32xbf16>
    "tpu.trace_start"() <{level = 10 : i32, message = "qd,kd->qk"}> : () -> ()
    %cst_30 = arith.constant dense<0.000000e+00> : vector<16x16xf32>
    %67 = tpu.matmul %64, %65, %cst_30 {dimension_numbers = #tpu.dot_dimension_numbers<[1], [1], [0], [0], [0, 0, 1, 0], [], []>} : vector<16x32xbf16>, vector<16x32xbf16>, vector<16x16xf32> -> vector<16x16xf32>
    "tpu.trace_stop"() : () -> ()
    %68 = arith.addf %67, %29 : vector<16x16xf32>
    %cst_31 = arith.constant dense<0xFF800000> : vector<16xf32>
    %69 = vector.multi_reduction <maximumf>, %68, %cst_31 [1] : vector<16x16xf32> to vector<16xf32>
    %70 = vector.shape_cast %69 : vector<16xf32> to vector<16x1xf32>
    %71 = vector.broadcast %70 : vector<16x1xf32> to vector<16x16xf32>
    %72 = arith.subf %68, %71 : vector<16x16xf32>
    %73 = math.exp %72 : vector<16x16xf32>
    %cst_32 = arith.constant dense<0.000000e+00> : vector<16xf32>
    %74 = vector.multi_reduction <add>, %73, %cst_32 [1] : vector<16x16xf32> to vector<16xf32>
    %75 = vector.shape_cast %74 : vector<16xf32> to vector<16x1xf32>
    %76 = tpu.reciprocal %75 {approx = true} : vector<16x1xf32> -> vector<16x1xf32>
    %77 = vector.broadcast %76 : vector<16x1xf32> to vector<16x16xf32>
    %78 = arith.mulf %73, %77 : vector<16x16xf32>
    %79 = arith.truncf %78 : vector<16x16xf32> to vector<16x16xbf16>
    %cst_33 = arith.constant dense<0.000000e+00> : vector<16x32xf32>
    %80 = tpu.matmul %79, %66, %cst_33 {dimension_numbers = #tpu.dot_dimension_numbers<[1], [0], [0], [1], [0, 0, 1, 1], [], []>} : vector<16x16xbf16>, vector<16x32xbf16>, vector<16x32xf32> -> vector<16x32xf32>
    %81 = vector.extract_strided_slice %46 {offsets = [0, 64], sizes = [16, 32], strides = [1, 1]} : vector<16x384xbf16> to vector<16x32xbf16>
    %82 = vector.extract_strided_slice %46 {offsets = [0, 192], sizes = [16, 32], strides = [1, 1]} : vector<16x384xbf16> to vector<16x32xbf16>
    %83 = vector.extract_strided_slice %46 {offsets = [0, 320], sizes = [16, 32], strides = [1, 1]} : vector<16x384xbf16> to vector<16x32xbf16>
    "tpu.trace_start"() <{level = 10 : i32, message = "qd,kd->qk"}> : () -> ()
    %cst_34 = arith.constant dense<0.000000e+00> : vector<16x16xf32>
    %84 = tpu.matmul %81, %82, %cst_34 {dimension_numbers = #tpu.dot_dimension_numbers<[1], [1], [0], [0], [0, 0, 1, 0], [], []>} : vector<16x32xbf16>, vector<16x32xbf16>, vector<16x16xf32> -> vector<16x16xf32>
    "tpu.trace_stop"() : () -> ()
    %85 = arith.addf %84, %29 : vector<16x16xf32>
    %cst_35 = arith.constant dense<0xFF800000> : vector<16xf32>
    %86 = vector.multi_reduction <maximumf>, %85, %cst_35 [1] : vector<16x16xf32> to vector<16xf32>
    %87 = vector.shape_cast %86 : vector<16xf32> to vector<16x1xf32>
    %88 = vector.broadcast %87 : vector<16x1xf32> to vector<16x16xf32>
    %89 = arith.subf %85, %88 : vector<16x16xf32>
    %90 = math.exp %89 : vector<16x16xf32>
    %cst_36 = arith.constant dense<0.000000e+00> : vector<16xf32>
    %91 = vector.multi_reduction <add>, %90, %cst_36 [1] : vector<16x16xf32> to vector<16xf32>
    %92 = vector.shape_cast %91 : vector<16xf32> to vector<16x1xf32>
    %93 = tpu.reciprocal %92 {approx = true} : vector<16x1xf32> -> vector<16x1xf32>
    %94 = vector.broadcast %93 : vector<16x1xf32> to vector<16x16xf32>
    %95 = arith.mulf %90, %94 : vector<16x16xf32>
    %96 = arith.truncf %95 : vector<16x16xf32> to vector<16x16xbf16>
    %cst_37 = arith.constant dense<0.000000e+00> : vector<16x32xf32>
    %97 = tpu.matmul %96, %83, %cst_37 {dimension_numbers = #tpu.dot_dimension_numbers<[1], [0], [0], [1], [0, 0, 1, 1], [], []>} : vector<16x16xbf16>, vector<16x32xbf16>, vector<16x32xf32> -> vector<16x32xf32>
    %98 = vector.extract_strided_slice %46 {offsets = [0, 96], sizes = [16, 32], strides = [1, 1]} : vector<16x384xbf16> to vector<16x32xbf16>
    %99 = vector.extract_strided_slice %46 {offsets = [0, 224], sizes = [16, 32], strides = [1, 1]} : vector<16x384xbf16> to vector<16x32xbf16>
    %100 = vector.extract_strided_slice %46 {offsets = [0, 352], sizes = [16, 32], strides = [1, 1]} : vector<16x384xbf16> to vector<16x32xbf16>
    "tpu.trace_start"() <{level = 10 : i32, message = "qd,kd->qk"}> : () -> ()
    %cst_38 = arith.constant dense<0.000000e+00> : vector<16x16xf32>
    %101 = tpu.matmul %98, %99, %cst_38 {dimension_numbers = #tpu.dot_dimension_numbers<[1], [1], [0], [0], [0, 0, 1, 0], [], []>} : vector<16x32xbf16>, vector<16x32xbf16>, vector<16x16xf32> -> vector<16x16xf32>
    "tpu.trace_stop"() : () -> ()
    %102 = arith.addf %101, %29 : vector<16x16xf32>
    %cst_39 = arith.constant dense<0xFF800000> : vector<16xf32>
    %103 = vector.multi_reduction <maximumf>, %102, %cst_39 [1] : vector<16x16xf32> to vector<16xf32>
    %104 = vector.shape_cast %103 : vector<16xf32> to vector<16x1xf32>
    %105 = vector.broadcast %104 : vector<16x1xf32> to vector<16x16xf32>
    %106 = arith.subf %102, %105 : vector<16x16xf32>
    %107 = math.exp %106 : vector<16x16xf32>
    %cst_40 = arith.constant dense<0.000000e+00> : vector<16xf32>
    %108 = vector.multi_reduction <add>, %107, %cst_40 [1] : vector<16x16xf32> to vector<16xf32>
    %109 = vector.shape_cast %108 : vector<16xf32> to vector<16x1xf32>
    %110 = tpu.reciprocal %109 {approx = true} : vector<16x1xf32> -> vector<16x1xf32>
    %111 = vector.broadcast %110 : vector<16x1xf32> to vector<16x16xf32>
    %112 = arith.mulf %107, %111 : vector<16x16xf32>
    %113 = arith.truncf %112 : vector<16x16xf32> to vector<16x16xbf16>
    %cst_41 = arith.constant dense<0.000000e+00> : vector<16x32xf32>
    %114 = tpu.matmul %113, %100, %cst_41 {dimension_numbers = #tpu.dot_dimension_numbers<[1], [0], [0], [1], [0, 0, 1, 1], [], []>} : vector<16x16xbf16>, vector<16x32xbf16>, vector<16x32xf32> -> vector<16x32xf32>
    %115 = tpu.concatenate %63, %80, %97, %114 in 1 : vector<16x32xf32>, vector<16x32xf32>, vector<16x32xf32>, vector<16x32xf32> -> vector<16x128xf32>
    %116 = arith.truncf %115 : vector<16x128xf32> to vector<16x128xbf16>
    %cst_42 = arith.constant dense<0.000000e+00> : vector<16x128xf32>
    %117 = tpu.matmul %116, %31, %cst_42 {dimension_numbers = #tpu.dot_dimension_numbers<[1], [0], [0], [1], [0, 0, 1, 1], [], []>} : vector<16x128xbf16>, vector<128x128xbf16>, vector<16x128xf32> -> vector<16x128xf32>
    %118 = vector.broadcast %35 : vector<1x128xf32> to vector<16x128xf32>
    %119 = arith.addf %117, %118 : vector<16x128xf32>
    %120 = arith.addf %25, %119 : vector<16x128xf32>
    %cst_43 = arith.constant dense<0.000000e+00> : vector<16xf32>
    %121 = vector.multi_reduction <add>, %120, %cst_43 [1] : vector<16x128xf32> to vector<16xf32>
    %122 = vector.shape_cast %121 : vector<16xf32> to vector<16x1xf32>
    %cst_44 = arith.constant 1.280000e+02 : f32
    %123 = vector.broadcast %cst_44 : f32 to vector<16x1xf32>
    %124 = arith.divf %122, %123 : vector<16x1xf32>
    %125 = vector.broadcast %124 : vector<16x1xf32> to vector<16x128xf32>
    %126 = arith.subf %120, %125 : vector<16x128xf32>
    %127 = arith.mulf %126, %126 : vector<16x128xf32>
    %cst_45 = arith.constant dense<0.000000e+00> : vector<16xf32>
    %128 = vector.multi_reduction <add>, %127, %cst_45 [1] : vector<16x128xf32> to vector<16xf32>
    %129 = vector.shape_cast %128 : vector<16xf32> to vector<16x1xf32>
    %cst_46 = arith.constant 1.280000e+02 : f32
    %130 = vector.broadcast %cst_46 : f32 to vector<16x1xf32>
    %131 = arith.divf %129, %130 : vector<16x1xf32>
    %132 = vector.broadcast %124 : vector<16x1xf32> to vector<16x128xf32>
    %133 = arith.subf %120, %132 : vector<16x128xf32>
    %cst_47 = arith.constant 9.99999996E-13 : f32
    %134 = vector.broadcast %cst_47 : f32 to vector<16x1xf32>
    %135 = arith.addf %131, %134 : vector<16x1xf32>
    %136 = math.rsqrt %135 : vector<16x1xf32>
    %137 = vector.broadcast %136 : vector<16x1xf32> to vector<16x128xf32>
    %138 = arith.mulf %133, %137 : vector<16x128xf32>
    %139 = vector.broadcast %36 : vector<1x128xf32> to vector<16x128xf32>
    %140 = arith.mulf %138, %139 : vector<16x128xf32>
    %141 = vector.broadcast %37 : vector<1x128xf32> to vector<16x128xf32>
    %142 = arith.addf %140, %141 : vector<16x128xf32>
    %143 = arith.truncf %142 : vector<16x128xf32> to vector<16x128xbf16>
    %cst_48 = arith.constant dense<0.000000e+00> : vector<16x512xf32>
    %144 = tpu.matmul %143, %32, %cst_48 {dimension_numbers = #tpu.dot_dimension_numbers<[1], [0], [0], [1], [0, 0, 1, 1], [], []>} : vector<16x128xbf16>, vector<128x512xbf16>, vector<16x512xf32> -> vector<16x512xf32>
    %145 = vector.broadcast %38 : vector<1x512xf32> to vector<16x512xf32>
    %146 = arith.addf %144, %145 : vector<16x512xf32>
    %cst_49 = arith.constant 5.000000e-01 : f32
    %147 = vector.broadcast %cst_49 : f32 to vector<16x512xf32>
    %148 = arith.mulf %147, %146 : vector<16x512xf32>
    %cst_50 = arith.constant 4.471500e-02 : f32
    %149 = vector.broadcast %cst_50 : f32 to vector<16x512xf32>
    %150 = arith.mulf %149, %146 : vector<16x512xf32>
    %151 = arith.mulf %150, %146 : vector<16x512xf32>
    %152 = arith.mulf %151, %146 : vector<16x512xf32>
    %153 = arith.addf %146, %152 : vector<16x512xf32>
    %cst_51 = arith.constant 0.797884583 : f32
    %154 = vector.broadcast %cst_51 : f32 to vector<16x512xf32>
    %155 = arith.mulf %154, %153 : vector<16x512xf32>
    %156 = math.tanh %155 : vector<16x512xf32>
    %cst_52 = arith.constant 1.000000e+00 : f32
    %157 = vector.broadcast %cst_52 : f32 to vector<16x512xf32>
    %158 = arith.addf %157, %156 : vector<16x512xf32>
    %159 = arith.mulf %148, %158 : vector<16x512xf32>
    %160 = arith.truncf %159 : vector<16x512xf32> to vector<16x512xbf16>
    %cst_53 = arith.constant dense<0.000000e+00> : vector<16x128xf32>
    %161 = tpu.matmul %160, %33, %cst_53 {dimension_numbers = #tpu.dot_dimension_numbers<[1], [0], [0], [1], [0, 0, 1, 1], [], []>} : vector<16x512xbf16>, vector<512x128xbf16>, vector<16x128xf32> -> vector<16x128xf32>
    %162 = vector.broadcast %39 : vector<1x128xf32> to vector<16x128xf32>
    %163 = arith.addf %161, %162 : vector<16x128xf32>
    %164 = arith.addf %142, %163 : vector<16x128xf32>
    %cst_54 = arith.constant dense<0.000000e+00> : vector<16xf32>
    %165 = vector.multi_reduction <add>, %164, %cst_54 [1] : vector<16x128xf32> to vector<16xf32>
    %166 = vector.shape_cast %165 : vector<16xf32> to vector<16x1xf32>
    %cst_55 = arith.constant 1.280000e+02 : f32
    %167 = vector.broadcast %cst_55 : f32 to vector<16x1xf32>
    %168 = arith.divf %166, %167 : vector<16x1xf32>
    %169 = vector.broadcast %168 : vector<16x1xf32> to vector<16x128xf32>
    %170 = arith.subf %164, %169 : vector<16x128xf32>
    %171 = arith.mulf %170, %170 : vector<16x128xf32>
    %cst_56 = arith.constant dense<0.000000e+00> : vector<16xf32>
    %172 = vector.multi_reduction <add>, %171, %cst_56 [1] : vector<16x128xf32> to vector<16xf32>
    %173 = vector.shape_cast %172 : vector<16xf32> to vector<16x1xf32>
    %cst_57 = arith.constant 1.280000e+02 : f32
    %174 = vector.broadcast %cst_57 : f32 to vector<16x1xf32>
    %175 = arith.divf %173, %174 : vector<16x1xf32>
    %176 = vector.broadcast %168 : vector<16x1xf32> to vector<16x128xf32>
    %177 = arith.subf %164, %176 : vector<16x128xf32>
    %cst_58 = arith.constant 9.99999996E-13 : f32
    %178 = vector.broadcast %cst_58 : f32 to vector<16x1xf32>
    %179 = arith.addf %175, %178 : vector<16x1xf32>
    %180 = math.rsqrt %179 : vector<16x1xf32>
    %181 = vector.broadcast %180 : vector<16x1xf32> to vector<16x128xf32>
    %182 = arith.mulf %177, %181 : vector<16x128xf32>
    %183 = vector.broadcast %40 : vector<1x128xf32> to vector<16x128xf32>
    %184 = arith.mulf %182, %183 : vector<16x128xf32>
    %185 = vector.broadcast %41 : vector<1x128xf32> to vector<16x128xf32>
    %186 = arith.addf %184, %185 : vector<16x128xf32>
    %c896 = arith.constant 896 : index
    %c0_59 = arith.constant 0 : index
    %187 = vector.load %arg3[%c896, %c0_59] : memref<2048x512xbf16, #tpu.memory_space<vmem>>, vector<128x384xbf16>
    %c1024 = arith.constant 1024 : index
    %c0_60 = arith.constant 0 : index
    %188 = vector.load %arg3[%c1024, %c0_60] : memref<2048x512xbf16, #tpu.memory_space<vmem>>, vector<128x128xbf16>
    %c1152 = arith.constant 1152 : index
    %c0_61 = arith.constant 0 : index
    %189 = vector.load %arg3[%c1152, %c0_61] : memref<2048x512xbf16, #tpu.memory_space<vmem>>, vector<128x512xbf16>
    %c1280 = arith.constant 1280 : index
    %c0_62 = arith.constant 0 : index
    %190 = vector.load %arg3[%c1280, %c0_62] : memref<2048x512xbf16, #tpu.memory_space<vmem>>, vector<512x128xbf16>
    %c10 = arith.constant 10 : index
    %c0_63 = arith.constant 0 : index
    %191 = vector.load %arg4[%c10, %c0_63] : memref<20x512xf32, #tpu.memory_space<vmem>>, vector<1x384xf32>
    %c11 = arith.constant 11 : index
    %c0_64 = arith.constant 0 : index
    %192 = vector.load %arg4[%c11, %c0_64] : memref<20x512xf32, #tpu.memory_space<vmem>>, vector<1x128xf32>
    %c12 = arith.constant 12 : index
    %c0_65 = arith.constant 0 : index
    %193 = vector.load %arg4[%c12, %c0_65] : memref<20x512xf32, #tpu.memory_space<vmem>>, vector<1x128xf32>
    %c13 = arith.constant 13 : index
    %c0_66 = arith.constant 0 : index
    %194 = vector.load %arg4[%c13, %c0_66] : memref<20x512xf32, #tpu.memory_space<vmem>>, vector<1x128xf32>
    %c14 = arith.constant 14 : index
    %c0_67 = arith.constant 0 : index
    %195 = vector.load %arg4[%c14, %c0_67] : memref<20x512xf32, #tpu.memory_space<vmem>>, vector<1x512xf32>
    %c15 = arith.constant 15 : index
    %c0_68 = arith.constant 0 : index
    %196 = vector.load %arg4[%c15, %c0_68] : memref<20x512xf32, #tpu.memory_space<vmem>>, vector<1x128xf32>
    %c16 = arith.constant 16 : index
    %c0_69 = arith.constant 0 : index
    %197 = vector.load %arg4[%c16, %c0_69] : memref<20x512xf32, #tpu.memory_space<vmem>>, vector<1x128xf32>
    %c17 = arith.constant 17 : index
    %c0_70 = arith.constant 0 : index
    %198 = vector.load %arg4[%c17, %c0_70] : memref<20x512xf32, #tpu.memory_space<vmem>>, vector<1x128xf32>
    %199 = arith.truncf %186 : vector<16x128xf32> to vector<16x128xbf16>
    %cst_71 = arith.constant dense<0.000000e+00> : vector<16x384xf32>
    %200 = tpu.matmul %199, %187, %cst_71 {dimension_numbers = #tpu.dot_dimension_numbers<[1], [0], [0], [1], [0, 0, 1, 1], [], []>} : vector<16x128xbf16>, vector<128x384xbf16>, vector<16x384xf32> -> vector<16x384xf32>
    %201 = vector.broadcast %191 : vector<1x384xf32> to vector<16x384xf32>
    %202 = arith.addf %200, %201 : vector<16x384xf32>
    %203 = arith.truncf %202 : vector<16x384xf32> to vector<16x384xbf16>
    %204 = vector.extract_strided_slice %203 {offsets = [0, 0], sizes = [16, 32], strides = [1, 1]} : vector<16x384xbf16> to vector<16x32xbf16>
    %205 = vector.extract_strided_slice %203 {offsets = [0, 128], sizes = [16, 32], strides = [1, 1]} : vector<16x384xbf16> to vector<16x32xbf16>
    %206 = vector.extract_strided_slice %203 {offsets = [0, 256], sizes = [16, 32], strides = [1, 1]} : vector<16x384xbf16> to vector<16x32xbf16>
    "tpu.trace_start"() <{level = 10 : i32, message = "qd,kd->qk"}> : () -> ()
    %cst_72 = arith.constant dense<0.000000e+00> : vector<16x16xf32>
    %207 = tpu.matmul %204, %205, %cst_72 {dimension_numbers = #tpu.dot_dimension_numbers<[1], [1], [0], [0], [0, 0, 1, 0], [], []>} : vector<16x32xbf16>, vector<16x32xbf16>, vector<16x16xf32> -> vector<16x16xf32>
    "tpu.trace_stop"() : () -> ()
    %208 = arith.addf %207, %29 : vector<16x16xf32>
    %cst_73 = arith.constant dense<0xFF800000> : vector<16xf32>
    %209 = vector.multi_reduction <maximumf>, %208, %cst_73 [1] : vector<16x16xf32> to vector<16xf32>
    %210 = vector.shape_cast %209 : vector<16xf32> to vector<16x1xf32>
    %211 = vector.broadcast %210 : vector<16x1xf32> to vector<16x16xf32>
    %212 = arith.subf %208, %211 : vector<16x16xf32>
    %213 = math.exp %212 : vector<16x16xf32>
    %cst_74 = arith.constant dense<0.000000e+00> : vector<16xf32>
    %214 = vector.multi_reduction <add>, %213, %cst_74 [1] : vector<16x16xf32> to vector<16xf32>
    %215 = vector.shape_cast %214 : vector<16xf32> to vector<16x1xf32>
    %216 = tpu.reciprocal %215 {approx = true} : vector<16x1xf32> -> vector<16x1xf32>
    %217 = vector.broadcast %216 : vector<16x1xf32> to vector<16x16xf32>
    %218 = arith.mulf %213, %217 : vector<16x16xf32>
    %219 = arith.truncf %218 : vector<16x16xf32> to vector<16x16xbf16>
    %cst_75 = arith.constant dense<0.000000e+00> : vector<16x32xf32>
    %220 = tpu.matmul %219, %206, %cst_75 {dimension_numbers = #tpu.dot_dimension_numbers<[1], [0], [0], [1], [0, 0, 1, 1], [], []>} : vector<16x16xbf16>, vector<16x32xbf16>, vector<16x32xf32> -> vector<16x32xf32>
    %221 = vector.extract_strided_slice %203 {offsets = [0, 32], sizes = [16, 32], strides = [1, 1]} : vector<16x384xbf16> to vector<16x32xbf16>
    %222 = vector.extract_strided_slice %203 {offsets = [0, 160], sizes = [16, 32], strides = [1, 1]} : vector<16x384xbf16> to vector<16x32xbf16>
    %223 = vector.extract_strided_slice %203 {offsets = [0, 288], sizes = [16, 32], strides = [1, 1]} : vector<16x384xbf16> to vector<16x32xbf16>
    "tpu.trace_start"() <{level = 10 : i32, message = "qd,kd->qk"}> : () -> ()
    %cst_76 = arith.constant dense<0.000000e+00> : vector<16x16xf32>
    %224 = tpu.matmul %221, %222, %cst_76 {dimension_numbers = #tpu.dot_dimension_numbers<[1], [1], [0], [0], [0, 0, 1, 0], [], []>} : vector<16x32xbf16>, vector<16x32xbf16>, vector<16x16xf32> -> vector<16x16xf32>
    "tpu.trace_stop"() : () -> ()
    %225 = arith.addf %224, %29 : vector<16x16xf32>
    %cst_77 = arith.constant dense<0xFF800000> : vector<16xf32>
    %226 = vector.multi_reduction <maximumf>, %225, %cst_77 [1] : vector<16x16xf32> to vector<16xf32>
    %227 = vector.shape_cast %226 : vector<16xf32> to vector<16x1xf32>
    %228 = vector.broadcast %227 : vector<16x1xf32> to vector<16x16xf32>
    %229 = arith.subf %225, %228 : vector<16x16xf32>
    %230 = math.exp %229 : vector<16x16xf32>
    %cst_78 = arith.constant dense<0.000000e+00> : vector<16xf32>
    %231 = vector.multi_reduction <add>, %230, %cst_78 [1] : vector<16x16xf32> to vector<16xf32>
    %232 = vector.shape_cast %231 : vector<16xf32> to vector<16x1xf32>
    %233 = tpu.reciprocal %232 {approx = true} : vector<16x1xf32> -> vector<16x1xf32>
    %234 = vector.broadcast %233 : vector<16x1xf32> to vector<16x16xf32>
    %235 = arith.mulf %230, %234 : vector<16x16xf32>
    %236 = arith.truncf %235 : vector<16x16xf32> to vector<16x16xbf16>
    %cst_79 = arith.constant dense<0.000000e+00> : vector<16x32xf32>
    %237 = tpu.matmul %236, %223, %cst_79 {dimension_numbers = #tpu.dot_dimension_numbers<[1], [0], [0], [1], [0, 0, 1, 1], [], []>} : vector<16x16xbf16>, vector<16x32xbf16>, vector<16x32xf32> -> vector<16x32xf32>
    %238 = vector.extract_strided_slice %203 {offsets = [0, 64], sizes = [16, 32], strides = [1, 1]} : vector<16x384xbf16> to vector<16x32xbf16>
    %239 = vector.extract_strided_slice %203 {offsets = [0, 192], sizes = [16, 32], strides = [1, 1]} : vector<16x384xbf16> to vector<16x32xbf16>
    %240 = vector.extract_strided_slice %203 {offsets = [0, 320], sizes = [16, 32], strides = [1, 1]} : vector<16x384xbf16> to vector<16x32xbf16>
    "tpu.trace_start"() <{level = 10 : i32, message = "qd,kd->qk"}> : () -> ()
    %cst_80 = arith.constant dense<0.000000e+00> : vector<16x16xf32>
    %241 = tpu.matmul %238, %239, %cst_80 {dimension_numbers = #tpu.dot_dimension_numbers<[1], [1], [0], [0], [0, 0, 1, 0], [], []>} : vector<16x32xbf16>, vector<16x32xbf16>, vector<16x16xf32> -> vector<16x16xf32>
    "tpu.trace_stop"() : () -> ()
    %242 = arith.addf %241, %29 : vector<16x16xf32>
    %cst_81 = arith.constant dense<0xFF800000> : vector<16xf32>
    %243 = vector.multi_reduction <maximumf>, %242, %cst_81 [1] : vector<16x16xf32> to vector<16xf32>
    %244 = vector.shape_cast %243 : vector<16xf32> to vector<16x1xf32>
    %245 = vector.broadcast %244 : vector<16x1xf32> to vector<16x16xf32>
    %246 = arith.subf %242, %245 : vector<16x16xf32>
    %247 = math.exp %246 : vector<16x16xf32>
    %cst_82 = arith.constant dense<0.000000e+00> : vector<16xf32>
    %248 = vector.multi_reduction <add>, %247, %cst_82 [1] : vector<16x16xf32> to vector<16xf32>
    %249 = vector.shape_cast %248 : vector<16xf32> to vector<16x1xf32>
    %250 = tpu.reciprocal %249 {approx = true} : vector<16x1xf32> -> vector<16x1xf32>
    %251 = vector.broadcast %250 : vector<16x1xf32> to vector<16x16xf32>
    %252 = arith.mulf %247, %251 : vector<16x16xf32>
    %253 = arith.truncf %252 : vector<16x16xf32> to vector<16x16xbf16>
    %cst_83 = arith.constant dense<0.000000e+00> : vector<16x32xf32>
    %254 = tpu.matmul %253, %240, %cst_83 {dimension_numbers = #tpu.dot_dimension_numbers<[1], [0], [0], [1], [0, 0, 1, 1], [], []>} : vector<16x16xbf16>, vector<16x32xbf16>, vector<16x32xf32> -> vector<16x32xf32>
    %255 = vector.extract_strided_slice %203 {offsets = [0, 96], sizes = [16, 32], strides = [1, 1]} : vector<16x384xbf16> to vector<16x32xbf16>
    %256 = vector.extract_strided_slice %203 {offsets = [0, 224], sizes = [16, 32], strides = [1, 1]} : vector<16x384xbf16> to vector<16x32xbf16>
    %257 = vector.extract_strided_slice %203 {offsets = [0, 352], sizes = [16, 32], strides = [1, 1]} : vector<16x384xbf16> to vector<16x32xbf16>
    "tpu.trace_start"() <{level = 10 : i32, message = "qd,kd->qk"}> : () -> ()
    %cst_84 = arith.constant dense<0.000000e+00> : vector<16x16xf32>
    %258 = tpu.matmul %255, %256, %cst_84 {dimension_numbers = #tpu.dot_dimension_numbers<[1], [1], [0], [0], [0, 0, 1, 0], [], []>} : vector<16x32xbf16>, vector<16x32xbf16>, vector<16x16xf32> -> vector<16x16xf32>
    "tpu.trace_stop"() : () -> ()
    %259 = arith.addf %258, %29 : vector<16x16xf32>
    %cst_85 = arith.constant dense<0xFF800000> : vector<16xf32>
    %260 = vector.multi_reduction <maximumf>, %259, %cst_85 [1] : vector<16x16xf32> to vector<16xf32>
    %261 = vector.shape_cast %260 : vector<16xf32> to vector<16x1xf32>
    %262 = vector.broadcast %261 : vector<16x1xf32> to vector<16x16xf32>
    %263 = arith.subf %259, %262 : vector<16x16xf32>
    %264 = math.exp %263 : vector<16x16xf32>
    %cst_86 = arith.constant dense<0.000000e+00> : vector<16xf32>
    %265 = vector.multi_reduction <add>, %264, %cst_86 [1] : vector<16x16xf32> to vector<16xf32>
    %266 = vector.shape_cast %265 : vector<16xf32> to vector<16x1xf32>
    %267 = tpu.reciprocal %266 {approx = true} : vector<16x1xf32> -> vector<16x1xf32>
    %268 = vector.broadcast %267 : vector<16x1xf32> to vector<16x16xf32>
    %269 = arith.mulf %264, %268 : vector<16x16xf32>
    %270 = arith.truncf %269 : vector<16x16xf32> to vector<16x16xbf16>
    %cst_87 = arith.constant dense<0.000000e+00> : vector<16x32xf32>
    %271 = tpu.matmul %270, %257, %cst_87 {dimension_numbers = #tpu.dot_dimension_numbers<[1], [0], [0], [1], [0, 0, 1, 1], [], []>} : vector<16x16xbf16>, vector<16x32xbf16>, vector<16x32xf32> -> vector<16x32xf32>
    %272 = tpu.concatenate %220, %237, %254, %271 in 1 : vector<16x32xf32>, vector<16x32xf32>, vector<16x32xf32>, vector<16x32xf32> -> vector<16x128xf32>
    %273 = arith.truncf %272 : vector<16x128xf32> to vector<16x128xbf16>
    %cst_88 = arith.constant dense<0.000000e+00> : vector<16x128xf32>
    %274 = tpu.matmul %273, %188, %cst_88 {dimension_numbers = #tpu.dot_dimension_numbers<[1], [0], [0], [1], [0, 0, 1, 1], [], []>} : vector<16x128xbf16>, vector<128x128xbf16>, vector<16x128xf32> -> vector<16x128xf32>
    %275 = vector.broadcast %192 : vector<1x128xf32> to vector<16x128xf32>
    %276 = arith.addf %274, %275 : vector<16x128xf32>
    %277 = arith.addf %186, %276 : vector<16x128xf32>
    %cst_89 = arith.constant dense<0.000000e+00> : vector<16xf32>
    %278 = vector.multi_reduction <add>, %277, %cst_89 [1] : vector<16x128xf32> to vector<16xf32>
    %279 = vector.shape_cast %278 : vector<16xf32> to vector<16x1xf32>
    %cst_90 = arith.constant 1.280000e+02 : f32
    %280 = vector.broadcast %cst_90 : f32 to vector<16x1xf32>
    %281 = arith.divf %279, %280 : vector<16x1xf32>
    %282 = vector.broadcast %281 : vector<16x1xf32> to vector<16x128xf32>
    %283 = arith.subf %277, %282 : vector<16x128xf32>
    %284 = arith.mulf %283, %283 : vector<16x128xf32>
    %cst_91 = arith.constant dense<0.000000e+00> : vector<16xf32>
    %285 = vector.multi_reduction <add>, %284, %cst_91 [1] : vector<16x128xf32> to vector<16xf32>
    %286 = vector.shape_cast %285 : vector<16xf32> to vector<16x1xf32>
    %cst_92 = arith.constant 1.280000e+02 : f32
    %287 = vector.broadcast %cst_92 : f32 to vector<16x1xf32>
    %288 = arith.divf %286, %287 : vector<16x1xf32>
    %289 = vector.broadcast %281 : vector<16x1xf32> to vector<16x128xf32>
    %290 = arith.subf %277, %289 : vector<16x128xf32>
    %cst_93 = arith.constant 9.99999996E-13 : f32
    %291 = vector.broadcast %cst_93 : f32 to vector<16x1xf32>
    %292 = arith.addf %288, %291 : vector<16x1xf32>
    %293 = math.rsqrt %292 : vector<16x1xf32>
    %294 = vector.broadcast %293 : vector<16x1xf32> to vector<16x128xf32>
    %295 = arith.mulf %290, %294 : vector<16x128xf32>
    %296 = vector.broadcast %193 : vector<1x128xf32> to vector<16x128xf32>
    %297 = arith.mulf %295, %296 : vector<16x128xf32>
    %298 = vector.broadcast %194 : vector<1x128xf32> to vector<16x128xf32>
    %299 = arith.addf %297, %298 : vector<16x128xf32>
    %300 = arith.truncf %299 : vector<16x128xf32> to vector<16x128xbf16>
    %cst_94 = arith.constant dense<0.000000e+00> : vector<16x512xf32>
    %301 = tpu.matmul %300, %189, %cst_94 {dimension_numbers = #tpu.dot_dimension_numbers<[1], [0], [0], [1], [0, 0, 1, 1], [], []>} : vector<16x128xbf16>, vector<128x512xbf16>, vector<16x512xf32> -> vector<16x512xf32>
    %302 = vector.broadcast %195 : vector<1x512xf32> to vector<16x512xf32>
    %303 = arith.addf %301, %302 : vector<16x512xf32>
    %cst_95 = arith.constant 5.000000e-01 : f32
    %304 = vector.broadcast %cst_95 : f32 to vector<16x512xf32>
    %305 = arith.mulf %304, %303 : vector<16x512xf32>
    %cst_96 = arith.constant 4.471500e-02 : f32
    %306 = vector.broadcast %cst_96 : f32 to vector<16x512xf32>
    %307 = arith.mulf %306, %303 : vector<16x512xf32>
    %308 = arith.mulf %307, %303 : vector<16x512xf32>
    %309 = arith.mulf %308, %303 : vector<16x512xf32>
    %310 = arith.addf %303, %309 : vector<16x512xf32>
    %cst_97 = arith.constant 0.797884583 : f32
    %311 = vector.broadcast %cst_97 : f32 to vector<16x512xf32>
    %312 = arith.mulf %311, %310 : vector<16x512xf32>
    %313 = math.tanh %312 : vector<16x512xf32>
    %cst_98 = arith.constant 1.000000e+00 : f32
    %314 = vector.broadcast %cst_98 : f32 to vector<16x512xf32>
    %315 = arith.addf %314, %313 : vector<16x512xf32>
    %316 = arith.mulf %305, %315 : vector<16x512xf32>
    %317 = arith.truncf %316 : vector<16x512xf32> to vector<16x512xbf16>
    %cst_99 = arith.constant dense<0.000000e+00> : vector<16x128xf32>
    %318 = tpu.matmul %317, %190, %cst_99 {dimension_numbers = #tpu.dot_dimension_numbers<[1], [0], [0], [1], [0, 0, 1, 1], [], []>} : vector<16x512xbf16>, vector<512x128xbf16>, vector<16x128xf32> -> vector<16x128xf32>
    %319 = vector.broadcast %196 : vector<1x128xf32> to vector<16x128xf32>
    %320 = arith.addf %318, %319 : vector<16x128xf32>
    %321 = arith.addf %299, %320 : vector<16x128xf32>
    %cst_100 = arith.constant dense<0.000000e+00> : vector<16xf32>
    %322 = vector.multi_reduction <add>, %321, %cst_100 [1] : vector<16x128xf32> to vector<16xf32>
    %323 = vector.shape_cast %322 : vector<16xf32> to vector<16x1xf32>
    %cst_101 = arith.constant 1.280000e+02 : f32
    %324 = vector.broadcast %cst_101 : f32 to vector<16x1xf32>
    %325 = arith.divf %323, %324 : vector<16x1xf32>
    %326 = vector.broadcast %325 : vector<16x1xf32> to vector<16x128xf32>
    %327 = arith.subf %321, %326 : vector<16x128xf32>
    %328 = arith.mulf %327, %327 : vector<16x128xf32>
    %cst_102 = arith.constant dense<0.000000e+00> : vector<16xf32>
    %329 = vector.multi_reduction <add>, %328, %cst_102 [1] : vector<16x128xf32> to vector<16xf32>
    %330 = vector.shape_cast %329 : vector<16xf32> to vector<16x1xf32>
    %cst_103 = arith.constant 1.280000e+02 : f32
    %331 = vector.broadcast %cst_103 : f32 to vector<16x1xf32>
    %332 = arith.divf %330, %331 : vector<16x1xf32>
    %333 = vector.broadcast %325 : vector<16x1xf32> to vector<16x128xf32>
    %334 = arith.subf %321, %333 : vector<16x128xf32>
    %cst_104 = arith.constant 9.99999996E-13 : f32
    %335 = vector.broadcast %cst_104 : f32 to vector<16x1xf32>
    %336 = arith.addf %332, %335 : vector<16x1xf32>
    %337 = math.rsqrt %336 : vector<16x1xf32>
    %338 = vector.broadcast %337 : vector<16x1xf32> to vector<16x128xf32>
    %339 = arith.mulf %334, %338 : vector<16x128xf32>
    %340 = vector.broadcast %197 : vector<1x128xf32> to vector<16x128xf32>
    %341 = arith.mulf %339, %340 : vector<16x128xf32>
    %342 = vector.broadcast %198 : vector<1x128xf32> to vector<16x128xf32>
    %343 = arith.addf %341, %342 : vector<16x128xf32>
    %c1792 = arith.constant 1792 : index
    %c0_105 = arith.constant 0 : index
    %344 = vector.load %arg3[%c1792, %c0_105] : memref<2048x512xbf16, #tpu.memory_space<vmem>>, vector<128x128xbf16>
    %c1920 = arith.constant 1920 : index
    %c0_106 = arith.constant 0 : index
    %345 = vector.load %arg3[%c1920, %c0_106] : memref<2048x512xbf16, #tpu.memory_space<vmem>>, vector<128x128xbf16>
    %c18 = arith.constant 18 : index
    %c0_107 = arith.constant 0 : index
    %346 = vector.load %arg4[%c18, %c0_107] : memref<20x512xf32, #tpu.memory_space<vmem>>, vector<1x128xf32>
    %c19 = arith.constant 19 : index
    %c0_108 = arith.constant 0 : index
    %347 = vector.load %arg4[%c19, %c0_108] : memref<20x512xf32, #tpu.memory_space<vmem>>, vector<1x128xf32>
    %348 = vector.extract_strided_slice %343 {offsets = [0, 0], sizes = [1, 128], strides = [1, 1]} : vector<16x128xf32> to vector<1x128xf32>
    %349 = arith.truncf %348 : vector<1x128xf32> to vector<1x128xbf16>
    %cst_109 = arith.constant dense<0.000000e+00> : vector<1x128xf32>
    %350 = tpu.matmul %349, %344, %cst_109 {dimension_numbers = #tpu.dot_dimension_numbers<[1], [0], [0], [1], [0, 0, 1, 1], [], []>} : vector<1x128xbf16>, vector<128x128xbf16>, vector<1x128xf32> -> vector<1x128xf32>
    %351 = arith.addf %350, %346 : vector<1x128xf32>
    %352 = math.tanh %351 : vector<1x128xf32>
    %353 = arith.truncf %352 : vector<1x128xf32> to vector<1x128xbf16>
    %cst_110 = arith.constant dense<0.000000e+00> : vector<1x128xf32>
    %354 = tpu.matmul %353, %345, %cst_110 {dimension_numbers = #tpu.dot_dimension_numbers<[1], [0], [0], [1], [0, 0, 1, 1], [], []>} : vector<1x128xbf16>, vector<128x128xbf16>, vector<1x128xf32> -> vector<1x128xf32>
    %355 = arith.addf %354, %347 : vector<1x128xf32>
    %c0_111 = arith.constant 0 : index
    %c0_112 = arith.constant 0 : index
    %c0_113 = arith.constant 0 : index
    %356 = vector.load %arg5[%c0_111, %c0_112, %c0_113] : memref<1x1x128xf32, #tpu.memory_space<vmem>>, vector<1x1x128xf32>
    %357 = vector.shape_cast %356 : vector<1x1x128xf32> to vector<1x128xf32>
    %358 = vector.shape_cast %355 : vector<1x128xf32> to vector<1x1x128xf32>
    tpu.vector_store %arg5[%c0_111, %c0_112, %c0_113], %358 {strides = array<i32>} : memref<1x1x128xf32, #tpu.memory_space<vmem>>, vector<1x1x128xf32>,
    return
  }
  func.func @transform_0(%arg0: i32) -> (i32, i32, i32) {
    %c0_i32 = arith.constant 0 : i32
    %c0_i32_0 = arith.constant 0 : i32
    %c0_i32_1 = arith.constant 0 : i32
    return %arg0, %c0_i32, %c0_i32_0 : i32, i32, i32
  }
  func.func @transform_1(%arg0: i32) -> (i32, i32, i32) {
    %c0_i32 = arith.constant 0 : i32
    %c0_i32_0 = arith.constant 0 : i32
    %c0_i32_1 = arith.constant 0 : i32
    return %arg0, %c0_i32, %c0_i32_0 : i32, i32, i32
  }
  func.func @transform_2(%arg0: i32) -> (i32, i32) {
    %c0_i32 = arith.constant 0 : i32
    %c0_i32_0 = arith.constant 0 : i32
    %c0_i32_1 = arith.constant 0 : i32
    return %c0_i32, %c0_i32_0 : i32, i32
  }
  func.func @transform_3(%arg0: i32) -> (i32, i32) {
    %c0_i32 = arith.constant 0 : i32
    %c0_i32_0 = arith.constant 0 : i32
    %c0_i32_1 = arith.constant 0 : i32
    return %c0_i32, %c0_i32_0 : i32, i32
  }
  func.func @transform_4(%arg0: i32) -> (i32, i32, i32) {
    %c0_i32 = arith.constant 0 : i32
    %c0_i32_0 = arith.constant 0 : i32
    %c0_i32_1 = arith.constant 0 : i32
    return %arg0, %c0_i32, %c0_i32_0 : i32, i32, i32
  }
}

</mosaic_0001>

<llo_original>
// kernel: text_classification_forward.1
$region0: #{text_classification_forward.1}
  #allocation0 [shape = 'u32[]', space=smem, size = 0x4, offset = 0x4, fixed_abs, tag = 'smem constant byte address 0x4 - core index']
  #allocation1 [shape = 'u32[144,128]{1,0:T(1,128)}', space=vmem, size = 0x12000, scoped, tag = 'internal scratch']
  %s0 = inlined_call_operand.vmem [shape: f32[2,16,128], index: 0, kind: input, shape index: {}]
  %s1 = inlined_call_operand.vmem [shape: f32[2,1,16], index: 1, kind: input, shape index: {}]
  %s2 = inlined_call_operand.hbm [shape: bf16[2048,512], index: 2, kind: input, shape index: {}]
  %s3 = inlined_call_operand.hbm [shape: f32[20,512], index: 3, kind: input, shape index: {}]
  %s4 = inlined_call_operand.hbm [shape: f32[2,1,128], index: 4, kind: output, shape index: {}]
  %s5 = sld [smem:[#allocation0]]
  $region57: #{text_classification_forward.1} parent=0
    _
  %s7 = ssub.s32 1, %s5
  %s8 = scalar_select 0, %s7, %s5
  $region1: #{text_classification_forward.1} parent=0
    #allocation2 [shape = 'u8[2097152]{0}', space=vmem, size = 0x200000, scoped, tag = 'input window, operand 2, single buffered']
    #allocation3 [shape = 's32[2]{0}', space=sflag, size = 0x8, scoped, tag = 'scoped memory for text_classification_forward.1']
    #allocation4 [shape = 's32[2]{0}', space=sflag, size = 0x8, scoped, tag = 'scoped memory for text_classification_forward.1']
    #allocation5 [shape = 'u8[49152]{0}', space=vmem, size = 0xc000, scoped, tag = 'input window, operand 3, single buffered']
    #allocation6 [shape = 's32[1]{0}', space=sflag, size = 0x4, scoped, tag = 'scoped memory for text_classification_forward.1']
    #allocation7 [shape = 'u8[1024]{0}', space=vmem, size = 0x400, scoped, tag = 'output window, operand 0']
    %9 = vsyncpa [#allocation3], 0
    %10 = vsyncpa [#allocation6], 0
    %11 = vsyncpa [#allocation4], 0
    %s12 = scalar_lea.sflag [#allocation4], 1
    %13 = vsyncpa %s12, 0
    loop: start=0, step=1, limit=4
    $region2: #{text_classification_forward.1} parent=1 // loop_pre_header
      _
    $region3: #{text_classification_forward.1} parent=1 // loop_header
      %s15 = sphi 0, %s19
      %p16 = scmp.ge.s32.totalorder %s15, 4
      %s25 = sphi 0, %s27
      %s28 = sphi 0, %s25
      %s29 = sphi 0, %s28
      %s45 = sphi 0, %s29
      %s51 = sphi 0, %s53
      %s54 = sphi 0, %s51
      %s55 = sphi 0, %s54
      %s71 = sphi 0, %s55
      %s75 = sphi 0, %s75
      %s77 = sphi 0, %s75
      %s78 = sphi 0, %s77
      %s92 = sphi 0, %s78
      %s96 = sphi 0, %s96
      %s98 = sphi 0, %s96
      %s99 = sphi 0, %s98
      %s113 = sphi 0, %s99
      %s119 = sphi 0, %s121
      %s122 = sphi 0, %s119
      %s123 = sphi 0, %s122
      %s139 = sphi 0, %s123
    $region4: #{text_classification_forward.1} parent=1 // loop_header_branch
      %18 = sbr.rel (%p16) target = $region8
    $region5: #{text_classification_forward.1} parent=1 // loop_body
      %s20 = ssub.s32 %s15, 1
      %s21 = ssub.s32 %s15, 2
      %s22 = sadd.s32 %s15, 1
      %s23 = ssub.s32 %s15, %s22
      %p24 = scmp.eq.s32.totalorder %s23, 0
      %s26 = sadd.s32 %s25, 1
      %s27 = scalar_select %p24, %s25, %s26
      %p30 = pneg %p24
      %p31 = scmp.eq.s32.totalorder %s15, 1
      %p32 = por %p30, %p31
      %p33 = scmp.ne.s32.totalorder %s25, %s28
      %p34 = scmp.eq.s32.totalorder %s15, 0
      %p35 = por %p33, %p34
      %p36 = scmp.ne.s32.totalorder %s25, %s28
      %p37 = scmp.eq.s32.totalorder %s20, 1
      %p38 = por %p36, %p37
      %p39 = scmp.ne.s32.totalorder %s28, %s29
      %p40 = scmp.eq.s32.totalorder %s20, 0
      %p41 = por %p39, %p40
      %p42 = scmp.ne.s32.totalorder %s28, %s29
      %p43 = scmp.eq.s32.totalorder %s21, 1
      %p44 = por %p42, %p43
      %p46 = scmp.ne.s32.totalorder %s29, %s45
      %p47 = scmp.eq.s32.totalorder %s21, 0
      %p48 = por %p46, %p47
      %s49 = ssub.s32 %s15, %s22
      %p50 = scmp.eq.s32.totalorder %s49, 0
      %s52 = sadd.s32 %s51, 1
      %s53 = scalar_select %p50, %s51, %s52
      %p56 = pneg %p50
      %p57 = scmp.eq.s32.totalorder %s15, 1
      %p58 = por %p56, %p57
      %p59 = scmp.ne.s32.totalorder %s51, %s54
      %p60 = scmp.eq.s32.totalorder %s15, 0
      %p61 = por %p59, %p60
      %p62 = scmp.ne.s32.totalorder %s51, %s54
      %p63 = scmp.eq.s32.totalorder %s20, 1
      %p64 = por %p62, %p63
      %p65 = scmp.ne.s32.totalorder %s54, %s55
      %p66 = scmp.eq.s32.totalorder %s20, 0
      %p67 = por %p65, %p66
      %p68 = scmp.ne.s32.totalorder %s54, %s55
      %p69 = scmp.eq.s32.totalorder %s21, 1
      %p70 = por %p68, %p69
      %p72 = scmp.ne.s32.totalorder %s55, %s71
      %p73 = scmp.eq.s32.totalorder %s21, 0
      %p74 = por %p72, %p73
      %s76 = sadd.s32 %s75, 1
      %p79 = scmp.eq.s32.totalorder %s15, 1
      %p80 = scmp.ne.s32.totalorder %s75, %s77
      %p81 = scmp.eq.s32.totalorder %s15, 0
      %p82 = por %p80, %p81
      %p83 = scmp.ne.s32.totalorder %s75, %s77
      %p84 = scmp.eq.s32.totalorder %s20, 1
      %p85 = por %p83, %p84
      %p86 = scmp.ne.s32.totalorder %s77, %s78
      %p87 = scmp.eq.s32.totalorder %s20, 0
      %p88 = por %p86, %p87
      %p89 = scmp.ne.s32.totalorder %s77, %s78
      %p90 = scmp.eq.s32.totalorder %s21, 1
      %p91 = por %p89, %p90
      %p93 = scmp.ne.s32.totalorder %s78, %s92
      %p94 = scmp.eq.s32.totalorder %s21, 0
      %p95 = por %p93, %p94
      %s97 = sadd.s32 %s96, 1
      %p100 = scmp.eq.s32.totalorder %s15, 1
      %p101 = scmp.ne.s32.totalorder %s96, %s98
      %p102 = scmp.eq.s32.totalorder %s15, 0
      %p103 = por %p101, %p102
      %p104 = scmp.ne.s32.totalorder %s96, %s98
      %p105 = scmp.eq.s32.totalorder %s20, 1
      %p106 = por %p104, %p105
      %p107 = scmp.ne.s32.totalorder %s98, %s99
      %p108 = scmp.eq.s32.totalorder %s20, 0
      %p109 = por %p107, %p108
      %p110 = scmp.ne.s32.totalorder %s98, %s99
      %p111 = scmp.eq.s32.totalorder %s21, 1
      %p112 = por %p110, %p111
      %p114 = scmp.ne.s32.totalorder %s99, %s113
      %p115 = scmp.eq.s32.totalorder %s21, 0
      %p116 = por %p114, %p115
      %s117 = ssub.s32 %s15, %s22
      %p118 = scmp.eq.s32.totalorder %s117, 0
      %s120 = sadd.s32 %s119, 1
      %s121 = scalar_select %p118, %s119, %s120
      %p124 = pneg %p118
      %p125 = scmp.eq.s32.totalorder %s15, 1
      %p126 = por %p124, %p125
      %p127 = scmp.ne.s32.totalorder %s119, %s122
      %p128 = scmp.eq.s32.totalorder %s15, 0
      %p129 = por %p127, %p128
      %p130 = scmp.ne.s32.totalorder %s119, %s122
      %p131 = scmp.eq.s32.totalorder %s20, 1
      %p132 = por %p130, %p131
      %p133 = scmp.ne.s32.totalorder %s122, %s123
      %p134 = scmp.eq.s32.totalorder %s20, 0
      %p135 = por %p133, %p134
      %p136 = scmp.ne.s32.totalorder %s122, %s123
      %p137 = scmp.eq.s32.totalorder %s21, 1
      %p138 = por %p136, %p137
      %p140 = scmp.ne.s32.totalorder %s123, %s139
      %p141 = scmp.eq.s32.totalorder %s21, 0
      %p142 = por %p140, %p141
      %p143 = scmp.le.s32.totalorder 1, %s15
      %p144 = scmp.lt.s32.totalorder %s15, 3
      %p145 = pnand %p143, %p144
      %p146 = pneg %p145
      // Predicated region
      $region9: #{text_classification_forward.1} parent=5 // pred_check
        _
      $region10: #{text_classification_forward.1} parent=5 // pred_check_branch
        %148 = sbr.rel (%p145) target = $region12
      $region11: #{text_classification_forward.1} parent=5 // pred_region
        %s149 = ssub.s32 %s15, 1
        // Predicated region
        $region13: #{text_classification_forward.1} parent=11 // pred_check
          %p150 = pneg %p88
        $region14: #{text_classification_forward.1} parent=11 // pred_check_branch
          %152 = sbr.rel (%p150) target = $region16
        $region15: #{text_classification_forward.1} parent=11 // pred_region
          %s154 = ssub.s32 65536, 65536
          %155 = vsyncadd [#allocation3], %s154
          %s156 = sshll.u32 [#allocation2], 4
          %s157 = int_to_ptr.vmem [resolvable:$true] %s156
          %162 = dma.hbm_to_vmem [thread:$0]  %s2, 65536, %s157, [#allocation3], 256, 256, 16
        $region16: #{text_classification_forward.1} parent=11 // pred_fallthru
          _
        // Predicated region
        $region17: #{text_classification_forward.1} parent=11 // pred_check
          %p163 = pneg %p109
        $region18: #{text_classification_forward.1} parent=11 // pred_check_branch
          %165 = sbr.rel (%p163) target = $region20
        $region19: #{text_classification_forward.1} parent=11 // pred_region
          %s167 = ssub.s32 1536, 1536
          %168 = vsyncadd [#allocation6], %s167
          %s169 = sshll.u32 [#allocation5], 4
          %s170 = int_to_ptr.vmem [resolvable:$true] %s169
          %175 = dma.hbm_to_vmem [thread:$0]  %s3, 1536, %s170, [#allocation6], 512, 512, 32
        $region20: #{text_classification_forward.1} parent=11 // pred_fallthru
          _
      $region12: #{text_classification_forward.1} parent=5 // pred_fallthru
        _
      %p176 = scmp.lt.s32.totalorder %s15, 2
      // Predicated region
      $region21: #{text_classification_forward.1} parent=5 // pred_check
        %p177 = pneg %p176
      $region22: #{text_classification_forward.1} parent=5 // pred_check_branch
        %179 = sbr.rel (%p177) target = $region24
      $region23: #{text_classification_forward.1} parent=5 // pred_region
        // Predicated region
        $region25: #{text_classification_forward.1} parent=23 // pred_check
          %p180 = pneg %p35
        $region26: #{text_classification_forward.1} parent=23 // pred_check_branch
          %182 = sbr.rel (%p180) target = $region28
        $region27: #{text_classification_forward.1} parent=23 // pred_region
          %p183 = scmp.lt.s32.totalorder %s15, 1
          %s184 = scalar_select %p183, %s15, 1
          %s185 = smul.addr %s184, 2
          %s186 = smul.addr %s185, 8
          %s187 = scalar_lea.vmem %s0, %s186
        $region28: #{text_classification_forward.1} parent=23 // pred_fallthru
          _
        // Predicated region
        $region29: #{text_classification_forward.1} parent=23 // pred_check
          %p188 = pneg %p61
        $region30: #{text_classification_forward.1} parent=23 // pred_check_branch
          %190 = sbr.rel (%p188) target = $region32
        $region31: #{text_classification_forward.1} parent=23 // pred_region
          %p191 = scmp.lt.s32.totalorder %s15, 1
          %s192 = scalar_select %p191, %s15, 1
          %s193 = scalar_lea.vmem %s1, %s192
        $region32: #{text_classification_forward.1} parent=23 // pred_fallthru
          _
      $region24: #{text_classification_forward.1} parent=5 // pred_fallthru
        _
      %p194 = scmp.le.s32.totalorder 1, %s15
      %p195 = scmp.lt.s32.totalorder %s15, 3
      %p196 = pnand %p194, %p195
      %p197 = pneg %p196
      // Predicated region
      $region33: #{text_classification_forward.1} parent=5 // pred_check
        _
      $region34: #{text_classification_forward.1} parent=5 // pred_check_branch
        %199 = sbr.rel (%p196) target = $region36
      $region35: #{text_classification_forward.1} parent=5 // pred_region
        %s200 = ssub.s32 %s15, 1
        // Predicated region
        $region37: #{text_classification_forward.1} parent=35 // pred_check
          %p201 = pneg %p88
        $region38: #{text_classification_forward.1} parent=35 // pred_check_branch
          %203 = sbr.rel (%p201) target = $region40
        $region39: #{text_classification_forward.1} parent=35 // pred_region
          %204 = dma.done [#allocation3], 65536
        $region40: #{text_classification_forward.1} parent=35 // pred_fallthru
          _
        // Predicated region
        $region41: #{text_classification_forward.1} parent=35 // pred_check
          %p205 = pneg %p109
        $region42: #{text_classification_forward.1} parent=35 // pred_check_branch
          %207 = sbr.rel (%p205) target = $region44
        $region43: #{text_classification_forward.1} parent=35 // pred_region
          %208 = dma.done [#allocation6], 1536
        $region44: #{text_classification_forward.1} parent=35 // pred_fallthru
          _
        %p209 = scmp.lt.s32.totalorder %s20, 1
        %s210 = scalar_select %p209, %s20, 1
        %s211 = smul.addr %s210, 2
        %s212 = smul.addr %s211, 8
        %s213 = scalar_lea.vmem %s0, %s212
        %p214 = pneg %p41
        %p215 = pneg %p38
        %p216 = scmp.lt.s32.totalorder %s20, 1
        %s217 = scalar_select %p216, %s20, 1
        %s218 = scalar_lea.vmem %s1, %s217
        %p219 = pneg %p67
        %p220 = pneg %p64
        %p221 = pneg %p88
        %p222 = pneg %p85
        %p223 = pneg %p109
        %p224 = pneg %p106
        %p225 = pneg %p135
        %p226 = pneg %p132
        %s227 = sand.u32 %s122, 1
        %s228 = scalar_lea.sflag [#allocation4], %s227
        %s229 = sand.u32 %s122, 1
        %s230 = scalar_lea.vmem [#allocation7], %s229
        %p231 = scmp.lt.s32.totalorder %s20, 1
        %s232 = scalar_select %p231, %s20, 1
        %s233 = smul.addr %s232, 2
        %s234 = smul.addr %s233, 8
        %s235 = scalar_lea.vmem %s0, %s234
        %p236 = scmp.lt.s32.totalorder %s20, 1
        %s237 = scalar_select %p236, %s20, 1
        %s238 = scalar_lea.vmem %s1, %s237
        %v240 = vld [vmem:[%s235] sm:$0xff]
        %v241 = vld [vmem:[%s235 + $0x8] sm:$0xff]
        %v242 = vld [vmem:[#allocation5] ss:$0 sm:$0xff]
        %v243 = vld [vmem:[#allocation5 + $0x1] ss:$0 sm:$0xff]
        %244 = vadd.xlane.f32.xlu0 %v240
        %v245 = vpop.xlane.xlu0 %244
        %246 = vadd.xlane.f32.xlu0 %v241
        %v247 = vpop.xlane.xlu0 %246
        %v248 = vrcp.pop 128.0
        %v249 = vmul.f32 %v245, %v248
        %v250 = vmul.f32 %v247, %v248
        %v251 = vsub.f32 %v240, %v249
        %v252 = vsub.f32 %v241, %v250
        %v253 = vmul.f32 %v251, %v251
        %v254 = vmul.f32 %v252, %v252
        %255 = vadd.xlane.f32.xlu0 %v253
        %v256 = vpop.xlane.xlu0 %255
        %257 = vadd.xlane.f32.xlu0 %v254
        %v258 = vpop.xlane.xlu0 %257
        %v259 = vmul.f32 %v256, %v248
        %v260 = vmul.f32 %v258, %v248
        %v261 = vadd.f32 %v259, 1e-12
        %v262 = vadd.f32 %v260, 1e-12
        %v263 = vrsqrt.pop %v261
        %v264 = vrsqrt.pop %v262
        %v265 = vmul.f32 %v251, %v263
        %v266 = vmul.f32 %v252, %v264
        %v267 = vmul.f32 %v265, %v242
        %v268 = vmul.f32 %v266, %v242
        %v269 = vadd.f32 %v267, %v243
        %v270 = vadd.f32 %v268, %v243
        %v271 = vld [vmem:[%s238] sm:$0x1]
        %v273 = vlaneseq
        %v274 = vshrl.u32 %v273, 7
        %v275 = vsub.s32 0, %v274
        %v276 = vrot.slane %v271, %v275
        %v278 = vld [vmem:[#allocation2] sm:$0xff]
        %v279 = vld [vmem:[#allocation2 + $0x8] sm:$0xf]
        %v280 = vld [vmem:[#allocation2 + $0x10] sm:$0xff]
        %v281 = vld [vmem:[#allocation2 + $0x18] sm:$0xf]
        %v282 = vld [vmem:[#allocation2 + $0x20] sm:$0xff]
        %v283 = vld [vmem:[#allocation2 + $0x28] sm:$0xf]
        %v284 = vld [vmem:[#allocation2 + $0x30] sm:$0xff]
        %v285 = vld [vmem:[#allocation2 + $0x38] sm:$0xf]
        %v286 = vld [vmem:[#allocation2 + $0x40] sm:$0xff]
        %v287 = vld [vmem:[#allocation2 + $0x48] sm:$0xf]
        %v288 = vld [vmem:[#allocation2 + $0x50] sm:$0xff]
        %v289 = vld [vmem:[#allocation2 + $0x58] sm:$0xf]
        %v290 = vld [vmem:[#allocation2 + $0x60] sm:$0xff]
        %v291 = vld [vmem:[#allocation2 + $0x68] sm:$0xf]
        %v292 = vld [vmem:[#allocation2 + $0x70] sm:$0xff]
        %v293 = vld [vmem:[#allocation2 + $0x78] sm:$0xf]
        %v294 = vld [vmem:[#allocation2 + $0x80] sm:$0xff]
        %v295 = vld [vmem:[#allocation2 + $0x88] sm:$0xf]
        %v296 = vld [vmem:[#allocation2 + $0x90] sm:$0xff]
        %v297 = vld [vmem:[#allocation2 + $0x98] sm:$0xf]
        %v298 = vld [vmem:[#allocation2 + $0xa0] sm:$0xff]
        %v299 = vld [vmem:[#allocation2 + $0xa8] sm:$0xf]
        %v300 = vld [vmem:[#allocation2 + $0xb0] sm:$0xff]
        %v301 = vld [vmem:[#allocation2 + $0xb8] sm:$0xf]
        %v302 = vld [vmem:[#allocation2 + $0xc0] sm:$0xff]
        %v303 = vld [vmem:[#allocation2 + $0xc8] sm:$0xf]
        %v304 = vld [vmem:[#allocation2 + $0xd0] sm:$0xff]
        %v305 = vld [vmem:[#allocation2 + $0xd8] sm:$0xf]
        %v306 = vld [vmem:[#allocation2 + $0xe0] sm:$0xff]
        %v307 = vld [vmem:[#allocation2 + $0xe8] sm:$0xf]
        %v308 = vld [vmem:[#allocation2 + $0xf0] sm:$0xff]
        %v309 = vld [vmem:[#allocation2 + $0xf8] sm:$0xf]
        %v310 = vld [vmem:[#allocation2 + $0x100] sm:$0xf]
        %v311 = vld [vmem:[#allocation2 + $0x110] sm:$0xf]
        %v312 = vld [vmem:[#allocation2 + $0x120] sm:$0xf]
        %v313 = vld [vmem:[#allocation2 + $0x130] sm:$0xf]
        %v314 = vld [vmem:[#allocation2 + $0x140] sm:$0xf]
        %v315 = vld [vmem:[#allocation2 + $0x150] sm:$0xf]
        %v316 = vld [vmem:[#allocation2 + $0x160] sm:$0xf]
        %v317 = vld [vmem:[#allocation2 + $0x170] sm:$0xf]
        %v318 = vld [vmem:[#allocation2 + $0x180] sm:$0xf]
        %v319 = vld [vmem:[#allocation2 + $0x190] sm:$0xf]
        %v320 = vld [vmem:[#allocation2 + $0x1a0] sm:$0xf]
        %v321 = vld [vmem:[#allocation2 + $0x1b0] sm:$0xf]
        %v322 = vld [vmem:[#allocation2 + $0x1c0] sm:$0xf]
        %v323 = vld [vmem:[#allocation2 + $0x1d0] sm:$0xf]
        %v324 = vld [vmem:[#allocation2 + $0x1e0] sm:$0xf]
        %v325 = vld [vmem:[#allocation2 + $0x1f0] sm:$0xf]
        %v326 = vld [vmem:[#allocation2 + $0x200] sm:$0xff]
        %v327 = vld [vmem:[#allocation2 + $0x208] sm:$0xff]
        %v328 = vld [vmem:[#allocation2 + $0x210] sm:$0xff]
        %v329 = vld [vmem:[#allocation2 + $0x218] sm:$0xff]
        %v330 = vld [vmem:[#allocation2 + $0x220] sm:$0xff]
        %v331 = vld [vmem:[#allocation2 + $0x228] sm:$0xff]
        %v332 = vld [vmem:[#allocation2 + $0x230] sm:$0xff]
        %v333 = vld [vmem:[#allocation2 + $0x238] sm:$0xff]
        %v334 = vld [vmem:[#allocation2 + $0x240] sm:$0xff]
        %v335 = vld [vmem:[#allocation2 + $0x248] sm:$0xff]
        %v336 = vld [vmem:[#allocation2 + $0x250] sm:$0xff]
        %v337 = vld [vmem:[#allocation2 + $0x258] sm:$0xff]
        %v338 = vld [vmem:[#allocation2 + $0x260] sm:$0xff]
        %v339 = vld [vmem:[#allocation2 + $0x268] sm:$0xff]
        %v340 = vld [vmem:[#allocation2 + $0x270] sm:$0xff]
        %v341 = vld [vmem:[#allocation2 + $0x278] sm:$0xff]
        %v342 = vld [vmem:[#allocation2 + $0x280] sm:$0xff]
        %v343 = vld [vmem:[#allocation2 + $0x288] sm:$0xff]
        %v344 = vld [vmem:[#allocation2 + $0x290] sm:$0xff]
        %v345 = vld [vmem:[#allocation2 + $0x298] sm:$0xff]
        %v346 = vld [vmem:[#allocation2 + $0x2a0] sm:$0xff]
        %v347 = vld [vmem:[#allocation2 + $0x2a8] sm:$0xff]
        %v348 = vld [vmem:[#allocation2 + $0x2b0] sm:$0xff]
        %v349 = vld [vmem:[#allocation2 + $0x2b8] sm:$0xff]
        %v350 = vld [vmem:[#allocation2 + $0x2c0] sm:$0xff]
        %v351 = vld [vmem:[#allocation2 + $0x2c8] sm:$0xff]
        %v352 = vld [vmem:[#allocation2 + $0x2d0] sm:$0xff]
        %v353 = vld [vmem:[#allocation2 + $0x2d8] sm:$0xff]
        %v354 = vld [vmem:[#allocation2 + $0x2e0] sm:$0xff]
        %v355 = vld [vmem:[#allocation2 + $0x2e8] sm:$0xff]
        %v356 = vld [vmem:[#allocation2 + $0x2f0] sm:$0xff]
        %v357 = vld [vmem:[#allocation2 + $0x2f8] sm:$0xff]
        %v358 = vld [vmem:[#allocation2 + $0x300] sm:$0xf]
        %v359 = vld [vmem:[#allocation2 + $0x310] sm:$0xf]
        %v360 = vld [vmem:[#allocation2 + $0x320] sm:$0xf]
        %v361 = vld [vmem:[#allocation2 + $0x330] sm:$0xf]
        %v362 = vld [vmem:[#allocation2 + $0x340] sm:$0xf]
        %v363 = vld [vmem:[#allocation2 + $0x350] sm:$0xf]
        %v364 = vld [vmem:[#allocation2 + $0x360] sm:$0xf]
        %v365 = vld [vmem:[#allocation2 + $0x370] sm:$0xf]
        %v366 = vld [vmem:[#allocation2 + $0x380] sm:$0xf]
        %v367 = vld [vmem:[#allocation2 + $0x390] sm:$0xf]
        %v368 = vld [vmem:[#allocation2 + $0x3a0] sm:$0xf]
        %v369 = vld [vmem:[#allocation2 + $0x3b0] sm:$0xf]
        %v370 = vld [vmem:[#allocation2 + $0x3c0] sm:$0xf]
        %v371 = vld [vmem:[#allocation2 + $0x3d0] sm:$0xf]
        %v372 = vld [vmem:[#allocation2 + $0x3e0] sm:$0xf]
        %v373 = vld [vmem:[#allocation2 + $0x3f0] sm:$0xf]
        %v374 = vld [vmem:[#allocation2 + $0x400] sm:$0xf]
        %v375 = vld [vmem:[#allocation2 + $0x410] sm:$0xf]
        %v376 = vld [vmem:[#allocation2 + $0x420] sm:$0xf]
        %v377 = vld [vmem:[#allocation2 + $0x430] sm:$0xf]
        %v378 = vld [vmem:[#allocation2 + $0x440] sm:$0xf]
        %v379 = vld [vmem:[#allocation2 + $0x450] sm:$0xf]
        %v380 = vld [vmem:[#allocation2 + $0x460] sm:$0xf]
        %v381 = vld [vmem:[#allocation2 + $0x470] sm:$0xf]
        %v382 = vld [vmem:[#allocation2 + $0x480] sm:$0xf]
        %v383 = vld [vmem:[#allocation2 + $0x490] sm:$0xf]
        %v384 = vld [vmem:[#allocation2 + $0x4a0] sm:$0xf]
        %v385 = vld [vmem:[#allocation2 + $0x4b0] sm:$0xf]
        %v386 = vld [vmem:[#allocation2 + $0x4c0] sm:$0xf]
        %v387 = vld [vmem:[#allocation2 + $0x4d0] sm:$0xf]
        %v388 = vld [vmem:[#allocation2 + $0x4e0] sm:$0xf]
        %v389 = vld [vmem:[#allocation2 + $0x4f0] sm:$0xf]
        %v390 = vld [vmem:[#allocation2 + $0x500] sm:$0xf]
        %v391 = vld [vmem:[#allocation2 + $0x510] sm:$0xf]
        %v392 = vld [vmem:[#allocation2 + $0x520] sm:$0xf]
        %v393 = vld [vmem:[#allocation2 + $0x530] sm:$0xf]
        %v394 = vld [vmem:[#allocation2 + $0x540] sm:$0xf]
        %v395 = vld [vmem:[#allocation2 + $0x550] sm:$0xf]
        %v396 = vld [vmem:[#allocation2 + $0x560] sm:$0xf]
        %v397 = vld [vmem:[#allocation2 + $0x570] sm:$0xf]
        %v398 = vld [vmem:[#allocation2 + $0x580] sm:$0xf]
        %v399 = vld [vmem:[#allocation2 + $0x590] sm:$0xf]
        %v400 = vld [vmem:[#allocation2 + $0x5a0] sm:$0xf]
        %v401 = vld [vmem:[#allocation2 + $0x5b0] sm:$0xf]
        %v402 = vld [vmem:[#allocation2 + $0x5c0] sm:$0xf]
        %v403 = vld [vmem:[#allocation2 + $0x5d0] sm:$0xf]
        %v404 = vld [vmem:[#allocation2 + $0x5e0] sm:$0xf]
        %v405 = vld [vmem:[#allocation2 + $0x5f0] sm:$0xf]
        %v406 = vld [vmem:[#allocation2 + $0x600] sm:$0xf]
        %v407 = vld [vmem:[#allocation2 + $0x610] sm:$0xf]
        %v408 = vld [vmem:[#allocation2 + $0x620] sm:$0xf]
        %v409 = vld [vmem:[#allocation2 + $0x630] sm:$0xf]
        %v410 = vld [vmem:[#allocation2 + $0x640] sm:$0xf]
        %v411 = vld [vmem:[#allocation2 + $0x650] sm:$0xf]
        %v412 = vld [vmem:[#allocation2 + $0x660] sm:$0xf]
        %v413 = vld [vmem:[#allocation2 + $0x670] sm:$0xf]
        %v414 = vld [vmem:[#allocation2 + $0x680] sm:$0xf]
        %v415 = vld [vmem:[#allocation2 + $0x690] sm:$0xf]
        %v416 = vld [vmem:[#allocation2 + $0x6a0] sm:$0xf]
        %v417 = vld [vmem:[#allocation2 + $0x6b0] sm:$0xf]
        %v418 = vld [vmem:[#allocation2 + $0x6c0] sm:$0xf]
        %v419 = vld [vmem:[#allocation2 + $0x6d0] sm:$0xf]
        %v420 = vld [vmem:[#allocation2 + $0x6e0] sm:$0xf]
        %v421 = vld [vmem:[#allocation2 + $0x6f0] sm:$0xf]
        %s422 = scalar_lea.vmem [#allocation5], 2
        %v423 = vld [vmem:[%s422] ss:$8 sm:$0x7]
        %v424 = vld [vmem:[#allocation5 + $0x3] ss:$0 sm:$0xff]
        %v425 = vld [vmem:[#allocation5 + $0x4] ss:$0 sm:$0xff]
        %v426 = vld [vmem:[#allocation5 + $0x5] ss:$0 sm:$0xff]
        %s427 = scalar_lea.vmem [#allocation5], 6
        %v428 = vld [vmem:[%s427] ss:$8 sm:$0xf]
        %v429 = vld [vmem:[#allocation5 + $0x7] ss:$0 sm:$0xff]
        %v430 = vld [vmem:[#allocation5 + $0x20] ss:$0 sm:$0xff]
        %v431 = vld [vmem:[#allocation5 + $0x21] ss:$0 sm:$0xff]
        %v432 = vpack.c.bf16 %v270, %v269
        %v434 = vlaneseq
        %v435 = vshrl.u32 %v434, 7
        %v436 = vsub.s32 0, %v435
        %v437 = vrot.slane %v423, %v436
        %v438 = vlaneseq
        %v439 = vshrl.u32 %v438, 7
        %v440 = vsub.s32 1, %v439
        %v441 = vrot.slane %v423, %v440
        %v442 = vlaneseq
        %v443 = vshrl.u32 %v442, 7
        %v444 = vsub.s32 2, %v443
        %v445 = vrot.slane %v423, %v444
        %v481 = vunpack.c.l.b16 %v278
        %v482 = vunpack.c.h.b16 %v278
        %v483 = vunpack.c.l.b16 %v279
        %v484 = vunpack.c.l.b16 %v280
        %v485 = vunpack.c.h.b16 %v280
        %v486 = vunpack.c.l.b16 %v281
        %v487 = vunpack.c.l.b16 %v282
        %v488 = vunpack.c.h.b16 %v282
        %v489 = vunpack.c.l.b16 %v283
        %v490 = vunpack.c.l.b16 %v284
        %v491 = vunpack.c.h.b16 %v284
        %v492 = vunpack.c.l.b16 %v285
        %v493 = vunpack.c.l.b16 %v286
        %v494 = vunpack.c.h.b16 %v286
        %v495 = vunpack.c.l.b16 %v287
        %v496 = vunpack.c.l.b16 %v288
        %v497 = vunpack.c.h.b16 %v288
        %v498 = vunpack.c.l.b16 %v289
        %v499 = vunpack.c.l.b16 %v290
        %v500 = vunpack.c.h.b16 %v290
        %v501 = vunpack.c.l.b16 %v291
        %v502 = vunpack.c.l.b16 %v292
        %v503 = vunpack.c.h.b16 %v292
        %v504 = vunpack.c.l.b16 %v293
        %v505 = vunpack.c.l.b16 %v294
        %v506 = vunpack.c.h.b16 %v294
        %v507 = vunpack.c.l.b16 %v295
        %v508 = vunpack.c.l.b16 %v296
        %v509 = vunpack.c.h.b16 %v296
        %v510 = vunpack.c.l.b16 %v297
        %v511 = vunpack.c.l.b16 %v298
        %v512 = vunpack.c.h.b16 %v298
        %v513 = vunpack.c.l.b16 %v299
        %v514 = vunpack.c.l.b16 %v300
        %v515 = vunpack.c.h.b16 %v300
        %v516 = vunpack.c.l.b16 %v301
        %v517 = vunpack.c.l.b16 %v302
        %v518 = vunpack.c.h.b16 %v302
        %v519 = vunpack.c.l.b16 %v303
        %v520 = vunpack.c.l.b16 %v304
        %v521 = vunpack.c.h.b16 %v304
        %v522 = vunpack.c.l.b16 %v305
        %v523 = vunpack.c.l.b16 %v306
        %v524 = vunpack.c.h.b16 %v306
        %v525 = vunpack.c.l.b16 %v307
        %v526 = vunpack.c.l.b16 %v308
        %v527 = vunpack.c.h.b16 %v308
        %v528 = vunpack.c.l.b16 %v309
        %v529 = vpack.c.b16 %v484, %v481
        %v530 = vpack.c.b16 %v485, %v482
        %v531 = vpack.c.b16 %v486, %v483
        %v532 = vpack.c.b16 %v490, %v487
        %v533 = vpack.c.b16 %v491, %v488
        %v534 = vpack.c.b16 %v492, %v489
        %v535 = vpack.c.b16 %v496, %v493
        %v536 = vpack.c.b16 %v497, %v494
        %v537 = vpack.c.b16 %v498, %v495
        %v538 = vpack.c.b16 %v502, %v499
        %v539 = vpack.c.b16 %v503, %v500
        %v540 = vpack.c.b16 %v504, %v501
        %v541 = vpack.c.b16 %v508, %v505
        %v542 = vpack.c.b16 %v509, %v506
        %v543 = vpack.c.b16 %v510, %v507
        %v544 = vpack.c.b16 %v514, %v511
        %v545 = vpack.c.b16 %v515, %v512
        %v546 = vpack.c.b16 %v516, %v513
        %v547 = vpack.c.b16 %v520, %v517
        %v548 = vpack.c.b16 %v521, %v518
        %v549 = vpack.c.b16 %v522, %v519
        %v550 = vpack.c.b16 %v526, %v523
        %v551 = vpack.c.b16 %v527, %v524
        %v552 = vpack.c.b16 %v528, %v525
        %577 = vmatprep.subr.bf16.mxu0 %v530
        %578 = vmatpush1.bf16.msra.mxu0 %v529
        %579 = vmatprep.subr.bf16.mxu0 %v533
        %580 = vmatpush1.bf16.msra.mxu0 %v532
        %581 = vmatprep.subr.bf16.mxu0 %v536
        %582 = vmatpush1.bf16.msra.mxu0 %v535
        %583 = vmatprep.subr.bf16.mxu0 %v539
        %584 = vmatpush1.bf16.msra.mxu0 %v538
        %585 = vmatprep.subr.bf16.mxu0 %v542
        %586 = vmatpush1.bf16.msra.mxu0 %v541
        %587 = vmatprep.subr.bf16.mxu0 %v545
        %588 = vmatpush1.bf16.msra.mxu0 %v544
        %589 = vmatprep.subr.bf16.mxu0 %v548
        %590 = vmatpush1.bf16.msra.mxu0 %v547
        %591 = vmatprep.subr.bf16.mxu0 %v551
        %592 = vmatpush1.bf16.msra.mxu0 %v550
        %593 = vmatprep.subr.bf16.mxu0 0
        %594 = vmatpush1.bf16.msra.mxu0 0
        %595 = vmatprep.subr.bf16.mxu0 0
        %596 = vmatpush1.bf16.msra.mxu0 0
        %597 = vmatprep.subr.bf16.mxu0 0
        %598 = vmatpush1.bf16.msra.mxu0 0
        %599 = vmatprep.subr.bf16.mxu0 0
        %600 = vmatpush1.bf16.msra.mxu0 0
        %601 = vmatprep.subr.bf16.mxu0 0
        %602 = vmatpush1.bf16.msra.mxu0 0
        %603 = vmatprep.subr.bf16.mxu0 0
        %604 = vmatpush1.bf16.msra.mxu0 0
        %605 = vmatprep.subr.bf16.mxu0 0
        %606 = vmatpush1.bf16.msra.mxu0 0
        %607 = vmatprep.subr.bf16.mxu0 0
        %608 = vmatpush1.bf16.msra.mxu0 0
        %609 = vmatprep.mubr.bf16.mxu0 0
        %610 = vmatmul.mubr.bf16.gmra.mrb[0].mxu0 %v432
        %v611 = vpop.f32.mrb[0].mxu0
        %v612 = vadd.f32 %v437, %v611
        %v613 = vpop.f32.mrb[0].mxu0
        %v614 = vadd.f32 %v441, %v613
        %v615 = vpop.f32.mrb[0].mxu0
        %v616 = vadd.f32 %v437, %v615
        %v617 = vpop.f32.mrb[0].mxu0
        %v618 = vadd.f32 %v441, %v617
        %619 = vdwg.mxu0
        %620 = vmatprep.subr.bf16.mxu0 0
        %621 = vmatpush1.bf16.msra.mxu0 %v531
        %622 = vmatprep.subr.bf16.mxu0 0
        %623 = vmatpush1.bf16.msra.mxu0 %v534
        %624 = vmatprep.subr.bf16.mxu0 0
        %625 = vmatpush1.bf16.msra.mxu0 %v537
        %626 = vmatprep.subr.bf16.mxu0 0
        %627 = vmatpush1.bf16.msra.mxu0 %v540
        %628 = vmatprep.subr.bf16.mxu0 0
        %629 = vmatpush1.bf16.msra.mxu0 %v543
        %630 = vmatprep.subr.bf16.mxu0 0
        %631 = vmatpush1.bf16.msra.mxu0 %v546
        %632 = vmatprep.subr.bf16.mxu0 0
        %633 = vmatpush1.bf16.msra.mxu0 %v549
        %634 = vmatprep.subr.bf16.mxu0 0
        %635 = vmatpush1.bf16.msra.mxu0 %v552
        %636 = vmatprep.subr.bf16.mxu0 0
        %637 = vmatpush1.bf16.msra.mxu0 0
        %638 = vmatprep.subr.bf16.mxu0 0
        %639 = vmatpush1.bf16.msra.mxu0 0
        %640 = vmatprep.subr.bf16.mxu0 0
        %641 = vmatpush1.bf16.msra.mxu0 0
        %642 = vmatprep.subr.bf16.mxu0 0
        %643 = vmatpush1.bf16.msra.mxu0 0
        %644 = vmatprep.subr.bf16.mxu0 0
        %645 = vmatpush1.bf16.msra.mxu0 0
        %646 = vmatprep.subr.bf16.mxu0 0
        %647 = vmatpush1.bf16.msra.mxu0 0
        %648 = vmatprep.subr.bf16.mxu0 0
        %649 = vmatpush1.bf16.msra.mxu0 0
        %650 = vmatprep.subr.bf16.mxu0 0
        %651 = vmatpush1.bf16.msra.mxu0 0
        %652 = vmatprep.mubr.bf16.mxu0 0
        %653 = vmatmul.mubr.bf16.gmra.mrb[0].mxu0 %v432
        %v654 = vpop.f32.mrb[0].mxu0
        %v655 = vadd.f32 %v445, %v654
        %v656 = vpop.f32.mrb[0].mxu0
        %v657 = vpop.f32.mrb[0].mxu0
        %v658 = vadd.f32 %v445, %v657
        %v659 = vpop.f32.mrb[0].mxu0
        %660 = vdwg.mxu0
        %v661 = vpack.c.bf16 %v616, %v612
        %v662 = vpack.c.bf16 %v618, %v614
        %v663 = vpack.c.bf16 %v658, %v655
        %vm664 = vcmask 261120
        %v666 = vsel %vm664, %v661, 0
        %v669 = vsel %vm664, %v662, 0
        %671 = vmatprep.subr.bf16.mxu0 0
        %672 = vmatpush1.bf16.xpose.msra.mxu0 %v669
        %673 = vmatprep.subr.bf16.mxu0 0
        %674 = vmatpush1.bf16.xpose.msra.mxu0 0
        %675 = vmatprep.subr.bf16.mxu0 0
        %676 = vmatpush1.bf16.xpose.msra.mxu0 0
        %677 = vmatprep.subr.bf16.mxu0 0
        %678 = vmatpush1.bf16.xpose.msra.mxu0 0
        %679 = vmatprep.subr.bf16.mxu0 0
        %680 = vmatpush1.bf16.xpose.msra.mxu0 0
        %681 = vmatprep.subr.bf16.mxu0 0
        %682 = vmatpush1.bf16.xpose.msra.mxu0 0
        %683 = vmatprep.subr.bf16.mxu0 0
        %684 = vmatpush1.bf16.xpose.msra.mxu0 0
        %685 = vmatprep.subr.bf16.mxu0 0
        %686 = vmatpush1.bf16.xpose.msra.mxu0 0
        %687 = vmatprep.subr.bf16.mxu0 0
        %688 = vmatpush1.bf16.xpose.msra.mxu0 0
        %689 = vmatprep.subr.bf16.mxu0 0
        %690 = vmatpush1.bf16.xpose.msra.mxu0 0
        %691 = vmatprep.subr.bf16.mxu0 0
        %692 = vmatpush1.bf16.xpose.msra.mxu0 0
        %693 = vmatprep.subr.bf16.mxu0 0
        %694 = vmatpush1.bf16.xpose.msra.mxu0 0
        %695 = vmatprep.subr.bf16.mxu0 0
        %696 = vmatpush1.bf16.xpose.msra.mxu0 0
        %697 = vmatprep.subr.bf16.mxu0 0
        %698 = vmatpush1.bf16.xpose.msra.mxu0 0
        %699 = vmatprep.subr.bf16.mxu0 0
        %700 = vmatpush1.bf16.xpose.msra.mxu0 0
        %701 = vmatprep.subr.bf16.mxu0 0
        %702 = vmatpush1.bf16.xpose.msra.mxu0 0
        %703 = vmatprep.mubr.bf16.mxu0 0
        %704 = vmatmul.mubr.bf16.gmra.mrb[0].mxu0 %v666
        %v705 = vpop.f32.mrb[0].mxu0
        %v706 = vadd.f32 %v276, %v705
        %v707 = vpop.f32.mrb[0].mxu0
        %v708 = vpop.f32.mrb[0].mxu0
        %v709 = vadd.f32 %v276, %v708
        %v710 = vpop.f32.mrb[0].mxu0
        %711 = vdwg.mxu0
        %vm712 = vcmask 130048
        %v713 = vsel %vm712, %v706, -inf
        %714 = vmax.xlane.f32.xlu0 %v713
        %v715 = vpop.xlane.xlu0 %714
        %v716 = vsel %vm712, %v709, -inf
        %717 = vmax.xlane.f32.xlu0 %v716
        %v718 = vpop.xlane.xlu0 %717
        %v719 = vsub.f32 %v706, %v715
        %v720 = vsub.f32 %v709, %v718
        %v721 = vmul.f32 %v719, 1.442695
        %v722 = vpow.pop %v721
        %v723 = vmul.f32 %v720, 1.442695
        %v724 = vpow.pop %v723
        %v725 = vsel %vm712, %v722, 0.0
        %726 = vadd.xlane.f32.xlu0 %v725
        %v727 = vpop.xlane.xlu0 %726
        %v728 = vsel %vm712, %v724, 0.0
        %729 = vadd.xlane.f32.xlu0 %v728
        %v730 = vpop.xlane.xlu0 %729
        %v731 = vrcp.pop %v727
        %v732 = vrcp.pop %v730
        %v733 = vmul.f32 %v722, %v731
        %v734 = vmul.f32 %v724, %v732
        %v735 = vpack.c.bf16 %v734, %v733
        %v737 = vsel %vm712, %v735, 0
        %739 = vmatprep.subr.bf16.mxu0 0
        %740 = vmatpush1.bf16.msra.mxu0 %v663
        %741 = vmatprep.subr.bf16.mxu0 0
        %742 = vmatpush1.bf16.msra.mxu0 0
        %743 = vmatprep.subr.bf16.mxu0 0
        %744 = vmatpush1.bf16.msra.mxu0 0
        %745 = vmatprep.subr.bf16.mxu0 0
        %746 = vmatpush1.bf16.msra.mxu0 0
        %747 = vmatprep.subr.bf16.mxu0 0
        %748 = vmatpush1.bf16.msra.mxu0 0
        %749 = vmatprep.subr.bf16.mxu0 0
        %750 = vmatpush1.bf16.msra.mxu0 0
        %751 = vmatprep.subr.bf16.mxu0 0
        %752 = vmatpush1.bf16.msra.mxu0 0
        %753 = vmatprep.subr.bf16.mxu0 0
        %754 = vmatpush1.bf16.msra.mxu0 0
        %755 = vmatprep.subr.bf16.mxu0 0
        %756 = vmatpush1.bf16.msra.mxu0 0
        %757 = vmatprep.subr.bf16.mxu0 0
        %758 = vmatpush1.bf16.msra.mxu0 0
        %759 = vmatprep.subr.bf16.mxu0 0
        %760 = vmatpush1.bf16.msra.mxu0 0
        %761 = vmatprep.subr.bf16.mxu0 0
        %762 = vmatpush1.bf16.msra.mxu0 0
        %763 = vmatprep.subr.bf16.mxu0 0
        %764 = vmatpush1.bf16.msra.mxu0 0
        %765 = vmatprep.subr.bf16.mxu0 0
        %766 = vmatpush1.bf16.msra.mxu0 0
        %767 = vmatprep.subr.bf16.mxu0 0
        %768 = vmatpush1.bf16.msra.mxu0 0
        %769 = vmatprep.subr.bf16.mxu0 0
        %770 = vmatpush1.bf16.msra.mxu0 0
        %771 = vmatprep.mubr.bf16.mxu0 0
        %772 = vmatmul.mubr.bf16.gmra.mrb[0].mxu0 %v737
        %v773 = vpop.f32.mrb[0].mxu0
        %v774 = vadd.f32 0.0, %v773
        %v775 = vpop.f32.mrb[0].mxu0
        %v776 = vpop.f32.mrb[0].mxu0
        %v777 = vadd.f32 0.0, %v776
        %v778 = vpop.f32.mrb[0].mxu0
        %779 = vdwg.mxu0
        %781 = vrot.lane.b32.xlu0 %v661, 96
        %v782 = vpop.permute.xlu0 %781
        %784 = vrot.lane.b32.xlu0 %v662, 96
        %v785 = vpop.permute.xlu0 %784
        %v787 = vsel %vm664, %v782, 0
        %v790 = vsel %vm664, %v785, 0
        %792 = vmatprep.subr.bf16.mxu0 0
        %793 = vmatpush1.bf16.xpose.msra.mxu0 %v790
        %794 = vmatprep.subr.bf16.mxu0 0
        %795 = vmatpush1.bf16.xpose.msra.mxu0 0
        %796 = vmatprep.subr.bf16.mxu0 0
        %797 = vmatpush1.bf16.xpose.msra.mxu0 0
        %798 = vmatprep.subr.bf16.mxu0 0
        %799 = vmatpush1.bf16.xpose.msra.mxu0 0
        %800 = vmatprep.subr.bf16.mxu0 0
        %801 = vmatpush1.bf16.xpose.msra.mxu0 0
        %802 = vmatprep.subr.bf16.mxu0 0
        %803 = vmatpush1.bf16.xpose.msra.mxu0 0
        %804 = vmatprep.subr.bf16.mxu0 0
        %805 = vmatpush1.bf16.xpose.msra.mxu0 0
        %806 = vmatprep.subr.bf16.mxu0 0
        %807 = vmatpush1.bf16.xpose.msra.mxu0 0
        %808 = vmatprep.subr.bf16.mxu0 0
        %809 = vmatpush1.bf16.xpose.msra.mxu0 0
        %810 = vmatprep.subr.bf16.mxu0 0
        %811 = vmatpush1.bf16.xpose.msra.mxu0 0
        %812 = vmatprep.subr.bf16.mxu0 0
        %813 = vmatpush1.bf16.xpose.msra.mxu0 0
        %814 = vmatprep.subr.bf16.mxu0 0
        %815 = vmatpush1.bf16.xpose.msra.mxu0 0
        %816 = vmatprep.subr.bf16.mxu0 0
        %817 = vmatpush1.bf16.xpose.msra.mxu0 0
        %818 = vmatprep.subr.bf16.mxu0 0
        %819 = vmatpush1.bf16.xpose.msra.mxu0 0
        %820 = vmatprep.subr.bf16.mxu0 0
        %821 = vmatpush1.bf16.xpose.msra.mxu0 0
        %822 = vmatprep.subr.bf16.mxu0 0
        %823 = vmatpush1.bf16.xpose.msra.mxu0 0
        %824 = vmatprep.mubr.bf16.mxu0 0
        %825 = vmatmul.mubr.bf16.gmra.mrb[0].mxu0 %v787
        %v826 = vpop.f32.mrb[0].mxu0
        %v827 = vadd.f32 %v276, %v826
        %v828 = vpop.f32.mrb[0].mxu0
        %v829 = vpop.f32.mrb[0].mxu0
        %v830 = vadd.f32 %v276, %v829
        %v831 = vpop.f32.mrb[0].mxu0
        %832 = vdwg.mxu0
        %v833 = vsel %vm712, %v827, -inf
        %834 = vmax.xlane.f32.xlu0 %v833
        %v835 = vpop.xlane.xlu0 %834
        %v836 = vsel %vm712, %v830, -inf
        %837 = vmax.xlane.f32.xlu0 %v836
        %v838 = vpop.xlane.xlu0 %837
        %v839 = vsub.f32 %v827, %v835
        %v840 = vsub.f32 %v830, %v838
        %v841 = vmul.f32 %v839, 1.442695
        %v842 = vpow.pop %v841
        %v843 = vmul.f32 %v840, 1.442695
        %v844 = vpow.pop %v843
        %v845 = vsel %vm712, %v842, 0.0
        %846 = vadd.xlane.f32.xlu0 %v845
        %v847 = vpop.xlane.xlu0 %846
        %v848 = vsel %vm712, %v844, 0.0
        %849 = vadd.xlane.f32.xlu0 %v848
        %v850 = vpop.xlane.xlu0 %849
        %v851 = vrcp.pop %v847
        %v852 = vrcp.pop %v850
        %v853 = vmul.f32 %v842, %v851
        %v854 = vmul.f32 %v844, %v852
        %v855 = vpack.c.bf16 %v854, %v853
        %857 = vrot.lane.b32.xlu0 %v663, 96
        %v858 = vpop.permute.xlu0 %857
        %v861 = vsel %vm712, %v855, 0
        %863 = vmatprep.subr.bf16.mxu0 0
        %864 = vmatpush1.bf16.msra.mxu0 %v858
        %865 = vmatprep.subr.bf16.mxu0 0
        %866 = vmatpush1.bf16.msra.mxu0 0
        %867 = vmatprep.subr.bf16.mxu0 0
        %868 = vmatpush1.bf16.msra.mxu0 0
        %869 = vmatprep.subr.bf16.mxu0 0
        %870 = vmatpush1.bf16.msra.mxu0 0
        %871 = vmatprep.subr.bf16.mxu0 0
        %872 = vmatpush1.bf16.msra.mxu0 0
        %873 = vmatprep.subr.bf16.mxu0 0
        %874 = vmatpush1.bf16.msra.mxu0 0
        %875 = vmatprep.subr.bf16.mxu0 0
        %876 = vmatpush1.bf16.msra.mxu0 0
        %877 = vmatprep.subr.bf16.mxu0 0
        %878 = vmatpush1.bf16.msra.mxu0 0
        %879 = vmatprep.subr.bf16.mxu0 0
        %880 = vmatpush1.bf16.msra.mxu0 0
        %881 = vmatprep.subr.bf16.mxu0 0
        %882 = vmatpush1.bf16.msra.mxu0 0
        %883 = vmatprep.subr.bf16.mxu0 0
        %884 = vmatpush1.bf16.msra.mxu0 0
        %885 = vmatprep.subr.bf16.mxu0 0
        %886 = vmatpush1.bf16.msra.mxu0 0
        %887 = vmatprep.subr.bf16.mxu0 0
        %888 = vmatpush1.bf16.msra.mxu0 0
        %889 = vmatprep.subr.bf16.mxu0 0
        %890 = vmatpush1.bf16.msra.mxu0 0
        %891 = vmatprep.subr.bf16.mxu0 0
        %892 = vmatpush1.bf16.msra.mxu0 0
        %893 = vmatprep.subr.bf16.mxu0 0
        %894 = vmatpush1.bf16.msra.mxu0 0
        %895 = vmatprep.mubr.bf16.mxu0 0
        %896 = vmatmul.mubr.bf16.gmra.mrb[0].mxu0 %v861
        %v897 = vpop.f32.mrb[0].mxu0
        %v898 = vadd.f32 0.0, %v897
        %v899 = vpop.f32.mrb[0].mxu0
        %v900 = vpop.f32.mrb[0].mxu0
        %v901 = vadd.f32 0.0, %v900
        %v902 = vpop.f32.mrb[0].mxu0
        %903 = vdwg.mxu0
        %904 = vrot.lane.b32.xlu0 %v661, 64
        %v905 = vpop.permute.xlu0 %904
        %906 = vrot.lane.b32.xlu0 %v662, 64
        %v907 = vpop.permute.xlu0 %906
        %v909 = vsel %vm664, %v905, 0
        %v912 = vsel %vm664, %v907, 0
        %914 = vmatprep.subr.bf16.mxu0 0
        %915 = vmatpush1.bf16.xpose.msra.mxu0 %v912
        %916 = vmatprep.subr.bf16.mxu0 0
        %917 = vmatpush1.bf16.xpose.msra.mxu0 0
        %918 = vmatprep.subr.bf16.mxu0 0
        %919 = vmatpush1.bf16.xpose.msra.mxu0 0
        %920 = vmatprep.subr.bf16.mxu0 0
        %921 = vmatpush1.bf16.xpose.msra.mxu0 0
        %922 = vmatprep.subr.bf16.mxu0 0
        %923 = vmatpush1.bf16.xpose.msra.mxu0 0
        %924 = vmatprep.subr.bf16.mxu0 0
        %925 = vmatpush1.bf16.xpose.msra.mxu0 0
        %926 = vmatprep.subr.bf16.mxu0 0
        %927 = vmatpush1.bf16.xpose.msra.mxu0 0
        %928 = vmatprep.subr.bf16.mxu0 0
        %929 = vmatpush1.bf16.xpose.msra.mxu0 0
        %930 = vmatprep.subr.bf16.mxu0 0
        %931 = vmatpush1.bf16.xpose.msra.mxu0 0
        %932 = vmatprep.subr.bf16.mxu0 0
        %933 = vmatpush1.bf16.xpose.msra.mxu0 0
        %934 = vmatprep.subr.bf16.mxu0 0
        %935 = vmatpush1.bf16.xpose.msra.mxu0 0
        %936 = vmatprep.subr.bf16.mxu0 0
        %937 = vmatpush1.bf16.xpose.msra.mxu0 0
        %938 = vmatprep.subr.bf16.mxu0 0
        %939 = vmatpush1.bf16.xpose.msra.mxu0 0
        %940 = vmatprep.subr.bf16.mxu0 0
        %941 = vmatpush1.bf16.xpose.msra.mxu0 0
        %942 = vmatprep.subr.bf16.mxu0 0
        %943 = vmatpush1.bf16.xpose.msra.mxu0 0
        %944 = vmatprep.subr.bf16.mxu0 0
        %945 = vmatpush1.bf16.xpose.msra.mxu0 0
        %946 = vmatprep.mubr.bf16.mxu0 0
        %947 = vmatmul.mubr.bf16.gmra.mrb[0].mxu0 %v909
        %v948 = vpop.f32.mrb[0].mxu0
        %v949 = vadd.f32 %v276, %v948
        %v950 = vpop.f32.mrb[0].mxu0
        %v951 = vpop.f32.mrb[0].mxu0
        %v952 = vadd.f32 %v276, %v951
        %v953 = vpop.f32.mrb[0].mxu0
        %954 = vdwg.mxu0
        %v955 = vsel %vm712, %v949, -inf
        %956 = vmax.xlane.f32.xlu0 %v955
        %v957 = vpop.xlane.xlu0 %956
        %v958 = vsel %vm712, %v952, -inf
        %959 = vmax.xlane.f32.xlu0 %v958
        %v960 = vpop.xlane.xlu0 %959
        %v961 = vsub.f32 %v949, %v957
        %v962 = vsub.f32 %v952, %v960
        %v963 = vmul.f32 %v961, 1.442695
        %v964 = vpow.pop %v963
        %v965 = vmul.f32 %v962, 1.442695
        %v966 = vpow.pop %v965
        %v967 = vsel %vm712, %v964, 0.0
        %968 = vadd.xlane.f32.xlu0 %v967
        %v969 = vpop.xlane.xlu0 %968
        %v970 = vsel %vm712, %v966, 0.0
        %971 = vadd.xlane.f32.xlu0 %v970
        %v972 = vpop.xlane.xlu0 %971
        %v973 = vrcp.pop %v969
        %v974 = vrcp.pop %v972
        %v975 = vmul.f32 %v964, %v973
        %v976 = vmul.f32 %v966, %v974
        %v977 = vpack.c.bf16 %v976, %v975
        %978 = vrot.lane.b32.xlu0 %v663, 64
        %v979 = vpop.permute.xlu0 %978
        %v982 = vsel %vm712, %v977, 0
        %984 = vmatprep.subr.bf16.mxu0 0
        %985 = vmatpush1.bf16.msra.mxu0 %v979
        %986 = vmatprep.subr.bf16.mxu0 0
        %987 = vmatpush1.bf16.msra.mxu0 0
        %988 = vmatprep.subr.bf16.mxu0 0
        %989 = vmatpush1.bf16.msra.mxu0 0
        %990 = vmatprep.subr.bf16.mxu0 0
        %991 = vmatpush1.bf16.msra.mxu0 0
        %992 = vmatprep.subr.bf16.mxu0 0
        %993 = vmatpush1.bf16.msra.mxu0 0
        %994 = vmatprep.subr.bf16.mxu0 0
        %995 = vmatpush1.bf16.msra.mxu0 0
        %996 = vmatprep.subr.bf16.mxu0 0
        %997 = vmatpush1.bf16.msra.mxu0 0
        %998 = vmatprep.subr.bf16.mxu0 0
        %999 = vmatpush1.bf16.msra.mxu0 0
        %1000 = vmatprep.subr.bf16.mxu0 0
        %1001 = vmatpush1.bf16.msra.mxu0 0
        %1002 = vmatprep.subr.bf16.mxu0 0
        %1003 = vmatpush1.bf16.msra.mxu0 0
        %1004 = vmatprep.subr.bf16.mxu0 0
        %1005 = vmatpush1.bf16.msra.mxu0 0
        %1006 = vmatprep.subr.bf16.mxu0 0
        %1007 = vmatpush1.bf16.msra.mxu0 0
        %1008 = vmatprep.subr.bf16.mxu0 0
        %1009 = vmatpush1.bf16.msra.mxu0 0
        %1010 = vmatprep.subr.bf16.mxu0 0
        %1011 = vmatpush1.bf16.msra.mxu0 0
        %1012 = vmatprep.subr.bf16.mxu0 0
        %1013 = vmatpush1.bf16.msra.mxu0 0
        %1014 = vmatprep.subr.bf16.mxu0 0
        %1015 = vmatpush1.bf16.msra.mxu0 0
        %1016 = vmatprep.mubr.bf16.mxu0 0
        %1017 = vmatmul.mubr.bf16.gmra.mrb[0].mxu0 %v982
        %v1018 = vpop.f32.mrb[0].mxu0
        %v1019 = vadd.f32 0.0, %v1018
        %v1020 = vpop.f32.mrb[0].mxu0
        %v1021 = vpop.f32.mrb[0].mxu0
        %v1022 = vadd.f32 0.0, %v1021
        %v1023 = vpop.f32.mrb[0].mxu0
        %1024 = vdwg.mxu0
        %1025 = vrot.lane.b32.xlu0 %v661, 32
        %v1026 = vpop.permute.xlu0 %1025
        %1027 = vrot.lane.b32.xlu0 %v662, 32
        %v1028 = vpop.permute.xlu0 %1027
        %v1030 = vsel %vm664, %v1026, 0
        %v1033 = vsel %vm664, %v1028, 0
        %1035 = vmatprep.subr.bf16.mxu0 0
        %1036 = vmatpush1.bf16.xpose.msra.mxu0 %v1033
        %1037 = vmatprep.subr.bf16.mxu0 0
        %1038 = vmatpush1.bf16.xpose.msra.mxu0 0
        %1039 = vmatprep.subr.bf16.mxu0 0
        %1040 = vmatpush1.bf16.xpose.msra.mxu0 0
        %1041 = vmatprep.subr.bf16.mxu0 0
        %1042 = vmatpush1.bf16.xpose.msra.mxu0 0
        %1043 = vmatprep.subr.bf16.mxu0 0
        %1044 = vmatpush1.bf16.xpose.msra.mxu0 0
        %1045 = vmatprep.subr.bf16.mxu0 0
        %1046 = vmatpush1.bf16.xpose.msra.mxu0 0
        %1047 = vmatprep.subr.bf16.mxu0 0
        %1048 = vmatpush1.bf16.xpose.msra.mxu0 0
        %1049 = vmatprep.subr.bf16.mxu0 0
        %1050 = vmatpush1.bf16.xpose.msra.mxu0 0
        %1051 = vmatprep.subr.bf16.mxu0 0
        %1052 = vmatpush1.bf16.xpose.msra.mxu0 0
        %1053 = vmatprep.subr.bf16.mxu0 0
        %1054 = vmatpush1.bf16.xpose.msra.mxu0 0
        %1055 = vmatprep.subr.bf16.mxu0 0
        %1056 = vmatpush1.bf16.xpose.msra.mxu0 0
        %1057 = vmatprep.subr.bf16.mxu0 0
        %1058 = vmatpush1.bf16.xpose.msra.mxu0 0
        %1059 = vmatprep.subr.bf16.mxu0 0
        %1060 = vmatpush1.bf16.xpose.msra.mxu0 0
        %1061 = vmatprep.subr.bf16.mxu0 0
        %1062 = vmatpush1.bf16.xpose.msra.mxu0 0
        %1063 = vmatprep.subr.bf16.mxu0 0
        %1064 = vmatpush1.bf16.xpose.msra.mxu0 0
        %1065 = vmatprep.subr.bf16.mxu0 0
        %1066 = vmatpush1.bf16.xpose.msra.mxu0 0
        %1067 = vmatprep.mubr.bf16.mxu0 0
        %1068 = vmatmul.mubr.bf16.gmra.mrb[0].mxu0 %v1030
        %v1069 = vpop.f32.mrb[0].mxu0
        %v1070 = vadd.f32 %v276, %v1069
        %v1071 = vpop.f32.mrb[0].mxu0
        %v1072 = vpop.f32.mrb[0].mxu0
        %v1073 = vadd.f32 %v276, %v1072
        %v1074 = vpop.f32.mrb[0].mxu0
        %1075 = vdwg.mxu0
        %v1076 = vsel %vm712, %v1070, -inf
        %1077 = vmax.xlane.f32.xlu0 %v1076
        %v1078 = vpop.xlane.xlu0 %1077
        %v1079 = vsel %vm712, %v1073, -inf
        %1080 = vmax.xlane.f32.xlu0 %v1079
        %v1081 = vpop.xlane.xlu0 %1080
        %v1082 = vsub.f32 %v1070, %v1078
        %v1083 = vsub.f32 %v1073, %v1081
        %v1084 = vmul.f32 %v1082, 1.442695
        %v1085 = vpow.pop %v1084
        %v1086 = vmul.f32 %v1083, 1.442695
        %v1087 = vpow.pop %v1086
        %v1088 = vsel %vm712, %v1085, 0.0
        %1089 = vadd.xlane.f32.xlu0 %v1088
        %v1090 = vpop.xlane.xlu0 %1089
        %v1091 = vsel %vm712, %v1087, 0.0
        %1092 = vadd.xlane.f32.xlu0 %v1091
        %v1093 = vpop.xlane.xlu0 %1092
        %v1094 = vrcp.pop %v1090
        %v1095 = vrcp.pop %v1093
        %v1096 = vmul.f32 %v1085, %v1094
        %v1097 = vmul.f32 %v1087, %v1095
        %v1098 = vpack.c.bf16 %v1097, %v1096
        %1099 = vrot.lane.b32.xlu0 %v663, 32
        %v1100 = vpop.permute.xlu0 %1099
        %v1103 = vsel %vm712, %v1098, 0
        %1105 = vmatprep.subr.bf16.mxu0 0
        %1106 = vmatpush1.bf16.msra.mxu0 %v1100
        %1107 = vmatprep.subr.bf16.mxu0 0
        %1108 = vmatpush1.bf16.msra.mxu0 0
        %1109 = vmatprep.subr.bf16.mxu0 0
        %1110 = vmatpush1.bf16.msra.mxu0 0
        %1111 = vmatprep.subr.bf16.mxu0 0
        %1112 = vmatpush1.bf16.msra.mxu0 0
        %1113 = vmatprep.subr.bf16.mxu0 0
        %1114 = vmatpush1.bf16.msra.mxu0 0
        %1115 = vmatprep.subr.bf16.mxu0 0
        %1116 = vmatpush1.bf16.msra.mxu0 0
        %1117 = vmatprep.subr.bf16.mxu0 0
        %1118 = vmatpush1.bf16.msra.mxu0 0
        %1119 = vmatprep.subr.bf16.mxu0 0
        %1120 = vmatpush1.bf16.msra.mxu0 0
        %1121 = vmatprep.subr.bf16.mxu0 0
        %1122 = vmatpush1.bf16.msra.mxu0 0
        %1123 = vmatprep.subr.bf16.mxu0 0
        %1124 = vmatpush1.bf16.msra.mxu0 0
        %1125 = vmatprep.subr.bf16.mxu0 0
        %1126 = vmatpush1.bf16.msra.mxu0 0
        %1127 = vmatprep.subr.bf16.mxu0 0
        %1128 = vmatpush1.bf16.msra.mxu0 0
        %1129 = vmatprep.subr.bf16.mxu0 0
        %1130 = vmatpush1.bf16.msra.mxu0 0
        %1131 = vmatprep.subr.bf16.mxu0 0
        %1132 = vmatpush1.bf16.msra.mxu0 0
        %1133 = vmatprep.subr.bf16.mxu0 0
        %1134 = vmatpush1.bf16.msra.mxu0 0
        %1135 = vmatprep.subr.bf16.mxu0 0
        %1136 = vmatpush1.bf16.msra.mxu0 0
        %1137 = vmatprep.mubr.bf16.mxu0 0
        %1138 = vmatmul.mubr.bf16.gmra.mrb[0].mxu0 %v1103
        %v1139 = vpop.f32.mrb[0].mxu0
        %v1140 = vadd.f32 0.0, %v1139
        %v1141 = vpop.f32.mrb[0].mxu0
        %v1142 = vpop.f32.mrb[0].mxu0
        %v1143 = vadd.f32 0.0, %v1142
        %v1144 = vpop.f32.mrb[0].mxu0
        %1145 = vdwg.mxu0
        %1148 = vrot.lane.b32.xlu0 %v898, 32
        %v1149 = vpop.permute.xlu0 %1148
        %1150 = vrot.lane.b32.xlu0 %v901, 32
        %v1151 = vpop.permute.xlu0 %1150
        %1156 = vrot.lane.b32.xlu0 %v1019, 64
        %v1157 = vpop.permute.xlu0 %1156
        %1158 = vrot.lane.b32.xlu0 %v1022, 64
        %v1159 = vpop.permute.xlu0 %1158
        %1164 = vrot.lane.b32.xlu0 %v1140, 96
        %v1165 = vpop.permute.xlu0 %1164
        %1166 = vrot.lane.b32.xlu0 %v1143, 96
        %v1167 = vpop.permute.xlu0 %1166
        %v1170 = vsel %vm664, %v774, %v1149
        %v1171 = vsel %vm664, %v777, %v1151
        %vm1172 = vcmask 523264
        %v1173 = vsel %vm1172, %v1170, %v1157
        %v1174 = vsel %vm1172, %v1171, %v1159
        %vm1175 = vcmask 785408
        %v1176 = vsel %vm1175, %v1173, %v1165
        %v1177 = vsel %vm1175, %v1174, %v1167
        %v1178 = vpack.c.bf16 %v1177, %v1176
        %v1195 = vunpack.c.l.b16 %v310
        %v1196 = vunpack.c.l.b16 %v311
        %v1197 = vunpack.c.l.b16 %v312
        %v1198 = vunpack.c.l.b16 %v313
        %v1199 = vunpack.c.l.b16 %v314
        %v1200 = vunpack.c.l.b16 %v315
        %v1201 = vunpack.c.l.b16 %v316
        %v1202 = vunpack.c.l.b16 %v317
        %v1203 = vunpack.c.l.b16 %v318
        %v1204 = vunpack.c.l.b16 %v319
        %v1205 = vunpack.c.l.b16 %v320
        %v1206 = vunpack.c.l.b16 %v321
        %v1207 = vunpack.c.l.b16 %v322
        %v1208 = vunpack.c.l.b16 %v323
        %v1209 = vunpack.c.l.b16 %v324
        %v1210 = vunpack.c.l.b16 %v325
        %v1211 = vpack.c.b16 %v1196, %v1195
        %v1212 = vpack.c.b16 %v1198, %v1197
        %v1213 = vpack.c.b16 %v1200, %v1199
        %v1214 = vpack.c.b16 %v1202, %v1201
        %v1215 = vpack.c.b16 %v1204, %v1203
        %v1216 = vpack.c.b16 %v1206, %v1205
        %v1217 = vpack.c.b16 %v1208, %v1207
        %v1218 = vpack.c.b16 %v1210, %v1209
        %1227 = vmatprep.subr.bf16.mxu0 0
        %1228 = vmatpush1.bf16.msra.mxu0 %v1211
        %1229 = vmatprep.subr.bf16.mxu0 0
        %1230 = vmatpush1.bf16.msra.mxu0 %v1212
        %1231 = vmatprep.subr.bf16.mxu0 0
        %1232 = vmatpush1.bf16.msra.mxu0 %v1213
        %1233 = vmatprep.subr.bf16.mxu0 0
        %1234 = vmatpush1.bf16.msra.mxu0 %v1214
        %1235 = vmatprep.subr.bf16.mxu0 0
        %1236 = vmatpush1.bf16.msra.mxu0 %v1215
        %1237 = vmatprep.subr.bf16.mxu0 0
        %1238 = vmatpush1.bf16.msra.mxu0 %v1216
        %1239 = vmatprep.subr.bf16.mxu0 0
        %1240 = vmatpush1.bf16.msra.mxu0 %v1217
        %1241 = vmatprep.subr.bf16.mxu0 0
        %1242 = vmatpush1.bf16.msra.mxu0 %v1218
        %1243 = vmatprep.subr.bf16.mxu0 0
        %1244 = vmatpush1.bf16.msra.mxu0 0
        %1245 = vmatprep.subr.bf16.mxu0 0
        %1246 = vmatpush1.bf16.msra.mxu0 0
        %1247 = vmatprep.subr.bf16.mxu0 0
        %1248 = vmatpush1.bf16.msra.mxu0 0
        %1249 = vmatprep.subr.bf16.mxu0 0
        %1250 = vmatpush1.bf16.msra.mxu0 0
        %1251 = vmatprep.subr.bf16.mxu0 0
        %1252 = vmatpush1.bf16.msra.mxu0 0
        %1253 = vmatprep.subr.bf16.mxu0 0
        %1254 = vmatpush1.bf16.msra.mxu0 0
        %1255 = vmatprep.subr.bf16.mxu0 0
        %1256 = vmatpush1.bf16.msra.mxu0 0
        %1257 = vmatprep.subr.bf16.mxu0 0
        %1258 = vmatpush1.bf16.msra.mxu0 0
        %1259 = vmatprep.mubr.bf16.mxu0 0
        %1260 = vmatmul.mubr.bf16.gmra.mrb[0].mxu0 %v1178
        %v1261 = vpop.f32.mrb[0].mxu0
        %v1262 = vadd.f32 %v424, %v1261
        %v1263 = vpop.f32.mrb[0].mxu0
        %v1264 = vpop.f32.mrb[0].mxu0
        %v1265 = vadd.f32 %v424, %v1264
        %v1266 = vpop.f32.mrb[0].mxu0
        %1267 = vdwg.mxu0
        %v1268 = vadd.f32 %v269, %v1262
        %v1269 = vadd.f32 %v270, %v1265
        %1270 = vadd.xlane.f32.xlu0 %v1268
        %v1271 = vpop.xlane.xlu0 %1270
        %1272 = vadd.xlane.f32.xlu0 %v1269
        %v1273 = vpop.xlane.xlu0 %1272
        %v1274 = vmul.f32 %v1271, %v248
        %v1275 = vmul.f32 %v1273, %v248
        %v1276 = vsub.f32 %v1268, %v1274
        %v1277 = vsub.f32 %v1269, %v1275
        %v1278 = vmul.f32 %v1276, %v1276
        %v1279 = vmul.f32 %v1277, %v1277
        %1280 = vadd.xlane.f32.xlu0 %v1278
        %v1281 = vpop.xlane.xlu0 %1280
        %1282 = vadd.xlane.f32.xlu0 %v1279
        %v1283 = vpop.xlane.xlu0 %1282
        %v1284 = vmul.f32 %v1281, %v248
        %v1285 = vmul.f32 %v1283, %v248
        %v1286 = vadd.f32 %v1284, 1e-12
        %v1287 = vadd.f32 %v1285, 1e-12
        %v1288 = vrsqrt.pop %v1286
        %v1289 = vrsqrt.pop %v1287
        %v1290 = vmul.f32 %v1276, %v1288
        %v1291 = vmul.f32 %v1277, %v1289
        %v1292 = vmul.f32 %v1290, %v425
        %v1293 = vmul.f32 %v1291, %v425
        %v1294 = vadd.f32 %v1292, %v426
        %v1295 = vadd.f32 %v1293, %v426
        %v1296 = vpack.c.bf16 %v1295, %v1294
        %v1298 = vlaneseq
        %v1299 = vshrl.u32 %v1298, 7
        %v1300 = vsub.s32 0, %v1299
        %v1301 = vrot.slane %v428, %v1300
        %v1302 = vlaneseq
        %v1303 = vshrl.u32 %v1302, 7
        %v1304 = vsub.s32 1, %v1303
        %v1305 = vrot.slane %v428, %v1304
        %v1306 = vlaneseq
        %v1307 = vshrl.u32 %v1306, 7
        %v1308 = vsub.s32 2, %v1307
        %v1309 = vrot.slane %v428, %v1308
        %v1310 = vlaneseq
        %v1311 = vshrl.u32 %v1310, 7
        %v1312 = vsub.s32 3, %v1311
        %v1313 = vrot.slane %v428, %v1312
        %v1350 = vunpack.c.l.b16 %v326
        %v1351 = vunpack.c.h.b16 %v326
        %v1352 = vunpack.c.l.b16 %v327
        %v1353 = vunpack.c.h.b16 %v327
        %v1354 = vunpack.c.l.b16 %v328
        %v1355 = vunpack.c.h.b16 %v328
        %v1356 = vunpack.c.l.b16 %v329
        %v1357 = vunpack.c.h.b16 %v329
        %v1358 = vunpack.c.l.b16 %v330
        %v1359 = vunpack.c.h.b16 %v330
        %v1360 = vunpack.c.l.b16 %v331
        %v1361 = vunpack.c.h.b16 %v331
        %v1362 = vunpack.c.l.b16 %v332
        %v1363 = vunpack.c.h.b16 %v332
        %v1364 = vunpack.c.l.b16 %v333
        %v1365 = vunpack.c.h.b16 %v333
        %v1366 = vunpack.c.l.b16 %v334
        %v1367 = vunpack.c.h.b16 %v334
        %v1368 = vunpack.c.l.b16 %v335
        %v1369 = vunpack.c.h.b16 %v335
        %v1370 = vunpack.c.l.b16 %v336
        %v1371 = vunpack.c.h.b16 %v336
        %v1372 = vunpack.c.l.b16 %v337
        %v1373 = vunpack.c.h.b16 %v337
        %v1374 = vunpack.c.l.b16 %v338
        %v1375 = vunpack.c.h.b16 %v338
        %v1376 = vunpack.c.l.b16 %v339
        %v1377 = vunpack.c.h.b16 %v339
        %v1378 = vunpack.c.l.b16 %v340
        %v1379 = vunpack.c.h.b16 %v340
        %v1380 = vunpack.c.l.b16 %v341
        %v1381 = vunpack.c.h.b16 %v341
        %v1382 = vunpack.c.l.b16 %v342
        %v1383 = vunpack.c.h.b16 %v342
        %v1384 = vunpack.c.l.b16 %v343
        %v1385 = vunpack.c.h.b16 %v343
        %v1386 = vunpack.c.l.b16 %v344
        %v1387 = vunpack.c.h.b16 %v344
        %v1388 = vunpack.c.l.b16 %v345
        %v1389 = vunpack.c.h.b16 %v345
        %v1390 = vunpack.c.l.b16 %v346
        %v1391 = vunpack.c.h.b16 %v346
        %v1392 = vunpack.c.l.b16 %v347
        %v1393 = vunpack.c.h.b16 %v347
        %v1394 = vunpack.c.l.b16 %v348
        %v1395 = vunpack.c.h.b16 %v348
        %v1396 = vunpack.c.l.b16 %v349
        %v1397 = vunpack.c.h.b16 %v349
        %v1398 = vunpack.c.l.b16 %v350
        %v1399 = vunpack.c.h.b16 %v350
        %v1400 = vunpack.c.l.b16 %v351
        %v1401 = vunpack.c.h.b16 %v351
        %v1402 = vunpack.c.l.b16 %v352
        %v1403 = vunpack.c.h.b16 %v352
        %v1404 = vunpack.c.l.b16 %v353
        %v1405 = vunpack.c.h.b16 %v353
        %v1406 = vunpack.c.l.b16 %v354
        %v1407 = vunpack.c.h.b16 %v354
        %v1408 = vunpack.c.l.b16 %v355
        %v1409 = vunpack.c.h.b16 %v355
        %v1410 = vunpack.c.l.b16 %v356
        %v1411 = vunpack.c.h.b16 %v356
        %v1412 = vunpack.c.l.b16 %v357
        %v1413 = vunpack.c.h.b16 %v357
        %v1414 = vpack.c.b16 %v1354, %v1350
        %v1415 = vpack.c.b16 %v1355, %v1351
        %v1416 = vpack.c.b16 %v1356, %v1352
        %v1417 = vpack.c.b16 %v1357, %v1353
        %v1418 = vpack.c.b16 %v1362, %v1358
        %v1419 = vpack.c.b16 %v1363, %v1359
        %v1420 = vpack.c.b16 %v1364, %v1360
        %v1421 = vpack.c.b16 %v1365, %v1361
        %v1422 = vpack.c.b16 %v1370, %v1366
        %v1423 = vpack.c.b16 %v1371, %v1367
        %v1424 = vpack.c.b16 %v1372, %v1368
        %v1425 = vpack.c.b16 %v1373, %v1369
        %v1426 = vpack.c.b16 %v1378, %v1374
        %v1427 = vpack.c.b16 %v1379, %v1375
        %v1428 = vpack.c.b16 %v1380, %v1376
        %v1429 = vpack.c.b16 %v1381, %v1377
        %v1430 = vpack.c.b16 %v1386, %v1382
        %v1431 = vpack.c.b16 %v1387, %v1383
        %v1432 = vpack.c.b16 %v1388, %v1384
        %v1433 = vpack.c.b16 %v1389, %v1385
        %v1434 = vpack.c.b16 %v1394, %v1390
        %v1435 = vpack.c.b16 %v1395, %v1391
        %v1436 = vpack.c.b16 %v1396, %v1392
        %v1437 = vpack.c.b16 %v1397, %v1393
        %v1438 = vpack.c.b16 %v1402, %v1398
        %v1439 = vpack.c.b16 %v1403, %v1399
        %v1440 = vpack.c.b16 %v1404, %v1400
        %v1441 = vpack.c.b16 %v1405, %v1401
        %v1442 = vpack.c.b16 %v1410, %v1406
        %v1443 = vpack.c.b16 %v1411, %v1407
        %v1444 = vpack.c.b16 %v1412, %v1408
        %v1445 = vpack.c.b16 %v1413, %v1409
        %1478 = vmatprep.subr.bf16.mxu0 %v1415
        %1479 = vmatpush1.bf16.msra.mxu0 %v1414
        %1480 = vmatprep.subr.bf16.mxu0 %v1419
        %1481 = vmatpush1.bf16.msra.mxu0 %v1418
        %1482 = vmatprep.subr.bf16.mxu0 %v1423
        %1483 = vmatpush1.bf16.msra.mxu0 %v1422
        %1484 = vmatprep.subr.bf16.mxu0 %v1427
        %1485 = vmatpush1.bf16.msra.mxu0 %v1426
        %1486 = vmatprep.subr.bf16.mxu0 %v1431
        %1487 = vmatpush1.bf16.msra.mxu0 %v1430
        %1488 = vmatprep.subr.bf16.mxu0 %v1435
        %1489 = vmatpush1.bf16.msra.mxu0 %v1434
        %1490 = vmatprep.subr.bf16.mxu0 %v1439
        %1491 = vmatpush1.bf16.msra.mxu0 %v1438
        %1492 = vmatprep.subr.bf16.mxu0 %v1443
        %1493 = vmatpush1.bf16.msra.mxu0 %v1442
        %1494 = vmatprep.subr.bf16.mxu0 0
        %1495 = vmatpush1.bf16.msra.mxu0 0
        %1496 = vmatprep.subr.bf16.mxu0 0
        %1497 = vmatpush1.bf16.msra.mxu0 0
        %1498 = vmatprep.subr.bf16.mxu0 0
        %1499 = vmatpush1.bf16.msra.mxu0 0
        %1500 = vmatprep.subr.bf16.mxu0 0
        %1501 = vmatpush1.bf16.msra.mxu0 0
        %1502 = vmatprep.subr.bf16.mxu0 0
        %1503 = vmatpush1.bf16.msra.mxu0 0
        %1504 = vmatprep.subr.bf16.mxu0 0
        %1505 = vmatpush1.bf16.msra.mxu0 0
        %1506 = vmatprep.subr.bf16.mxu0 0
        %1507 = vmatpush1.bf16.msra.mxu0 0
        %1508 = vmatprep.subr.bf16.mxu0 0
        %1509 = vmatpush1.bf16.msra.mxu0 0
        %1510 = vmatprep.mubr.bf16.mxu0 0
        %1511 = vmatmul.mubr.bf16.gmra.mrb[0].mxu0 %v1296
        %v1512 = vpop.f32.mrb[0].mxu0
        %v1513 = vadd.f32 %v1301, %v1512
        %v1514 = vpop.f32.mrb[0].mxu0
        %v1515 = vadd.f32 %v1305, %v1514
        %v1516 = vpop.f32.mrb[0].mxu0
        %v1517 = vadd.f32 %v1301, %v1516
        %v1518 = vpop.f32.mrb[0].mxu0
        %v1519 = vadd.f32 %v1305, %v1518
        %1520 = vdwg.mxu0
        %1521 = vmatprep.subr.bf16.mxu0 %v1417
        %1522 = vmatpush1.bf16.msra.mxu0 %v1416
        %1523 = vmatprep.subr.bf16.mxu0 %v1421
        %1524 = vmatpush1.bf16.msra.mxu0 %v1420
        %1525 = vmatprep.subr.bf16.mxu0 %v1425
        %1526 = vmatpush1.bf16.msra.mxu0 %v1424
        %1527 = vmatprep.subr.bf16.mxu0 %v1429
        %1528 = vmatpush1.bf16.msra.mxu0 %v1428
        %1529 = vmatprep.subr.bf16.mxu0 %v1433
        %1530 = vmatpush1.bf16.msra.mxu0 %v1432
        %1531 = vmatprep.subr.bf16.mxu0 %v1437
        %1532 = vmatpush1.bf16.msra.mxu0 %v1436
        %1533 = vmatprep.subr.bf16.mxu0 %v1441
        %1534 = vmatpush1.bf16.msra.mxu0 %v1440
        %1535 = vmatprep.subr.bf16.mxu0 %v1445
        %1536 = vmatpush1.bf16.msra.mxu0 %v1444
        %1537 = vmatprep.subr.bf16.mxu0 0
        %1538 = vmatpush1.bf16.msra.mxu0 0
        %1539 = vmatprep.subr.bf16.mxu0 0
        %1540 = vmatpush1.bf16.msra.mxu0 0
        %1541 = vmatprep.subr.bf16.mxu0 0
        %1542 = vmatpush1.bf16.msra.mxu0 0
        %1543 = vmatprep.subr.bf16.mxu0 0
        %1544 = vmatpush1.bf16.msra.mxu0 0
        %1545 = vmatprep.subr.bf16.mxu0 0
        %1546 = vmatpush1.bf16.msra.mxu0 0
        %1547 = vmatprep.subr.bf16.mxu0 0
        %1548 = vmatpush1.bf16.msra.mxu0 0
        %1549 = vmatprep.subr.bf16.mxu0 0
        %1550 = vmatpush1.bf16.msra.mxu0 0
        %1551 = vmatprep.subr.bf16.mxu0 0
        %1552 = vmatpush1.bf16.msra.mxu0 0
        %1553 = vmatprep.mubr.bf16.mxu0 0
        %1554 = vmatmul.mubr.bf16.gmra.mrb[0].mxu0 %v1296
        %v1555 = vpop.f32.mrb[0].mxu0
        %v1556 = vadd.f32 %v1309, %v1555
        %v1557 = vpop.f32.mrb[0].mxu0
        %v1558 = vadd.f32 %v1313, %v1557
        %v1559 = vpop.f32.mrb[0].mxu0
        %v1560 = vadd.f32 %v1309, %v1559
        %v1561 = vpop.f32.mrb[0].mxu0
        %v1562 = vadd.f32 %v1313, %v1561
        %1563 = vdwg.mxu0
        %v1564 = vmul.f32 %v1513, 0.5
        %v1565 = vmul.f32 %v1515, 0.5
        %v1566 = vmul.f32 %v1556, 0.5
        %v1567 = vmul.f32 %v1558, 0.5
        %v1568 = vmul.f32 %v1517, 0.5
        %v1569 = vmul.f32 %v1519, 0.5
        %v1570 = vmul.f32 %v1560, 0.5
        %v1571 = vmul.f32 %v1562, 0.5
        %v1572 = vmul.f32 %v1513, 0.044715
        %v1573 = vmul.f32 %v1515, 0.044715
        %v1574 = vmul.f32 %v1556, 0.044715
        %v1575 = vmul.f32 %v1558, 0.044715
        %v1576 = vmul.f32 %v1517, 0.044715
        %v1577 = vmul.f32 %v1519, 0.044715
        %v1578 = vmul.f32 %v1560, 0.044715
        %v1579 = vmul.f32 %v1562, 0.044715
        %v1580 = vmul.f32 %v1572, %v1513
        %v1581 = vmul.f32 %v1573, %v1515
        %v1582 = vmul.f32 %v1574, %v1556
        %v1583 = vmul.f32 %v1575, %v1558
        %v1584 = vmul.f32 %v1576, %v1517
        %v1585 = vmul.f32 %v1577, %v1519
        %v1586 = vmul.f32 %v1578, %v1560
        %v1587 = vmul.f32 %v1579, %v1562
        %v1588 = vmul.f32 %v1580, %v1513
        %v1589 = vmul.f32 %v1581, %v1515
        %v1590 = vmul.f32 %v1582, %v1556
        %v1591 = vmul.f32 %v1583, %v1558
        %v1592 = vmul.f32 %v1584, %v1517
        %v1593 = vmul.f32 %v1585, %v1519
        %v1594 = vmul.f32 %v1586, %v1560
        %v1595 = vmul.f32 %v1587, %v1562
        %v1596 = vadd.f32 %v1513, %v1588
        %v1597 = vadd.f32 %v1515, %v1589
        %v1598 = vadd.f32 %v1556, %v1590
        %v1599 = vadd.f32 %v1558, %v1591
        %v1600 = vadd.f32 %v1517, %v1592
        %v1601 = vadd.f32 %v1519, %v1593
        %v1602 = vadd.f32 %v1560, %v1594
        %v1603 = vadd.f32 %v1562, %v1595
        %v1604 = vmul.f32 %v1596, 0.7978846
        %v1605 = vmul.f32 %v1597, 0.7978846
        %v1606 = vmul.f32 %v1598, 0.7978846
        %v1607 = vmul.f32 %v1599, 0.7978846
        %v1608 = vmul.f32 %v1600, 0.7978846
        %v1609 = vmul.f32 %v1601, 0.7978846
        %v1610 = vmul.f32 %v1602, 0.7978846
        %v1611 = vmul.f32 %v1603, 0.7978846
        %v1612 = vtanh.pop %v1604
        %v1613 = vtanh.pop %v1605
        %v1614 = vtanh.pop %v1606
        %v1615 = vtanh.pop %v1607
        %v1616 = vtanh.pop %v1608
        %v1617 = vtanh.pop %v1609
        %v1618 = vtanh.pop %v1610
        %v1619 = vtanh.pop %v1611
        %v1620 = vadd.f32 %v1612, 1.0
        %v1621 = vadd.f32 %v1613, 1.0
        %v1622 = vadd.f32 %v1614, 1.0
        %v1623 = vadd.f32 %v1615, 1.0
        %v1624 = vadd.f32 %v1616, 1.0
        %v1625 = vadd.f32 %v1617, 1.0
        %v1626 = vadd.f32 %v1618, 1.0
        %v1627 = vadd.f32 %v1619, 1.0
        %v1628 = vmul.f32 %v1564, %v1620
        %v1629 = vmul.f32 %v1565, %v1621
        %v1630 = vmul.f32 %v1566, %v1622
        %v1631 = vmul.f32 %v1567, %v1623
        %v1632 = vmul.f32 %v1568, %v1624
        %v1633 = vmul.f32 %v1569, %v1625
        %v1634 = vmul.f32 %v1570, %v1626
        %v1635 = vmul.f32 %v1571, %v1627
        %v1636 = vpack.c.bf16 %v1632, %v1628
        %v1637 = vpack.c.bf16 %v1633, %v1629
        %v1638 = vpack.c.bf16 %v1634, %v1630
        %v1639 = vpack.c.bf16 %v1635, %v1631
        %v1704 = vunpack.c.l.b16 %v358
        %v1705 = vunpack.c.l.b16 %v359
        %v1706 = vunpack.c.l.b16 %v360
        %v1707 = vunpack.c.l.b16 %v361
        %v1708 = vunpack.c.l.b16 %v362
        %v1709 = vunpack.c.l.b16 %v363
        %v1710 = vunpack.c.l.b16 %v364
        %v1711 = vunpack.c.l.b16 %v365
        %v1712 = vunpack.c.l.b16 %v366
        %v1713 = vunpack.c.l.b16 %v367
        %v1714 = vunpack.c.l.b16 %v368
        %v1715 = vunpack.c.l.b16 %v369
        %v1716 = vunpack.c.l.b16 %v370
        %v1717 = vunpack.c.l.b16 %v371
        %v1718 = vunpack.c.l.b16 %v372
        %v1719 = vunpack.c.l.b16 %v373
        %v1720 = vunpack.c.l.b16 %v374
        %v1721 = vunpack.c.l.b16 %v375
        %v1722 = vunpack.c.l.b16 %v376
        %v1723 = vunpack.c.l.b16 %v377
        %v1724 = vunpack.c.l.b16 %v378
        %v1725 = vunpack.c.l.b16 %v379
        %v1726 = vunpack.c.l.b16 %v380
        %v1727 = vunpack.c.l.b16 %v381
        %v1728 = vunpack.c.l.b16 %v382
        %v1729 = vunpack.c.l.b16 %v383
        %v1730 = vunpack.c.l.b16 %v384
        %v1731 = vunpack.c.l.b16 %v385
        %v1732 = vunpack.c.l.b16 %v386
        %v1733 = vunpack.c.l.b16 %v387
        %v1734 = vunpack.c.l.b16 %v388
        %v1735 = vunpack.c.l.b16 %v389
        %v1736 = vunpack.c.l.b16 %v390
        %v1737 = vunpack.c.l.b16 %v391
        %v1738 = vunpack.c.l.b16 %v392
        %v1739 = vunpack.c.l.b16 %v393
        %v1740 = vunpack.c.l.b16 %v394
        %v1741 = vunpack.c.l.b16 %v395
        %v1742 = vunpack.c.l.b16 %v396
        %v1743 = vunpack.c.l.b16 %v397
        %v1744 = vunpack.c.l.b16 %v398
        %v1745 = vunpack.c.l.b16 %v399
        %v1746 = vunpack.c.l.b16 %v400
        %v1747 = vunpack.c.l.b16 %v401
        %v1748 = vunpack.c.l.b16 %v402
        %v1749 = vunpack.c.l.b16 %v403
        %v1750 = vunpack.c.l.b16 %v404
        %v1751 = vunpack.c.l.b16 %v405
        %v1752 = vunpack.c.l.b16 %v406
        %v1753 = vunpack.c.l.b16 %v407
        %v1754 = vunpack.c.l.b16 %v408
        %v1755 = vunpack.c.l.b16 %v409
        %v1756 = vunpack.c.l.b16 %v410
        %v1757 = vunpack.c.l.b16 %v411
        %v1758 = vunpack.c.l.b16 %v412
        %v1759 = vunpack.c.l.b16 %v413
        %v1760 = vunpack.c.l.b16 %v414
        %v1761 = vunpack.c.l.b16 %v415
        %v1762 = vunpack.c.l.b16 %v416
        %v1763 = vunpack.c.l.b16 %v417
        %v1764 = vunpack.c.l.b16 %v418
        %v1765 = vunpack.c.l.b16 %v419
        %v1766 = vunpack.c.l.b16 %v420
        %v1767 = vunpack.c.l.b16 %v421
        %v1768 = vpack.c.b16 %v1705, %v1704
        %v1769 = vpack.c.b16 %v1707, %v1706
        %v1770 = vpack.c.b16 %v1709, %v1708
        %v1771 = vpack.c.b16 %v1711, %v1710
        %v1772 = vpack.c.b16 %v1713, %v1712
        %v1773 = vpack.c.b16 %v1715, %v1714
        %v1774 = vpack.c.b16 %v1717, %v1716
        %v1775 = vpack.c.b16 %v1719, %v1718
        %v1776 = vpack.c.b16 %v1721, %v1720
        %v1777 = vpack.c.b16 %v1723, %v1722
        %v1778 = vpack.c.b16 %v1725, %v1724
        %v1779 = vpack.c.b16 %v1727, %v1726
        %v1780 = vpack.c.b16 %v1729, %v1728
        %v1781 = vpack.c.b16 %v1731, %v1730
        %v1782 = vpack.c.b16 %v1733, %v1732
        %v1783 = vpack.c.b16 %v1735, %v1734
        %v1784 = vpack.c.b16 %v1737, %v1736
        %v1785 = vpack.c.b16 %v1739, %v1738
        %v1786 = vpack.c.b16 %v1741, %v1740
        %v1787 = vpack.c.b16 %v1743, %v1742
        %v1788 = vpack.c.b16 %v1745, %v1744
        %v1789 = vpack.c.b16 %v1747, %v1746
        %v1790 = vpack.c.b16 %v1749, %v1748
        %v1791 = vpack.c.b16 %v1751, %v1750
        %v1792 = vpack.c.b16 %v1753, %v1752
        %v1793 = vpack.c.b16 %v1755, %v1754
        %v1794 = vpack.c.b16 %v1757, %v1756
        %v1795 = vpack.c.b16 %v1759, %v1758
        %v1796 = vpack.c.b16 %v1761, %v1760
        %v1797 = vpack.c.b16 %v1763, %v1762
        %v1798 = vpack.c.b16 %v1765, %v1764
        %v1799 = vpack.c.b16 %v1767, %v1766
        %1832 = vmatprep.subr.bf16.mxu0 0
        %1833 = vmatpush1.bf16.msra.mxu0 %v1768
        %1834 = vmatprep.subr.bf16.mxu0 0
        %1835 = vmatpush1.bf16.msra.mxu0 %v1769
        %1836 = vmatprep.subr.bf16.mxu0 0
        %1837 = vmatpush1.bf16.msra.mxu0 %v1770
        %1838 = vmatprep.subr.bf16.mxu0 0
        %1839 = vmatpush1.bf16.msra.mxu0 %v1771
        %1840 = vmatprep.subr.bf16.mxu0 0
        %1841 = vmatpush1.bf16.msra.mxu0 %v1772
        %1842 = vmatprep.subr.bf16.mxu0 0
        %1843 = vmatpush1.bf16.msra.mxu0 %v1773
        %1844 = vmatprep.subr.bf16.mxu0 0
        %1845 = vmatpush1.bf16.msra.mxu0 %v1774
        %1846 = vmatprep.subr.bf16.mxu0 0
        %1847 = vmatpush1.bf16.msra.mxu0 %v1775
        %1848 = vmatprep.subr.bf16.mxu0 0
        %1849 = vmatpush1.bf16.msra.mxu0 %v1776
        %1850 = vmatprep.subr.bf16.mxu0 0
        %1851 = vmatpush1.bf16.msra.mxu0 %v1777
        %1852 = vmatprep.subr.bf16.mxu0 0
        %1853 = vmatpush1.bf16.msra.mxu0 %v1778
        %1854 = vmatprep.subr.bf16.mxu0 0
        %1855 = vmatpush1.bf16.msra.mxu0 %v1779
        %1856 = vmatprep.subr.bf16.mxu0 0
        %1857 = vmatpush1.bf16.msra.mxu0 %v1780
        %1858 = vmatprep.subr.bf16.mxu0 0
        %1859 = vmatpush1.bf16.msra.mxu0 %v1781
        %1860 = vmatprep.subr.bf16.mxu0 0
        %1861 = vmatpush1.bf16.msra.mxu0 %v1782
        %1862 = vmatprep.subr.bf16.mxu0 0
        %1863 = vmatpush1.bf16.msra.mxu0 %v1783
        %1864 = vmatprep.mubr.bf16.mxu0 %v1637
        %1865 = vmatmul.mubr.bf16.gmra.mrb[0].mxu0 %v1636
        %v1866 = vpop.f32.mrb[0].mxu0
        %v1867 = vadd.f32 %v429, %v1866
        %v1868 = vpop.f32.mrb[0].mxu0
        %v1869 = vpop.f32.mrb[0].mxu0
        %v1870 = vadd.f32 %v429, %v1869
        %v1871 = vpop.f32.mrb[0].mxu0
        %1872 = vdwg.mxu0
        %1873 = vmatprep.subr.bf16.mxu0 0
        %1874 = vmatpush1.bf16.msra.mxu0 %v1784
        %1875 = vmatprep.subr.bf16.mxu0 0
        %1876 = vmatpush1.bf16.msra.mxu0 %v1785
        %1877 = vmatprep.subr.bf16.mxu0 0
        %1878 = vmatpush1.bf16.msra.mxu0 %v1786
        %1879 = vmatprep.subr.bf16.mxu0 0
        %1880 = vmatpush1.bf16.msra.mxu0 %v1787
        %1881 = vmatprep.subr.bf16.mxu0 0
        %1882 = vmatpush1.bf16.msra.mxu0 %v1788
        %1883 = vmatprep.subr.bf16.mxu0 0
        %1884 = vmatpush1.bf16.msra.mxu0 %v1789
        %1885 = vmatprep.subr.bf16.mxu0 0
        %1886 = vmatpush1.bf16.msra.mxu0 %v1790
        %1887 = vmatprep.subr.bf16.mxu0 0
        %1888 = vmatpush1.bf16.msra.mxu0 %v1791
        %1889 = vmatprep.subr.bf16.mxu0 0
        %1890 = vmatpush1.bf16.msra.mxu0 %v1792
        %1891 = vmatprep.subr.bf16.mxu0 0
        %1892 = vmatpush1.bf16.msra.mxu0 %v1793
        %1893 = vmatprep.subr.bf16.mxu0 0
        %1894 = vmatpush1.bf16.msra.mxu0 %v1794
        %1895 = vmatprep.subr.bf16.mxu0 0
        %1896 = vmatpush1.bf16.msra.mxu0 %v1795
        %1897 = vmatprep.subr.bf16.mxu0 0
        %1898 = vmatpush1.bf16.msra.mxu0 %v1796
        %1899 = vmatprep.subr.bf16.mxu0 0
        %1900 = vmatpush1.bf16.msra.mxu0 %v1797
        %1901 = vmatprep.subr.bf16.mxu0 0
        %1902 = vmatpush1.bf16.msra.mxu0 %v1798
        %1903 = vmatprep.subr.bf16.mxu0 0
        %1904 = vmatpush1.bf16.msra.mxu0 %v1799
        %1905 = vmatprep.mubr.bf16.mxu0 %v1639
        %1906 = vmatmul.mubr.bf16.gmra.mrb[0].mxu0 %v1638
        %v1907 = vpop.f32.mrb[0].mxu0
        %v1908 = vadd.f32 %v1867, %v1907
        %v1909 = vpop.f32.mrb[0].mxu0
        %v1910 = vpop.f32.mrb[0].mxu0
        %v1911 = vadd.f32 %v1870, %v1910
        %v1912 = vpop.f32.mrb[0].mxu0
        %1913 = vdwg.mxu0
        %v1914 = vadd.f32 %v1294, %v1908
        %v1915 = vadd.f32 %v1295, %v1911
        %1916 = vadd.xlane.f32.xlu0 %v1914
        %v1917 = vpop.xlane.xlu0 %1916
        %1918 = vadd.xlane.f32.xlu0 %v1915
        %v1919 = vpop.xlane.xlu0 %1918
        %v1920 = vmul.f32 %v1917, %v248
        %v1921 = vmul.f32 %v1919, %v248
        %v1922 = vsub.f32 %v1914, %v1920
        %v1923 = vsub.f32 %v1915, %v1921
        %v1924 = vmul.f32 %v1922, %v1922
        %v1925 = vmul.f32 %v1923, %v1923
        %1926 = vadd.xlane.f32.xlu0 %v1924
        %v1927 = vpop.xlane.xlu0 %1926
        %1928 = vadd.xlane.f32.xlu0 %v1925
        %v1929 = vpop.xlane.xlu0 %1928
        %v1930 = vmul.f32 %v1927, %v248
        %v1931 = vmul.f32 %v1929, %v248
        %v1932 = vadd.f32 %v1930, 1e-12
        %v1933 = vadd.f32 %v1931, 1e-12
        %v1934 = vrsqrt.pop %v1932
        %v1935 = vrsqrt.pop %v1933
        %v1936 = vmul.f32 %v1922, %v1934
        %v1937 = vmul.f32 %v1923, %v1935
        %v1938 = vmul.f32 %v1936, %v430
        %v1939 = vmul.f32 %v1937, %v430
        %v1940 = vadd.f32 %v1938, %v431
        %v1941 = vadd.f32 %v1939, %v431
        %v1942 = vld [vmem:[#allocation2 + $0x700] sm:$0xff]
        %v1943 = vld [vmem:[#allocation2 + $0x708] sm:$0xf]
        %v1944 = vld [vmem:[#allocation2 + $0x710] sm:$0xff]
        %v1945 = vld [vmem:[#allocation2 + $0x718] sm:$0xf]
        %v1946 = vld [vmem:[#allocation2 + $0x720] sm:$0xff]
        %v1947 = vld [vmem:[#allocation2 + $0x728] sm:$0xf]
        %v1948 = vld [vmem:[#allocation2 + $0x730] sm:$0xff]
        %v1949 = vld [vmem:[#allocation2 + $0x738] sm:$0xf]
        %v1950 = vld [vmem:[#allocation2 + $0x740] sm:$0xff]
        %v1951 = vld [vmem:[#allocation2 + $0x748] sm:$0xf]
        %v1952 = vld [vmem:[#allocation2 + $0x750] sm:$0xff]
        %v1953 = vld [vmem:[#allocation2 + $0x758] sm:$0xf]
        %v1954 = vld [vmem:[#allocation2 + $0x760] sm:$0xff]
        %v1955 = vld [vmem:[#allocation2 + $0x768] sm:$0xf]
        %v1956 = vld [vmem:[#allocation2 + $0x770] sm:$0xff]
        %v1957 = vld [vmem:[#allocation2 + $0x778] sm:$0xf]
        %v1958 = vld [vmem:[#allocation2 + $0x780] sm:$0xff]
        %v1959 = vld [vmem:[#allocation2 + $0x788] sm:$0xf]
        %v1960 = vld [vmem:[#allocation2 + $0x790] sm:$0xff]
        %v1961 = vld [vmem:[#allocation2 + $0x798] sm:$0xf]
        %v1962 = vld [vmem:[#allocation2 + $0x7a0] sm:$0xff]
        %v1963 = vld [vmem:[#allocation2 + $0x7a8] sm:$0xf]
        %v1964 = vld [vmem:[#allocation2 + $0x7b0] sm:$0xff]
        %v1965 = vld [vmem:[#allocation2 + $0x7b8] sm:$0xf]
        %v1966 = vld [vmem:[#allocation2 + $0x7c0] sm:$0xff]
        %v1967 = vld [vmem:[#allocation2 + $0x7c8] sm:$0xf]
        %v1968 = vld [vmem:[#allocation2 + $0x7d0] sm:$0xff]
        %v1969 = vld [vmem:[#allocation2 + $0x7d8] sm:$0xf]
        %v1970 = vld [vmem:[#allocation2 + $0x7e0] sm:$0xff]
        %v1971 = vld [vmem:[#allocation2 + $0x7e8] sm:$0xf]
        %v1972 = vld [vmem:[#allocation2 + $0x7f0] sm:$0xff]
        %v1973 = vld [vmem:[#allocation2 + $0x7f8] sm:$0xf]
        %v1974 = vld [vmem:[#allocation2 + $0x800] sm:$0xf]
        %v1975 = vld [vmem:[#allocation2 + $0x810] sm:$0xf]
        %v1976 = vld [vmem:[#allocation2 + $0x820] sm:$0xf]
        %v1977 = vld [vmem:[#allocation2 + $0x830] sm:$0xf]
        %v1978 = vld [vmem:[#allocation2 + $0x840] sm:$0xf]
        %v1979 = vld [vmem:[#allocation2 + $0x850] sm:$0xf]
        %v1980 = vld [vmem:[#allocation2 + $0x860] sm:$0xf]
        %v1981 = vld [vmem:[#allocation2 + $0x870] sm:$0xf]
        %v1982 = vld [vmem:[#allocation2 + $0x880] sm:$0xf]
        %v1983 = vld [vmem:[#allocation2 + $0x890] sm:$0xf]
        %v1984 = vld [vmem:[#allocation2 + $0x8a0] sm:$0xf]
        %v1985 = vld [vmem:[#allocation2 + $0x8b0] sm:$0xf]
        %v1986 = vld [vmem:[#allocation2 + $0x8c0] sm:$0xf]
        %v1987 = vld [vmem:[#allocation2 + $0x8d0] sm:$0xf]
        %v1988 = vld [vmem:[#allocation2 + $0x8e0] sm:$0xf]
        %v1989 = vld [vmem:[#allocation2 + $0x8f0] sm:$0xf]
        %v1990 = vld [vmem:[#allocation2 + $0x900] sm:$0xff]
        %v1991 = vld [vmem:[#allocation2 + $0x908] sm:$0xff]
        %v1992 = vld [vmem:[#allocation2 + $0x910] sm:$0xff]
        %v1993 = vld [vmem:[#allocation2 + $0x918] sm:$0xff]
        %v1994 = vld [vmem:[#allocation2 + $0x920] sm:$0xff]
        %v1995 = vld [vmem:[#allocation2 + $0x928] sm:$0xff]
        %v1996 = vld [vmem:[#allocation2 + $0x930] sm:$0xff]
        %v1997 = vld [vmem:[#allocation2 + $0x938] sm:$0xff]
        %v1998 = vld [vmem:[#allocation2 + $0x940] sm:$0xff]
        %v1999 = vld [vmem:[#allocation2 + $0x948] sm:$0xff]
        %v2000 = vld [vmem:[#allocation2 + $0x950] sm:$0xff]
        %v2001 = vld [vmem:[#allocation2 + $0x958] sm:$0xff]
        %v2002 = vld [vmem:[#allocation2 + $0x960] sm:$0xff]
        %v2003 = vld [vmem:[#allocation2 + $0x968] sm:$0xff]
        %v2004 = vld [vmem:[#allocation2 + $0x970] sm:$0xff]
        %v2005 = vld [vmem:[#allocation2 + $0x978] sm:$0xff]
        %v2006 = vld [vmem:[#allocation2 + $0x980] sm:$0xff]
        %v2007 = vld [vmem:[#allocation2 + $0x988] sm:$0xff]
        %v2008 = vld [vmem:[#allocation2 + $0x990] sm:$0xff]
        %v2009 = vld [vmem:[#allocation2 + $0x998] sm:$0xff]
        %v2010 = vld [vmem:[#allocation2 + $0x9a0] sm:$0xff]
        %v2011 = vld [vmem:[#allocation2 + $0x9a8] sm:$0xff]
        %v2012 = vld [vmem:[#allocation2 + $0x9b0] sm:$0xff]
        %v2013 = vld [vmem:[#allocation2 + $0x9b8] sm:$0xff]
        %v2014 = vld [vmem:[#allocation2 + $0x9c0] sm:$0xff]
        %v2015 = vld [vmem:[#allocation2 + $0x9c8] sm:$0xff]
        %v2016 = vld [vmem:[#allocation2 + $0x9d0] sm:$0xff]
        %v2017 = vld [vmem:[#allocation2 + $0x9d8] sm:$0xff]
        %v2018 = vld [vmem:[#allocation2 + $0x9e0] sm:$0xff]
        %v2019 = vld [vmem:[#allocation2 + $0x9e8] sm:$0xff]
        %v2020 = vld [vmem:[#allocation2 + $0x9f0] sm:$0xff]
        %v2021 = vld [vmem:[#allocation2 + $0x9f8] sm:$0xff]
        %v2022 = vld [vmem:[#allocation2 + $0xa00] sm:$0xf]
        %v2023 = vld [vmem:[#allocation2 + $0xa10] sm:$0xf]
        %v2024 = vld [vmem:[#allocation2 + $0xa20] sm:$0xf]
        %v2025 = vld [vmem:[#allocation2 + $0xa30] sm:$0xf]
        %v2026 = vld [vmem:[#allocation2 + $0xa40] sm:$0xf]
        %v2027 = vld [vmem:[#allocation2 + $0xa50] sm:$0xf]
        %v2028 = vld [vmem:[#allocation2 + $0xa60] sm:$0xf]
        %v2029 = vld [vmem:[#allocation2 + $0xa70] sm:$0xf]
        %v2030 = vld [vmem:[#allocation2 + $0xa80] sm:$0xf]
        %v2031 = vld [vmem:[#allocation2 + $0xa90] sm:$0xf]
        %v2032 = vld [vmem:[#allocation2 + $0xaa0] sm:$0xf]
        %v2033 = vld [vmem:[#allocation2 + $0xab0] sm:$0xf]
        %v2034 = vld [vmem:[#allocation2 + $0xac0] sm:$0xf]
        %v2035 = vld [vmem:[#allocation2 + $0xad0] sm:$0xf]
        %v2036 = vld [vmem:[#allocation2 + $0xae0] sm:$0xf]
        %v2037 = vld [vmem:[#allocation2 + $0xaf0] sm:$0xf]
        %v2038 = vld [vmem:[#allocation2 + $0xb00] sm:$0xf]
        %v2039 = vld [vmem:[#allocation2 + $0xb10] sm:$0xf]
        %v2040 = vld [vmem:[#allocation2 + $0xb20] sm:$0xf]
        %v2041 = vld [vmem:[#allocation2 + $0xb30] sm:$0xf]
        %v2042 = vld [vmem:[#allocation2 + $0xb40] sm:$0xf]
        %v2043 = vld [vmem:[#allocation2 + $0xb50] sm:$0xf]
        %v2044 = vld [vmem:[#allocation2 + $0xb60] sm:$0xf]
        %v2045 = vld [vmem:[#allocation2 + $0xb70] sm:$0xf]
        %v2046 = vld [vmem:[#allocation2 + $0xb80] sm:$0xf]
        %v2047 = vld [vmem:[#allocation2 + $0xb90] sm:$0xf]
        %v2048 = vld [vmem:[#allocation2 + $0xba0] sm:$0xf]
        %v2049 = vld [vmem:[#allocation2 + $0xbb0] sm:$0xf]
        %v2050 = vld [vmem:[#allocation2 + $0xbc0] sm:$0xf]
        %v2051 = vld [vmem:[#allocation2 + $0xbd0] sm:$0xf]
        %v2052 = vld [vmem:[#allocation2 + $0xbe0] sm:$0xf]
        %v2053 = vld [vmem:[#allocation2 + $0xbf0] sm:$0xf]
        %v2054 = vld [vmem:[#allocation2 + $0xc00] sm:$0xf]
        %v2055 = vld [vmem:[#allocation2 + $0xc10] sm:$0xf]
        %v2056 = vld [vmem:[#allocation2 + $0xc20] sm:$0xf]
        %v2057 = vld [vmem:[#allocation2 + $0xc30] sm:$0xf]
        %v2058 = vld [vmem:[#allocation2 + $0xc40] sm:$0xf]
        %v2059 = vld [vmem:[#allocation2 + $0xc50] sm:$0xf]
        %v2060 = vld [vmem:[#allocation2 + $0xc60] sm:$0xf]
        %v2061 = vld [vmem:[#allocation2 + $0xc70] sm:$0xf]
        %v2062 = vld [vmem:[#allocation2 + $0xc80] sm:$0xf]
        %v2063 = vld [vmem:[#allocation2 + $0xc90] sm:$0xf]
        %v2064 = vld [vmem:[#allocation2 + $0xca0] sm:$0xf]
        %v2065 = vld [vmem:[#allocation2 + $0xcb0] sm:$0xf]
        %v2066 = vld [vmem:[#allocation2 + $0xcc0] sm:$0xf]
        %v2067 = vld [vmem:[#allocation2 + $0xcd0] sm:$0xf]
        %v2068 = vld [vmem:[#allocation2 + $0xce0] sm:$0xf]
        %v2069 = vld [vmem:[#allocation2 + $0xcf0] sm:$0xf]
        %v2070 = vld [vmem:[#allocation2 + $0xd00] sm:$0xf]
        %v2071 = vld [vmem:[#allocation2 + $0xd10] sm:$0xf]
        %v2072 = vld [vmem:[#allocation2 + $0xd20] sm:$0xf]
        %v2073 = vld [vmem:[#allocation2 + $0xd30] sm:$0xf]
        %v2074 = vld [vmem:[#allocation2 + $0xd40] sm:$0xf]
        %v2075 = vld [vmem:[#allocation2 + $0xd50] sm:$0xf]
        %v2076 = vld [vmem:[#allocation2 + $0xd60] sm:$0xf]
        %v2077 = vld [vmem:[#allocation2 + $0xd70] sm:$0xf]
        %v2078 = vld [vmem:[#allocation2 + $0xd80] sm:$0xf]
        %v2079 = vld [vmem:[#allocation2 + $0xd90] sm:$0xf]
        %v2080 = vld [vmem:[#allocation2 + $0xda0] sm:$0xf]
        %v2081 = vld [vmem:[#allocation2 + $0xdb0] sm:$0xf]
        %v2082 = vld [vmem:[#allocation2 + $0xdc0] sm:$0xf]
        %v2083 = vld [vmem:[#allocation2 + $0xdd0] sm:$0xf]
        %v2084 = vld [vmem:[#allocation2 + $0xde0] sm:$0xf]
        %v2085 = vld [vmem:[#allocation2 + $0xdf0] sm:$0xf]
        %s2086 = scalar_lea.vmem [#allocation5], 34
        %v2087 = vld [vmem:[%s2086] ss:$8 sm:$0x7]
        %v2088 = vld [vmem:[#allocation5 + $0x23] ss:$0 sm:$0xff]
        %v2089 = vld [vmem:[#allocation5 + $0x24] ss:$0 sm:$0xff]
        %v2090 = vld [vmem:[#allocation5 + $0x25] ss:$0 sm:$0xff]
        %s2091 = scalar_lea.vmem [#allocation5], 38
        %v2092 = vld [vmem:[%s2091] ss:$8 sm:$0xf]
        %v2093 = vld [vmem:[#allocation5 + $0x27] ss:$0 sm:$0xff]
        %v2094 = vld [vmem:[#allocation5 + $0x40] ss:$0 sm:$0xff]
        %v2095 = vld [vmem:[#allocation5 + $0x41] ss:$0 sm:$0xff]
        %v2096 = vpack.c.bf16 %v1941, %v1940
        %v2098 = vlaneseq
        %v2099 = vshrl.u32 %v2098, 7
        %v2100 = vsub.s32 0, %v2099
        %v2101 = vrot.slane %v2087, %v2100
        %v2102 = vlaneseq
        %v2103 = vshrl.u32 %v2102, 7
        %v2104 = vsub.s32 1, %v2103
        %v2105 = vrot.slane %v2087, %v2104
        %v2106 = vlaneseq
        %v2107 = vshrl.u32 %v2106, 7
        %v2108 = vsub.s32 2, %v2107
        %v2109 = vrot.slane %v2087, %v2108
        %v2145 = vunpack.c.l.b16 %v1942
        %v2146 = vunpack.c.h.b16 %v1942
        %v2147 = vunpack.c.l.b16 %v1943
        %v2148 = vunpack.c.l.b16 %v1944
        %v2149 = vunpack.c.h.b16 %v1944
        %v2150 = vunpack.c.l.b16 %v1945
        %v2151 = vunpack.c.l.b16 %v1946
        %v2152 = vunpack.c.h.b16 %v1946
        %v2153 = vunpack.c.l.b16 %v1947
        %v2154 = vunpack.c.l.b16 %v1948
        %v2155 = vunpack.c.h.b16 %v1948
        %v2156 = vunpack.c.l.b16 %v1949
        %v2157 = vunpack.c.l.b16 %v1950
        %v2158 = vunpack.c.h.b16 %v1950
        %v2159 = vunpack.c.l.b16 %v1951
        %v2160 = vunpack.c.l.b16 %v1952
        %v2161 = vunpack.c.h.b16 %v1952
        %v2162 = vunpack.c.l.b16 %v1953
        %v2163 = vunpack.c.l.b16 %v1954
        %v2164 = vunpack.c.h.b16 %v1954
        %v2165 = vunpack.c.l.b16 %v1955
        %v2166 = vunpack.c.l.b16 %v1956
        %v2167 = vunpack.c.h.b16 %v1956
        %v2168 = vunpack.c.l.b16 %v1957
        %v2169 = vunpack.c.l.b16 %v1958
        %v2170 = vunpack.c.h.b16 %v1958
        %v2171 = vunpack.c.l.b16 %v1959
        %v2172 = vunpack.c.l.b16 %v1960
        %v2173 = vunpack.c.h.b16 %v1960
        %v2174 = vunpack.c.l.b16 %v1961
        %v2175 = vunpack.c.l.b16 %v1962
        %v2176 = vunpack.c.h.b16 %v1962
        %v2177 = vunpack.c.l.b16 %v1963
        %v2178 = vunpack.c.l.b16 %v1964
        %v2179 = vunpack.c.h.b16 %v1964
        %v2180 = vunpack.c.l.b16 %v1965
        %v2181 = vunpack.c.l.b16 %v1966
        %v2182 = vunpack.c.h.b16 %v1966
        %v2183 = vunpack.c.l.b16 %v1967
        %v2184 = vunpack.c.l.b16 %v1968
        %v2185 = vunpack.c.h.b16 %v1968
        %v2186 = vunpack.c.l.b16 %v1969
        %v2187 = vunpack.c.l.b16 %v1970
        %v2188 = vunpack.c.h.b16 %v1970
        %v2189 = vunpack.c.l.b16 %v1971
        %v2190 = vunpack.c.l.b16 %v1972
        %v2191 = vunpack.c.h.b16 %v1972
        %v2192 = vunpack.c.l.b16 %v1973
        %v2193 = vpack.c.b16 %v2148, %v2145
        %v2194 = vpack.c.b16 %v2149, %v2146
        %v2195 = vpack.c.b16 %v2150, %v2147
        %v2196 = vpack.c.b16 %v2154, %v2151
        %v2197 = vpack.c.b16 %v2155, %v2152
        %v2198 = vpack.c.b16 %v2156, %v2153
        %v2199 = vpack.c.b16 %v2160, %v2157
        %v2200 = vpack.c.b16 %v2161, %v2158
        %v2201 = vpack.c.b16 %v2162, %v2159
        %v2202 = vpack.c.b16 %v2166, %v2163
        %v2203 = vpack.c.b16 %v2167, %v2164
        %v2204 = vpack.c.b16 %v2168, %v2165
        %v2205 = vpack.c.b16 %v2172, %v2169
        %v2206 = vpack.c.b16 %v2173, %v2170
        %v2207 = vpack.c.b16 %v2174, %v2171
        %v2208 = vpack.c.b16 %v2178, %v2175
        %v2209 = vpack.c.b16 %v2179, %v2176
        %v2210 = vpack.c.b16 %v2180, %v2177
        %v2211 = vpack.c.b16 %v2184, %v2181
        %v2212 = vpack.c.b16 %v2185, %v2182
        %v2213 = vpack.c.b16 %v2186, %v2183
        %v2214 = vpack.c.b16 %v2190, %v2187
        %v2215 = vpack.c.b16 %v2191, %v2188
        %v2216 = vpack.c.b16 %v2192, %v2189
        %2241 = vmatprep.subr.bf16.mxu0 %v2194
        %2242 = vmatpush1.bf16.msra.mxu0 %v2193
        %2243 = vmatprep.subr.bf16.mxu0 %v2197
        %2244 = vmatpush1.bf16.msra.mxu0 %v2196
        %2245 = vmatprep.subr.bf16.mxu0 %v2200
        %2246 = vmatpush1.bf16.msra.mxu0 %v2199
        %2247 = vmatprep.subr.bf16.mxu0 %v2203
        %2248 = vmatpush1.bf16.msra.mxu0 %v2202
        %2249 = vmatprep.subr.bf16.mxu0 %v2206
        %2250 = vmatpush1.bf16.msra.mxu0 %v2205
        %2251 = vmatprep.subr.bf16.mxu0 %v2209
        %2252 = vmatpush1.bf16.msra.mxu0 %v2208
        %2253 = vmatprep.subr.bf16.mxu0 %v2212
        %2254 = vmatpush1.bf16.msra.mxu0 %v2211
        %2255 = vmatprep.subr.bf16.mxu0 %v2215
        %2256 = vmatpush1.bf16.msra.mxu0 %v2214
        %2257 = vmatprep.subr.bf16.mxu0 0
        %2258 = vmatpush1.bf16.msra.mxu0 0
        %2259 = vmatprep.subr.bf16.mxu0 0
        %2260 = vmatpush1.bf16.msra.mxu0 0
        %2261 = vmatprep.subr.bf16.mxu0 0
        %2262 = vmatpush1.bf16.msra.mxu0 0
        %2263 = vmatprep.subr.bf16.mxu0 0
        %2264 = vmatpush1.bf16.msra.mxu0 0
        %2265 = vmatprep.subr.bf16.mxu0 0
        %2266 = vmatpush1.bf16.msra.mxu0 0
        %2267 = vmatprep.subr.bf16.mxu0 0
        %2268 = vmatpush1.bf16.msra.mxu0 0
        %2269 = vmatprep.subr.bf16.mxu0 0
        %2270 = vmatpush1.bf16.msra.mxu0 0
        %2271 = vmatprep.subr.bf16.mxu0 0
        %2272 = vmatpush1.bf16.msra.mxu0 0
        %2273 = vmatprep.mubr.bf16.mxu0 0
        %2274 = vmatmul.mubr.bf16.gmra.mrb[0].mxu0 %v2096
        %v2275 = vpop.f32.mrb[0].mxu0
        %v2276 = vadd.f32 %v2101, %v2275
        %v2277 = vpop.f32.mrb[0].mxu0
        %v2278 = vadd.f32 %v2105, %v2277
        %v2279 = vpop.f32.mrb[0].mxu0
        %v2280 = vadd.f32 %v2101, %v2279
        %v2281 = vpop.f32.mrb[0].mxu0
        %v2282 = vadd.f32 %v2105, %v2281
        %2283 = vdwg.mxu0
        %2284 = vmatprep.subr.bf16.mxu0 0
        %2285 = vmatpush1.bf16.msra.mxu0 %v2195
        %2286 = vmatprep.subr.bf16.mxu0 0
        %2287 = vmatpush1.bf16.msra.mxu0 %v2198
        %2288 = vmatprep.subr.bf16.mxu0 0
        %2289 = vmatpush1.bf16.msra.mxu0 %v2201
        %2290 = vmatprep.subr.bf16.mxu0 0
        %2291 = vmatpush1.bf16.msra.mxu0 %v2204
        %2292 = vmatprep.subr.bf16.mxu0 0
        %2293 = vmatpush1.bf16.msra.mxu0 %v2207
        %2294 = vmatprep.subr.bf16.mxu0 0
        %2295 = vmatpush1.bf16.msra.mxu0 %v2210
        %2296 = vmatprep.subr.bf16.mxu0 0
        %2297 = vmatpush1.bf16.msra.mxu0 %v2213
        %2298 = vmatprep.subr.bf16.mxu0 0
        %2299 = vmatpush1.bf16.msra.mxu0 %v2216
        %2300 = vmatprep.subr.bf16.mxu0 0
        %2301 = vmatpush1.bf16.msra.mxu0 0
        %2302 = vmatprep.subr.bf16.mxu0 0
        %2303 = vmatpush1.bf16.msra.mxu0 0
        %2304 = vmatprep.subr.bf16.mxu0 0
        %2305 = vmatpush1.bf16.msra.mxu0 0
        %2306 = vmatprep.subr.bf16.mxu0 0
        %2307 = vmatpush1.bf16.msra.mxu0 0
        %2308 = vmatprep.subr.bf16.mxu0 0
        %2309 = vmatpush1.bf16.msra.mxu0 0
        %2310 = vmatprep.subr.bf16.mxu0 0
        %2311 = vmatpush1.bf16.msra.mxu0 0
        %2312 = vmatprep.subr.bf16.mxu0 0
        %2313 = vmatpush1.bf16.msra.mxu0 0
        %2314 = vmatprep.subr.bf16.mxu0 0
        %2315 = vmatpush1.bf16.msra.mxu0 0
        %2316 = vmatprep.mubr.bf16.mxu0 0
        %2317 = vmatmul.mubr.bf16.gmra.mrb[0].mxu0 %v2096
        %v2318 = vpop.f32.mrb[0].mxu0
        %v2319 = vadd.f32 %v2109, %v2318
        %v2320 = vpop.f32.mrb[0].mxu0
        %v2321 = vpop.f32.mrb[0].mxu0
        %v2322 = vadd.f32 %v2109, %v2321
        %v2323 = vpop.f32.mrb[0].mxu0
        %2324 = vdwg.mxu0
        %v2325 = vpack.c.bf16 %v2280, %v2276
        %v2326 = vpack.c.bf16 %v2282, %v2278
        %v2327 = vpack.c.bf16 %v2322, %v2319
        %v2329 = vsel %vm664, %v2325, 0
        %v2332 = vsel %vm664, %v2326, 0
        %2334 = vmatprep.subr.bf16.mxu0 0
        %2335 = vmatpush1.bf16.xpose.msra.mxu0 %v2332
        %2336 = vmatprep.subr.bf16.mxu0 0
        %2337 = vmatpush1.bf16.xpose.msra.mxu0 0
        %2338 = vmatprep.subr.bf16.mxu0 0
        %2339 = vmatpush1.bf16.xpose.msra.mxu0 0
        %2340 = vmatprep.subr.bf16.mxu0 0
        %2341 = vmatpush1.bf16.xpose.msra.mxu0 0
        %2342 = vmatprep.subr.bf16.mxu0 0
        %2343 = vmatpush1.bf16.xpose.msra.mxu0 0
        %2344 = vmatprep.subr.bf16.mxu0 0
        %2345 = vmatpush1.bf16.xpose.msra.mxu0 0
        %2346 = vmatprep.subr.bf16.mxu0 0
        %2347 = vmatpush1.bf16.xpose.msra.mxu0 0
        %2348 = vmatprep.subr.bf16.mxu0 0
        %2349 = vmatpush1.bf16.xpose.msra.mxu0 0
        %2350 = vmatprep.subr.bf16.mxu0 0
        %2351 = vmatpush1.bf16.xpose.msra.mxu0 0
        %2352 = vmatprep.subr.bf16.mxu0 0
        %2353 = vmatpush1.bf16.xpose.msra.mxu0 0
        %2354 = vmatprep.subr.bf16.mxu0 0
        %2355 = vmatpush1.bf16.xpose.msra.mxu0 0
        %2356 = vmatprep.subr.bf16.mxu0 0
        %2357 = vmatpush1.bf16.xpose.msra.mxu0 0
        %2358 = vmatprep.subr.bf16.mxu0 0
        %2359 = vmatpush1.bf16.xpose.msra.mxu0 0
        %2360 = vmatprep.subr.bf16.mxu0 0
        %2361 = vmatpush1.bf16.xpose.msra.mxu0 0
        %2362 = vmatprep.subr.bf16.mxu0 0
        %2363 = vmatpush1.bf16.xpose.msra.mxu0 0
        %2364 = vmatprep.subr.bf16.mxu0 0
        %2365 = vmatpush1.bf16.xpose.msra.mxu0 0
        %2366 = vmatprep.mubr.bf16.mxu0 0
        %2367 = vmatmul.mubr.bf16.gmra.mrb[0].mxu0 %v2329
        %v2368 = vpop.f32.mrb[0].mxu0
        %v2369 = vadd.f32 %v276, %v2368
        %v2370 = vpop.f32.mrb[0].mxu0
        %v2371 = vpop.f32.mrb[0].mxu0
        %v2372 = vadd.f32 %v276, %v2371
        %v2373 = vpop.f32.mrb[0].mxu0
        %2374 = vdwg.mxu0
        %v2375 = vsel %vm712, %v2369, -inf
        %2376 = vmax.xlane.f32.xlu0 %v2375
        %v2377 = vpop.xlane.xlu0 %2376
        %v2378 = vsel %vm712, %v2372, -inf
        %2379 = vmax.xlane.f32.xlu0 %v2378
        %v2380 = vpop.xlane.xlu0 %2379
        %v2381 = vsub.f32 %v2369, %v2377
        %v2382 = vsub.f32 %v2372, %v2380
        %v2383 = vmul.f32 %v2381, 1.442695
        %v2384 = vpow.pop %v2383
        %v2385 = vmul.f32 %v2382, 1.442695
        %v2386 = vpow.pop %v2385
        %v2387 = vsel %vm712, %v2384, 0.0
        %2388 = vadd.xlane.f32.xlu0 %v2387
        %v2389 = vpop.xlane.xlu0 %2388
        %v2390 = vsel %vm712, %v2386, 0.0
        %2391 = vadd.xlane.f32.xlu0 %v2390
        %v2392 = vpop.xlane.xlu0 %2391
        %v2393 = vrcp.pop %v2389
        %v2394 = vrcp.pop %v2392
        %v2395 = vmul.f32 %v2384, %v2393
        %v2396 = vmul.f32 %v2386, %v2394
        %v2397 = vpack.c.bf16 %v2396, %v2395
        %v2399 = vsel %vm712, %v2397, 0
        %2401 = vmatprep.subr.bf16.mxu0 0
        %2402 = vmatpush1.bf16.msra.mxu0 %v2327
        %2403 = vmatprep.subr.bf16.mxu0 0
        %2404 = vmatpush1.bf16.msra.mxu0 0
        %2405 = vmatprep.subr.bf16.mxu0 0
        %2406 = vmatpush1.bf16.msra.mxu0 0
        %2407 = vmatprep.subr.bf16.mxu0 0
        %2408 = vmatpush1.bf16.msra.mxu0 0
        %2409 = vmatprep.subr.bf16.mxu0 0
        %2410 = vmatpush1.bf16.msra.mxu0 0
        %2411 = vmatprep.subr.bf16.mxu0 0
        %2412 = vmatpush1.bf16.msra.mxu0 0
        %2413 = vmatprep.subr.bf16.mxu0 0
        %2414 = vmatpush1.bf16.msra.mxu0 0
        %2415 = vmatprep.subr.bf16.mxu0 0
        %2416 = vmatpush1.bf16.msra.mxu0 0
        %2417 = vmatprep.subr.bf16.mxu0 0
        %2418 = vmatpush1.bf16.msra.mxu0 0
        %2419 = vmatprep.subr.bf16.mxu0 0
        %2420 = vmatpush1.bf16.msra.mxu0 0
        %2421 = vmatprep.subr.bf16.mxu0 0
        %2422 = vmatpush1.bf16.msra.mxu0 0
        %2423 = vmatprep.subr.bf16.mxu0 0
        %2424 = vmatpush1.bf16.msra.mxu0 0
        %2425 = vmatprep.subr.bf16.mxu0 0
        %2426 = vmatpush1.bf16.msra.mxu0 0
        %2427 = vmatprep.subr.bf16.mxu0 0
        %2428 = vmatpush1.bf16.msra.mxu0 0
        %2429 = vmatprep.subr.bf16.mxu0 0
        %2430 = vmatpush1.bf16.msra.mxu0 0
        %2431 = vmatprep.subr.bf16.mxu0 0
        %2432 = vmatpush1.bf16.msra.mxu0 0
        %2433 = vmatprep.mubr.bf16.mxu0 0
        %2434 = vmatmul.mubr.bf16.gmra.mrb[0].mxu0 %v2399
        %v2435 = vpop.f32.mrb[0].mxu0
        %v2436 = vadd.f32 0.0, %v2435
        %v2437 = vpop.f32.mrb[0].mxu0
        %v2438 = vpop.f32.mrb[0].mxu0
        %v2439 = vadd.f32 0.0, %v2438
        %v2440 = vpop.f32.mrb[0].mxu0
        %2441 = vdwg.mxu0
        %2443 = vrot.lane.b32.xlu0 %v2325, 96
        %v2444 = vpop.permute.xlu0 %2443
        %2446 = vrot.lane.b32.xlu0 %v2326, 96
        %v2447 = vpop.permute.xlu0 %2446
        %v2449 = vsel %vm664, %v2444, 0
        %v2452 = vsel %vm664, %v2447, 0
        %2454 = vmatprep.subr.bf16.mxu0 0
        %2455 = vmatpush1.bf16.xpose.msra.mxu0 %v2452
        %2456 = vmatprep.subr.bf16.mxu0 0
        %2457 = vmatpush1.bf16.xpose.msra.mxu0 0
        %2458 = vmatprep.subr.bf16.mxu0 0
        %2459 = vmatpush1.bf16.xpose.msra.mxu0 0
        %2460 = vmatprep.subr.bf16.mxu0 0
        %2461 = vmatpush1.bf16.xpose.msra.mxu0 0
        %2462 = vmatprep.subr.bf16.mxu0 0
        %2463 = vmatpush1.bf16.xpose.msra.mxu0 0
        %2464 = vmatprep.subr.bf16.mxu0 0
        %2465 = vmatpush1.bf16.xpose.msra.mxu0 0
        %2466 = vmatprep.subr.bf16.mxu0 0
        %2467 = vmatpush1.bf16.xpose.msra.mxu0 0
        %2468 = vmatprep.subr.bf16.mxu0 0
        %2469 = vmatpush1.bf16.xpose.msra.mxu0 0
        %2470 = vmatprep.subr.bf16.mxu0 0
        %2471 = vmatpush1.bf16.xpose.msra.mxu0 0
        %2472 = vmatprep.subr.bf16.mxu0 0
        %2473 = vmatpush1.bf16.xpose.msra.mxu0 0
        %2474 = vmatprep.subr.bf16.mxu0 0
        %2475 = vmatpush1.bf16.xpose.msra.mxu0 0
        %2476 = vmatprep.subr.bf16.mxu0 0
        %2477 = vmatpush1.bf16.xpose.msra.mxu0 0
        %2478 = vmatprep.subr.bf16.mxu0 0
        %2479 = vmatpush1.bf16.xpose.msra.mxu0 0
        %2480 = vmatprep.subr.bf16.mxu0 0
        %2481 = vmatpush1.bf16.xpose.msra.mxu0 0
        %2482 = vmatprep.subr.bf16.mxu0 0
        %2483 = vmatpush1.bf16.xpose.msra.mxu0 0
        %2484 = vmatprep.subr.bf16.mxu0 0
        %2485 = vmatpush1.bf16.xpose.msra.mxu0 0
        %2486 = vmatprep.mubr.bf16.mxu0 0
        %2487 = vmatmul.mubr.bf16.gmra.mrb[0].mxu0 %v2449
        %v2488 = vpop.f32.mrb[0].mxu0
        %v2489 = vadd.f32 %v276, %v2488
        %v2490 = vpop.f32.mrb[0].mxu0
        %v2491 = vpop.f32.mrb[0].mxu0
        %v2492 = vadd.f32 %v276, %v2491
        %v2493 = vpop.f32.mrb[0].mxu0
        %2494 = vdwg.mxu0
        %v2495 = vsel %vm712, %v2489, -inf
        %2496 = vmax.xlane.f32.xlu0 %v2495
        %v2497 = vpop.xlane.xlu0 %2496
        %v2498 = vsel %vm712, %v2492, -inf
        %2499 = vmax.xlane.f32.xlu0 %v2498
        %v2500 = vpop.xlane.xlu0 %2499
        %v2501 = vsub.f32 %v2489, %v2497
        %v2502 = vsub.f32 %v2492, %v2500
        %v2503 = vmul.f32 %v2501, 1.442695
        %v2504 = vpow.pop %v2503
        %v2505 = vmul.f32 %v2502, 1.442695
        %v2506 = vpow.pop %v2505
        %v2507 = vsel %vm712, %v2504, 0.0
        %2508 = vadd.xlane.f32.xlu0 %v2507
        %v2509 = vpop.xlane.xlu0 %2508
        %v2510 = vsel %vm712, %v2506, 0.0
        %2511 = vadd.xlane.f32.xlu0 %v2510
        %v2512 = vpop.xlane.xlu0 %2511
        %v2513 = vrcp.pop %v2509
        %v2514 = vrcp.pop %v2512
        %v2515 = vmul.f32 %v2504, %v2513
        %v2516 = vmul.f32 %v2506, %v2514
        %v2517 = vpack.c.bf16 %v2516, %v2515
        %2519 = vrot.lane.b32.xlu0 %v2327, 96
        %v2520 = vpop.permute.xlu0 %2519
        %v2523 = vsel %vm712, %v2517, 0
        %2525 = vmatprep.subr.bf16.mxu0 0
        %2526 = vmatpush1.bf16.msra.mxu0 %v2520
        %2527 = vmatprep.subr.bf16.mxu0 0
        %2528 = vmatpush1.bf16.msra.mxu0 0
        %2529 = vmatprep.subr.bf16.mxu0 0
        %2530 = vmatpush1.bf16.msra.mxu0 0
        %2531 = vmatprep.subr.bf16.mxu0 0
        %2532 = vmatpush1.bf16.msra.mxu0 0
        %2533 = vmatprep.subr.bf16.mxu0 0
        %2534 = vmatpush1.bf16.msra.mxu0 0
        %2535 = vmatprep.subr.bf16.mxu0 0
        %2536 = vmatpush1.bf16.msra.mxu0 0
        %2537 = vmatprep.subr.bf16.mxu0 0
        %2538 = vmatpush1.bf16.msra.mxu0 0
        %2539 = vmatprep.subr.bf16.mxu0 0
        %2540 = vmatpush1.bf16.msra.mxu0 0
        %2541 = vmatprep.subr.bf16.mxu0 0
        %2542 = vmatpush1.bf16.msra.mxu0 0
        %2543 = vmatprep.subr.bf16.mxu0 0
        %2544 = vmatpush1.bf16.msra.mxu0 0
        %2545 = vmatprep.subr.bf16.mxu0 0
        %2546 = vmatpush1.bf16.msra.mxu0 0
        %2547 = vmatprep.subr.bf16.mxu0 0
        %2548 = vmatpush1.bf16.msra.mxu0 0
        %2549 = vmatprep.subr.bf16.mxu0 0
        %2550 = vmatpush1.bf16.msra.mxu0 0
        %2551 = vmatprep.subr.bf16.mxu0 0
        %2552 = vmatpush1.bf16.msra.mxu0 0
        %2553 = vmatprep.subr.bf16.mxu0 0
        %2554 = vmatpush1.bf16.msra.mxu0 0
        %2555 = vmatprep.subr.bf16.mxu0 0
        %2556 = vmatpush1.bf16.msra.mxu0 0
        %2557 = vmatprep.mubr.bf16.mxu0 0
        %2558 = vmatmul.mubr.bf16.gmra.mrb[0].mxu0 %v2523
        %v2559 = vpop.f32.mrb[0].mxu0
        %v2560 = vadd.f32 0.0, %v2559
        %v2561 = vpop.f32.mrb[0].mxu0
        %v2562 = vpop.f32.mrb[0].mxu0
        %v2563 = vadd.f32 0.0, %v2562
        %v2564 = vpop.f32.mrb[0].mxu0
        %2565 = vdwg.mxu0
        %2566 = vrot.lane.b32.xlu0 %v2325, 64
        %v2567 = vpop.permute.xlu0 %2566
        %2568 = vrot.lane.b32.xlu0 %v2326, 64
        %v2569 = vpop.permute.xlu0 %2568
        %v2571 = vsel %vm664, %v2567, 0
        %v2574 = vsel %vm664, %v2569, 0
        %2576 = vmatprep.subr.bf16.mxu0 0
        %2577 = vmatpush1.bf16.xpose.msra.mxu0 %v2574
        %2578 = vmatprep.subr.bf16.mxu0 0
        %2579 = vmatpush1.bf16.xpose.msra.mxu0 0
        %2580 = vmatprep.subr.bf16.mxu0 0
        %2581 = vmatpush1.bf16.xpose.msra.mxu0 0
        %2582 = vmatprep.subr.bf16.mxu0 0
        %2583 = vmatpush1.bf16.xpose.msra.mxu0 0
        %2584 = vmatprep.subr.bf16.mxu0 0
        %2585 = vmatpush1.bf16.xpose.msra.mxu0 0
        %2586 = vmatprep.subr.bf16.mxu0 0
        %2587 = vmatpush1.bf16.xpose.msra.mxu0 0
        %2588 = vmatprep.subr.bf16.mxu0 0
        %2589 = vmatpush1.bf16.xpose.msra.mxu0 0
        %2590 = vmatprep.subr.bf16.mxu0 0
        %2591 = vmatpush1.bf16.xpose.msra.mxu0 0
        %2592 = vmatprep.subr.bf16.mxu0 0
        %2593 = vmatpush1.bf16.xpose.msra.mxu0 0
        %2594 = vmatprep.subr.bf16.mxu0 0
        %2595 = vmatpush1.bf16.xpose.msra.mxu0 0
        %2596 = vmatprep.subr.bf16.mxu0 0
        %2597 = vmatpush1.bf16.xpose.msra.mxu0 0
        %2598 = vmatprep.subr.bf16.mxu0 0
        %2599 = vmatpush1.bf16.xpose.msra.mxu0 0
        %2600 = vmatprep.subr.bf16.mxu0 0
        %2601 = vmatpush1.bf16.xpose.msra.mxu0 0
        %2602 = vmatprep.subr.bf16.mxu0 0
        %2603 = vmatpush1.bf16.xpose.msra.mxu0 0
        %2604 = vmatprep.subr.bf16.mxu0 0
        %2605 = vmatpush1.bf16.xpose.msra.mxu0 0
        %2606 = vmatprep.subr.bf16.mxu0 0
        %2607 = vmatpush1.bf16.xpose.msra.mxu0 0
        %2608 = vmatprep.mubr.bf16.mxu0 0
        %2609 = vmatmul.mubr.bf16.gmra.mrb[0].mxu0 %v2571
        %v2610 = vpop.f32.mrb[0].mxu0
        %v2611 = vadd.f32 %v276, %v2610
        %v2612 = vpop.f32.mrb[0].mxu0
        %v2613 = vpop.f32.mrb[0].mxu0
        %v2614 = vadd.f32 %v276, %v2613
        %v2615 = vpop.f32.mrb[0].mxu0
        %2616 = vdwg.mxu0
        %v2617 = vsel %vm712, %v2611, -inf
        %2618 = vmax.xlane.f32.xlu0 %v2617
        %v2619 = vpop.xlane.xlu0 %2618
        %v2620 = vsel %vm712, %v2614, -inf
        %2621 = vmax.xlane.f32.xlu0 %v2620
        %v2622 = vpop.xlane.xlu0 %2621
        %v2623 = vsub.f32 %v2611, %v2619
        %v2624 = vsub.f32 %v2614, %v2622
        %v2625 = vmul.f32 %v2623, 1.442695
        %v2626 = vpow.pop %v2625
        %v2627 = vmul.f32 %v2624, 1.442695
        %v2628 = vpow.pop %v2627
        %v2629 = vsel %vm712, %v2626, 0.0
        %2630 = vadd.xlane.f32.xlu0 %v2629
        %v2631 = vpop.xlane.xlu0 %2630
        %v2632 = vsel %vm712, %v2628, 0.0
        %2633 = vadd.xlane.f32.xlu0 %v2632
        %v2634 = vpop.xlane.xlu0 %2633
        %v2635 = vrcp.pop %v2631
        %v2636 = vrcp.pop %v2634
        %v2637 = vmul.f32 %v2626, %v2635
        %v2638 = vmul.f32 %v2628, %v2636
        %v2639 = vpack.c.bf16 %v2638, %v2637
        %2640 = vrot.lane.b32.xlu0 %v2327, 64
        %v2641 = vpop.permute.xlu0 %2640
        %v2644 = vsel %vm712, %v2639, 0
        %2646 = vmatprep.subr.bf16.mxu0 0
        %2647 = vmatpush1.bf16.msra.mxu0 %v2641
        %2648 = vmatprep.subr.bf16.mxu0 0
        %2649 = vmatpush1.bf16.msra.mxu0 0
        %2650 = vmatprep.subr.bf16.mxu0 0
        %2651 = vmatpush1.bf16.msra.mxu0 0
        %2652 = vmatprep.subr.bf16.mxu0 0
        %2653 = vmatpush1.bf16.msra.mxu0 0
        %2654 = vmatprep.subr.bf16.mxu0 0
        %2655 = vmatpush1.bf16.msra.mxu0 0
        %2656 = vmatprep.subr.bf16.mxu0 0
        %2657 = vmatpush1.bf16.msra.mxu0 0
        %2658 = vmatprep.subr.bf16.mxu0 0
        %2659 = vmatpush1.bf16.msra.mxu0 0
        %2660 = vmatprep.subr.bf16.mxu0 0
        %2661 = vmatpush1.bf16.msra.mxu0 0
        %2662 = vmatprep.subr.bf16.mxu0 0
        %2663 = vmatpush1.bf16.msra.mxu0 0
        %2664 = vmatprep.subr.bf16.mxu0 0
        %2665 = vmatpush1.bf16.msra.mxu0 0
        %2666 = vmatprep.subr.bf16.mxu0 0
        %2667 = vmatpush1.bf16.msra.mxu0 0
        %2668 = vmatprep.subr.bf16.mxu0 0
        %2669 = vmatpush1.bf16.msra.mxu0 0
        %2670 = vmatprep.subr.bf16.mxu0 0
        %2671 = vmatpush1.bf16.msra.mxu0 0
        %2672 = vmatprep.subr.bf16.mxu0 0
        %2673 = vmatpush1.bf16.msra.mxu0 0
        %2674 = vmatprep.subr.bf16.mxu0 0
        %2675 = vmatpush1.bf16.msra.mxu0 0
        %2676 = vmatprep.subr.bf16.mxu0 0
        %2677 = vmatpush1.bf16.msra.mxu0 0
        %2678 = vmatprep.mubr.bf16.mxu0 0
        %2679 = vmatmul.mubr.bf16.gmra.mrb[0].mxu0 %v2644
        %v2680 = vpop.f32.mrb[0].mxu0
        %v2681 = vadd.f32 0.0, %v2680
        %v2682 = vpop.f32.mrb[0].mxu0
        %v2683 = vpop.f32.mrb[0].mxu0
        %v2684 = vadd.f32 0.0, %v2683
        %v2685 = vpop.f32.mrb[0].mxu0
        %2686 = vdwg.mxu0
        %2687 = vrot.lane.b32.xlu0 %v2325, 32
        %v2688 = vpop.permute.xlu0 %2687
        %2689 = vrot.lane.b32.xlu0 %v2326, 32
        %v2690 = vpop.permute.xlu0 %2689
        %v2692 = vsel %vm664, %v2688, 0
        %v2695 = vsel %vm664, %v2690, 0
        %2697 = vmatprep.subr.bf16.mxu0 0
        %2698 = vmatpush1.bf16.xpose.msra.mxu0 %v2695
        %2699 = vmatprep.subr.bf16.mxu0 0
        %2700 = vmatpush1.bf16.xpose.msra.mxu0 0
        %2701 = vmatprep.subr.bf16.mxu0 0
        %2702 = vmatpush1.bf16.xpose.msra.mxu0 0
        %2703 = vmatprep.subr.bf16.mxu0 0
        %2704 = vmatpush1.bf16.xpose.msra.mxu0 0
        %2705 = vmatprep.subr.bf16.mxu0 0
        %2706 = vmatpush1.bf16.xpose.msra.mxu0 0
        %2707 = vmatprep.subr.bf16.mxu0 0
        %2708 = vmatpush1.bf16.xpose.msra.mxu0 0
        %2709 = vmatprep.subr.bf16.mxu0 0
        %2710 = vmatpush1.bf16.xpose.msra.mxu0 0
        %2711 = vmatprep.subr.bf16.mxu0 0
        %2712 = vmatpush1.bf16.xpose.msra.mxu0 0
        %2713 = vmatprep.subr.bf16.mxu0 0
        %2714 = vmatpush1.bf16.xpose.msra.mxu0 0
        %2715 = vmatprep.subr.bf16.mxu0 0
        %2716 = vmatpush1.bf16.xpose.msra.mxu0 0
        %2717 = vmatprep.subr.bf16.mxu0 0
        %2718 = vmatpush1.bf16.xpose.msra.mxu0 0
        %2719 = vmatprep.subr.bf16.mxu0 0
        %2720 = vmatpush1.bf16.xpose.msra.mxu0 0
        %2721 = vmatprep.subr.bf16.mxu0 0
        %2722 = vmatpush1.bf16.xpose.msra.mxu0 0
        %2723 = vmatprep.subr.bf16.mxu0 0
        %2724 = vmatpush1.bf16.xpose.msra.mxu0 0
        %2725 = vmatprep.subr.bf16.mxu0 0
        %2726 = vmatpush1.bf16.xpose.msra.mxu0 0
        %2727 = vmatprep.subr.bf16.mxu0 0
        %2728 = vmatpush1.bf16.xpose.msra.mxu0 0
        %2729 = vmatprep.mubr.bf16.mxu0 0
        %2730 = vmatmul.mubr.bf16.gmra.mrb[0].mxu0 %v2692
        %v2731 = vpop.f32.mrb[0].mxu0
        %v2732 = vadd.f32 %v276, %v2731
        %v2733 = vpop.f32.mrb[0].mxu0
        %v2734 = vpop.f32.mrb[0].mxu0
        %v2735 = vadd.f32 %v276, %v2734
        %v2736 = vpop.f32.mrb[0].mxu0
        %2737 = vdwg.mxu0
        %v2738 = vsel %vm712, %v2732, -inf
        %2739 = vmax.xlane.f32.xlu0 %v2738
        %v2740 = vpop.xlane.xlu0 %2739
        %v2741 = vsel %vm712, %v2735, -inf
        %2742 = vmax.xlane.f32.xlu0 %v2741
        %v2743 = vpop.xlane.xlu0 %2742
        %v2744 = vsub.f32 %v2732, %v2740
        %v2745 = vsub.f32 %v2735, %v2743
        %v2746 = vmul.f32 %v2744, 1.442695
        %v2747 = vpow.pop %v2746
        %v2748 = vmul.f32 %v2745, 1.442695
        %v2749 = vpow.pop %v2748
        %v2750 = vsel %vm712, %v2747, 0.0
        %2751 = vadd.xlane.f32.xlu0 %v2750
        %v2752 = vpop.xlane.xlu0 %2751
        %v2753 = vsel %vm712, %v2749, 0.0
        %2754 = vadd.xlane.f32.xlu0 %v2753
        %v2755 = vpop.xlane.xlu0 %2754
        %v2756 = vrcp.pop %v2752
        %v2757 = vrcp.pop %v2755
        %v2758 = vmul.f32 %v2747, %v2756
        %v2759 = vmul.f32 %v2749, %v2757
        %v2760 = vpack.c.bf16 %v2759, %v2758
        %2761 = vrot.lane.b32.xlu0 %v2327, 32
        %v2762 = vpop.permute.xlu0 %2761
        %v2765 = vsel %vm712, %v2760, 0
        %2767 = vmatprep.subr.bf16.mxu0 0
        %2768 = vmatpush1.bf16.msra.mxu0 %v2762
        %2769 = vmatprep.subr.bf16.mxu0 0
        %2770 = vmatpush1.bf16.msra.mxu0 0
        %2771 = vmatprep.subr.bf16.mxu0 0
        %2772 = vmatpush1.bf16.msra.mxu0 0
        %2773 = vmatprep.subr.bf16.mxu0 0
        %2774 = vmatpush1.bf16.msra.mxu0 0
        %2775 = vmatprep.subr.bf16.mxu0 0
        %2776 = vmatpush1.bf16.msra.mxu0 0
        %2777 = vmatprep.subr.bf16.mxu0 0
        %2778 = vmatpush1.bf16.msra.mxu0 0
        %2779 = vmatprep.subr.bf16.mxu0 0
        %2780 = vmatpush1.bf16.msra.mxu0 0
        %2781 = vmatprep.subr.bf16.mxu0 0
        %2782 = vmatpush1.bf16.msra.mxu0 0
        %2783 = vmatprep.subr.bf16.mxu0 0
        %2784 = vmatpush1.bf16.msra.mxu0 0
        %2785 = vmatprep.subr.bf16.mxu0 0
        %2786 = vmatpush1.bf16.msra.mxu0 0
        %2787 = vmatprep.subr.bf16.mxu0 0
        %2788 = vmatpush1.bf16.msra.mxu0 0
        %2789 = vmatprep.subr.bf16.mxu0 0
        %2790 = vmatpush1.bf16.msra.mxu0 0
        %2791 = vmatprep.subr.bf16.mxu0 0
        %2792 = vmatpush1.bf16.msra.mxu0 0
        %2793 = vmatprep.subr.bf16.mxu0 0
        %2794 = vmatpush1.bf16.msra.mxu0 0
        %2795 = vmatprep.subr.bf16.mxu0 0
        %2796 = vmatpush1.bf16.msra.mxu0 0
        %2797 = vmatprep.subr.bf16.mxu0 0
        %2798 = vmatpush1.bf16.msra.mxu0 0
        %2799 = vmatprep.mubr.bf16.mxu0 0
        %2800 = vmatmul.mubr.bf16.gmra.mrb[0].mxu0 %v2765
        %v2801 = vpop.f32.mrb[0].mxu0
        %v2802 = vadd.f32 0.0, %v2801
        %v2803 = vpop.f32.mrb[0].mxu0
        %v2804 = vpop.f32.mrb[0].mxu0
        %v2805 = vadd.f32 0.0, %v2804
        %v2806 = vpop.f32.mrb[0].mxu0
        %2807 = vdwg.mxu0
        %2810 = vrot.lane.b32.xlu0 %v2560, 32
        %v2811 = vpop.permute.xlu0 %2810
        %2812 = vrot.lane.b32.xlu0 %v2563, 32
        %v2813 = vpop.permute.xlu0 %2812
        %2818 = vrot.lane.b32.xlu0 %v2681, 64
        %v2819 = vpop.permute.xlu0 %2818
        %2820 = vrot.lane.b32.xlu0 %v2684, 64
        %v2821 = vpop.permute.xlu0 %2820
        %2826 = vrot.lane.b32.xlu0 %v2802, 96
        %v2827 = vpop.permute.xlu0 %2826
        %2828 = vrot.lane.b32.xlu0 %v2805, 96
        %v2829 = vpop.permute.xlu0 %2828
        %v2832 = vsel %vm664, %v2436, %v2811
        %v2833 = vsel %vm664, %v2439, %v2813
        %v2834 = vsel %vm1172, %v2832, %v2819
        %v2835 = vsel %vm1172, %v2833, %v2821
        %v2836 = vsel %vm1175, %v2834, %v2827
        %v2837 = vsel %vm1175, %v2835, %v2829
        %v2838 = vpack.c.bf16 %v2837, %v2836
        %v2855 = vunpack.c.l.b16 %v1974
        %v2856 = vunpack.c.l.b16 %v1975
        %v2857 = vunpack.c.l.b16 %v1976
        %v2858 = vunpack.c.l.b16 %v1977
        %v2859 = vunpack.c.l.b16 %v1978
        %v2860 = vunpack.c.l.b16 %v1979
        %v2861 = vunpack.c.l.b16 %v1980
        %v2862 = vunpack.c.l.b16 %v1981
        %v2863 = vunpack.c.l.b16 %v1982
        %v2864 = vunpack.c.l.b16 %v1983
        %v2865 = vunpack.c.l.b16 %v1984
        %v2866 = vunpack.c.l.b16 %v1985
        %v2867 = vunpack.c.l.b16 %v1986
        %v2868 = vunpack.c.l.b16 %v1987
        %v2869 = vunpack.c.l.b16 %v1988
        %v2870 = vunpack.c.l.b16 %v1989
        %v2871 = vpack.c.b16 %v2856, %v2855
        %v2872 = vpack.c.b16 %v2858, %v2857
        %v2873 = vpack.c.b16 %v2860, %v2859
        %v2874 = vpack.c.b16 %v2862, %v2861
        %v2875 = vpack.c.b16 %v2864, %v2863
        %v2876 = vpack.c.b16 %v2866, %v2865
        %v2877 = vpack.c.b16 %v2868, %v2867
        %v2878 = vpack.c.b16 %v2870, %v2869
        %2887 = vmatprep.subr.bf16.mxu0 0
        %2888 = vmatpush1.bf16.msra.mxu0 %v2871
        %2889 = vmatprep.subr.bf16.mxu0 0
        %2890 = vmatpush1.bf16.msra.mxu0 %v2872
        %2891 = vmatprep.subr.bf16.mxu0 0
        %2892 = vmatpush1.bf16.msra.mxu0 %v2873
        %2893 = vmatprep.subr.bf16.mxu0 0
        %2894 = vmatpush1.bf16.msra.mxu0 %v2874
        %2895 = vmatprep.subr.bf16.mxu0 0
        %2896 = vmatpush1.bf16.msra.mxu0 %v2875
        %2897 = vmatprep.subr.bf16.mxu0 0
        %2898 = vmatpush1.bf16.msra.mxu0 %v2876
        %2899 = vmatprep.subr.bf16.mxu0 0
        %2900 = vmatpush1.bf16.msra.mxu0 %v2877
        %2901 = vmatprep.subr.bf16.mxu0 0
        %2902 = vmatpush1.bf16.msra.mxu0 %v2878
        %2903 = vmatprep.subr.bf16.mxu0 0
        %2904 = vmatpush1.bf16.msra.mxu0 0
        %2905 = vmatprep.subr.bf16.mxu0 0
        %2906 = vmatpush1.bf16.msra.mxu0 0
        %2907 = vmatprep.subr.bf16.mxu0 0
        %2908 = vmatpush1.bf16.msra.mxu0 0
        %2909 = vmatprep.subr.bf16.mxu0 0
        %2910 = vmatpush1.bf16.msra.mxu0 0
        %2911 = vmatprep.subr.bf16.mxu0 0
        %2912 = vmatpush1.bf16.msra.mxu0 0
        %2913 = vmatprep.subr.bf16.mxu0 0
        %2914 = vmatpush1.bf16.msra.mxu0 0
        %2915 = vmatprep.subr.bf16.mxu0 0
        %2916 = vmatpush1.bf16.msra.mxu0 0
        %2917 = vmatprep.subr.bf16.mxu0 0
        %2918 = vmatpush1.bf16.msra.mxu0 0
        %2919 = vmatprep.mubr.bf16.mxu0 0
        %2920 = vmatmul.mubr.bf16.gmra.mrb[0].mxu0 %v2838
        %v2921 = vpop.f32.mrb[0].mxu0
        %v2922 = vadd.f32 %v2088, %v2921
        %v2923 = vpop.f32.mrb[0].mxu0
        %v2924 = vpop.f32.mrb[0].mxu0
        %v2925 = vadd.f32 %v2088, %v2924
        %v2926 = vpop.f32.mrb[0].mxu0
        %2927 = vdwg.mxu0
        %v2928 = vadd.f32 %v1940, %v2922
        %v2929 = vadd.f32 %v1941, %v2925
        %2930 = vadd.xlane.f32.xlu0 %v2928
        %v2931 = vpop.xlane.xlu0 %2930
        %2932 = vadd.xlane.f32.xlu0 %v2929
        %v2933 = vpop.xlane.xlu0 %2932
        %v2934 = vmul.f32 %v2931, %v248
        %v2935 = vmul.f32 %v2933, %v248
        %v2936 = vsub.f32 %v2928, %v2934
        %v2937 = vsub.f32 %v2929, %v2935
        %v2938 = vmul.f32 %v2936, %v2936
        %v2939 = vmul.f32 %v2937, %v2937
        %2940 = vadd.xlane.f32.xlu0 %v2938
        %v2941 = vpop.xlane.xlu0 %2940
        %2942 = vadd.xlane.f32.xlu0 %v2939
        %v2943 = vpop.xlane.xlu0 %2942
        %v2944 = vmul.f32 %v2941, %v248
        %v2945 = vmul.f32 %v2943, %v248
        %v2946 = vadd.f32 %v2944, 1e-12
        %v2947 = vadd.f32 %v2945, 1e-12
        %v2948 = vrsqrt.pop %v2946
        %v2949 = vrsqrt.pop %v2947
        %v2950 = vmul.f32 %v2936, %v2948
        %v2951 = vmul.f32 %v2937, %v2949
        %v2952 = vmul.f32 %v2950, %v2089
        %v2953 = vmul.f32 %v2951, %v2089
        %v2954 = vadd.f32 %v2952, %v2090
        %v2955 = vadd.f32 %v2953, %v2090
        %v2956 = vpack.c.bf16 %v2955, %v2954
        %v2958 = vlaneseq
        %v2959 = vshrl.u32 %v2958, 7
        %v2960 = vsub.s32 0, %v2959
        %v2961 = vrot.slane %v2092, %v2960
        %v2962 = vlaneseq
        %v2963 = vshrl.u32 %v2962, 7
        %v2964 = vsub.s32 1, %v2963
        %v2965 = vrot.slane %v2092, %v2964
        %v2966 = vlaneseq
        %v2967 = vshrl.u32 %v2966, 7
        %v2968 = vsub.s32 2, %v2967
        %v2969 = vrot.slane %v2092, %v2968
        %v2970 = vlaneseq
        %v2971 = vshrl.u32 %v2970, 7
        %v2972 = vsub.s32 3, %v2971
        %v2973 = vrot.slane %v2092, %v2972
        %v3010 = vunpack.c.l.b16 %v1990
        %v3011 = vunpack.c.h.b16 %v1990
        %v3012 = vunpack.c.l.b16 %v1991
        %v3013 = vunpack.c.h.b16 %v1991
        %v3014 = vunpack.c.l.b16 %v1992
        %v3015 = vunpack.c.h.b16 %v1992
        %v3016 = vunpack.c.l.b16 %v1993
        %v3017 = vunpack.c.h.b16 %v1993
        %v3018 = vunpack.c.l.b16 %v1994
        %v3019 = vunpack.c.h.b16 %v1994
        %v3020 = vunpack.c.l.b16 %v1995
        %v3021 = vunpack.c.h.b16 %v1995
        %v3022 = vunpack.c.l.b16 %v1996
        %v3023 = vunpack.c.h.b16 %v1996
        %v3024 = vunpack.c.l.b16 %v1997
        %v3025 = vunpack.c.h.b16 %v1997
        %v3026 = vunpack.c.l.b16 %v1998
        %v3027 = vunpack.c.h.b16 %v1998
        %v3028 = vunpack.c.l.b16 %v1999
        %v3029 = vunpack.c.h.b16 %v1999
        %v3030 = vunpack.c.l.b16 %v2000
        %v3031 = vunpack.c.h.b16 %v2000
        %v3032 = vunpack.c.l.b16 %v2001
        %v3033 = vunpack.c.h.b16 %v2001
        %v3034 = vunpack.c.l.b16 %v2002
        %v3035 = vunpack.c.h.b16 %v2002
        %v3036 = vunpack.c.l.b16 %v2003
        %v3037 = vunpack.c.h.b16 %v2003
        %v3038 = vunpack.c.l.b16 %v2004
        %v3039 = vunpack.c.h.b16 %v2004
        %v3040 = vunpack.c.l.b16 %v2005
        %v3041 = vunpack.c.h.b16 %v2005
        %v3042 = vunpack.c.l.b16 %v2006
        %v3043 = vunpack.c.h.b16 %v2006
        %v3044 = vunpack.c.l.b16 %v2007
        %v3045 = vunpack.c.h.b16 %v2007
        %v3046 = vunpack.c.l.b16 %v2008
        %v3047 = vunpack.c.h.b16 %v2008
        %v3048 = vunpack.c.l.b16 %v2009
        %v3049 = vunpack.c.h.b16 %v2009
        %v3050 = vunpack.c.l.b16 %v2010
        %v3051 = vunpack.c.h.b16 %v2010
        %v3052 = vunpack.c.l.b16 %v2011
        %v3053 = vunpack.c.h.b16 %v2011
        %v3054 = vunpack.c.l.b16 %v2012
        %v3055 = vunpack.c.h.b16 %v2012
        %v3056 = vunpack.c.l.b16 %v2013
        %v3057 = vunpack.c.h.b16 %v2013
        %v3058 = vunpack.c.l.b16 %v2014
        %v3059 = vunpack.c.h.b16 %v2014
        %v3060 = vunpack.c.l.b16 %v2015
        %v3061 = vunpack.c.h.b16 %v2015
        %v3062 = vunpack.c.l.b16 %v2016
        %v3063 = vunpack.c.h.b16 %v2016
        %v3064 = vunpack.c.l.b16 %v2017
        %v3065 = vunpack.c.h.b16 %v2017
        %v3066 = vunpack.c.l.b16 %v2018
        %v3067 = vunpack.c.h.b16 %v2018
        %v3068 = vunpack.c.l.b16 %v2019
        %v3069 = vunpack.c.h.b16 %v2019
        %v3070 = vunpack.c.l.b16 %v2020
        %v3071 = vunpack.c.h.b16 %v2020
        %v3072 = vunpack.c.l.b16 %v2021
        %v3073 = vunpack.c.h.b16 %v2021
        %v3074 = vpack.c.b16 %v3014, %v3010
        %v3075 = vpack.c.b16 %v3015, %v3011
        %v3076 = vpack.c.b16 %v3016, %v3012
        %v3077 = vpack.c.b16 %v3017, %v3013
        %v3078 = vpack.c.b16 %v3022, %v3018
        %v3079 = vpack.c.b16 %v3023, %v3019
        %v3080 = vpack.c.b16 %v3024, %v3020
        %v3081 = vpack.c.b16 %v3025, %v3021
        %v3082 = vpack.c.b16 %v3030, %v3026
        %v3083 = vpack.c.b16 %v3031, %v3027
        %v3084 = vpack.c.b16 %v3032, %v3028
        %v3085 = vpack.c.b16 %v3033, %v3029
        %v3086 = vpack.c.b16 %v3038, %v3034
        %v3087 = vpack.c.b16 %v3039, %v3035
        %v3088 = vpack.c.b16 %v3040, %v3036
        %v3089 = vpack.c.b16 %v3041, %v3037
        %v3090 = vpack.c.b16 %v3046, %v3042
        %v3091 = vpack.c.b16 %v3047, %v3043
        %v3092 = vpack.c.b16 %v3048, %v3044
        %v3093 = vpack.c.b16 %v3049, %v3045
        %v3094 = vpack.c.b16 %v3054, %v3050
        %v3095 = vpack.c.b16 %v3055, %v3051
        %v3096 = vpack.c.b16 %v3056, %v3052
        %v3097 = vpack.c.b16 %v3057, %v3053
        %v3098 = vpack.c.b16 %v3062, %v3058
        %v3099 = vpack.c.b16 %v3063, %v3059
        %v3100 = vpack.c.b16 %v3064, %v3060
        %v3101 = vpack.c.b16 %v3065, %v3061
        %v3102 = vpack.c.b16 %v3070, %v3066
        %v3103 = vpack.c.b16 %v3071, %v3067
        %v3104 = vpack.c.b16 %v3072, %v3068
        %v3105 = vpack.c.b16 %v3073, %v3069
        %3138 = vmatprep.subr.bf16.mxu0 %v3075
        %3139 = vmatpush1.bf16.msra.mxu0 %v3074
        %3140 = vmatprep.subr.bf16.mxu0 %v3079
        %3141 = vmatpush1.bf16.msra.mxu0 %v3078
        %3142 = vmatprep.subr.bf16.mxu0 %v3083
        %3143 = vmatpush1.bf16.msra.mxu0 %v3082
        %3144 = vmatprep.subr.bf16.mxu0 %v3087
        %3145 = vmatpush1.bf16.msra.mxu0 %v3086
        %3146 = vmatprep.subr.bf16.mxu0 %v3091
        %3147 = vmatpush1.bf16.msra.mxu0 %v3090
        %3148 = vmatprep.subr.bf16.mxu0 %v3095
        %3149 = vmatpush1.bf16.msra.mxu0 %v3094
        %3150 = vmatprep.subr.bf16.mxu0 %v3099
        %3151 = vmatpush1.bf16.msra.mxu0 %v3098
        %3152 = vmatprep.subr.bf16.mxu0 %v3103
        %3153 = vmatpush1.bf16.msra.mxu0 %v3102
        %3154 = vmatprep.subr.bf16.mxu0 0
        %3155 = vmatpush1.bf16.msra.mxu0 0
        %3156 = vmatprep.subr.bf16.mxu0 0
        %3157 = vmatpush1.bf16.msra.mxu0 0
        %3158 = vmatprep.subr.bf16.mxu0 0
        %3159 = vmatpush1.bf16.msra.mxu0 0
        %3160 = vmatprep.subr.bf16.mxu0 0
        %3161 = vmatpush1.bf16.msra.mxu0 0
        %3162 = vmatprep.subr.bf16.mxu0 0
        %3163 = vmatpush1.bf16.msra.mxu0 0
        %3164 = vmatprep.subr.bf16.mxu0 0
        %3165 = vmatpush1.bf16.msra.mxu0 0
        %3166 = vmatprep.subr.bf16.mxu0 0
        %3167 = vmatpush1.bf16.msra.mxu0 0
        %3168 = vmatprep.subr.bf16.mxu0 0
        %3169 = vmatpush1.bf16.msra.mxu0 0
        %3170 = vmatprep.mubr.bf16.mxu0 0
        %3171 = vmatmul.mubr.bf16.gmra.mrb[0].mxu0 %v2956
        %v3172 = vpop.f32.mrb[0].mxu0
        %v3173 = vadd.f32 %v2961, %v3172
        %v3174 = vpop.f32.mrb[0].mxu0
        %v3175 = vadd.f32 %v2965, %v3174
        %v3176 = vpop.f32.mrb[0].mxu0
        %v3177 = vadd.f32 %v2961, %v3176
        %v3178 = vpop.f32.mrb[0].mxu0
        %v3179 = vadd.f32 %v2965, %v3178
        %3180 = vdwg.mxu0
        %3181 = vmatprep.subr.bf16.mxu0 %v3077
        %3182 = vmatpush1.bf16.msra.mxu0 %v3076
        %3183 = vmatprep.subr.bf16.mxu0 %v3081
        %3184 = vmatpush1.bf16.msra.mxu0 %v3080
        %3185 = vmatprep.subr.bf16.mxu0 %v3085
        %3186 = vmatpush1.bf16.msra.mxu0 %v3084
        %3187 = vmatprep.subr.bf16.mxu0 %v3089
        %3188 = vmatpush1.bf16.msra.mxu0 %v3088
        %3189 = vmatprep.subr.bf16.mxu0 %v3093
        %3190 = vmatpush1.bf16.msra.mxu0 %v3092
        %3191 = vmatprep.subr.bf16.mxu0 %v3097
        %3192 = vmatpush1.bf16.msra.mxu0 %v3096
        %3193 = vmatprep.subr.bf16.mxu0 %v3101
        %3194 = vmatpush1.bf16.msra.mxu0 %v3100
        %3195 = vmatprep.subr.bf16.mxu0 %v3105
        %3196 = vmatpush1.bf16.msra.mxu0 %v3104
        %3197 = vmatprep.subr.bf16.mxu0 0
        %3198 = vmatpush1.bf16.msra.mxu0 0
        %3199 = vmatprep.subr.bf16.mxu0 0
        %3200 = vmatpush1.bf16.msra.mxu0 0
        %3201 = vmatprep.subr.bf16.mxu0 0
        %3202 = vmatpush1.bf16.msra.mxu0 0
        %3203 = vmatprep.subr.bf16.mxu0 0
        %3204 = vmatpush1.bf16.msra.mxu0 0
        %3205 = vmatprep.subr.bf16.mxu0 0
        %3206 = vmatpush1.bf16.msra.mxu0 0
        %3207 = vmatprep.subr.bf16.mxu0 0
        %3208 = vmatpush1.bf16.msra.mxu0 0
        %3209 = vmatprep.subr.bf16.mxu0 0
        %3210 = vmatpush1.bf16.msra.mxu0 0
        %3211 = vmatprep.subr.bf16.mxu0 0
        %3212 = vmatpush1.bf16.msra.mxu0 0
        %3213 = vmatprep.mubr.bf16.mxu0 0
        %3214 = vmatmul.mubr.bf16.gmra.mrb[0].mxu0 %v2956
        %v3215 = vpop.f32.mrb[0].mxu0
        %v3216 = vadd.f32 %v2969, %v3215
        %v3217 = vpop.f32.mrb[0].mxu0
        %v3218 = vadd.f32 %v2973, %v3217
        %v3219 = vpop.f32.mrb[0].mxu0
        %v3220 = vadd.f32 %v2969, %v3219
        %v3221 = vpop.f32.mrb[0].mxu0
        %v3222 = vadd.f32 %v2973, %v3221
        %3223 = vdwg.mxu0
        %v3224 = vmul.f32 %v3173, 0.5
        %v3225 = vmul.f32 %v3175, 0.5
        %v3226 = vmul.f32 %v3216, 0.5
        %v3227 = vmul.f32 %v3218, 0.5
        %v3228 = vmul.f32 %v3177, 0.5
        %v3229 = vmul.f32 %v3179, 0.5
        %v3230 = vmul.f32 %v3220, 0.5
        %v3231 = vmul.f32 %v3222, 0.5
        %v3232 = vmul.f32 %v3173, 0.044715
        %v3233 = vmul.f32 %v3175, 0.044715
        %v3234 = vmul.f32 %v3216, 0.044715
        %v3235 = vmul.f32 %v3218, 0.044715
        %v3236 = vmul.f32 %v3177, 0.044715
        %v3237 = vmul.f32 %v3179, 0.044715
        %v3238 = vmul.f32 %v3220, 0.044715
        %v3239 = vmul.f32 %v3222, 0.044715
        %v3240 = vmul.f32 %v3232, %v3173
        %v3241 = vmul.f32 %v3233, %v3175
        %v3242 = vmul.f32 %v3234, %v3216
        %v3243 = vmul.f32 %v3235, %v3218
        %v3244 = vmul.f32 %v3236, %v3177
        %v3245 = vmul.f32 %v3237, %v3179
        %v3246 = vmul.f32 %v3238, %v3220
        %v3247 = vmul.f32 %v3239, %v3222
        %v3248 = vmul.f32 %v3240, %v3173
        %v3249 = vmul.f32 %v3241, %v3175
        %v3250 = vmul.f32 %v3242, %v3216
        %v3251 = vmul.f32 %v3243, %v3218
        %v3252 = vmul.f32 %v3244, %v3177
        %v3253 = vmul.f32 %v3245, %v3179
        %v3254 = vmul.f32 %v3246, %v3220
        %v3255 = vmul.f32 %v3247, %v3222
        %v3256 = vadd.f32 %v3173, %v3248
        %v3257 = vadd.f32 %v3175, %v3249
        %v3258 = vadd.f32 %v3216, %v3250
        %v3259 = vadd.f32 %v3218, %v3251
        %v3260 = vadd.f32 %v3177, %v3252
        %v3261 = vadd.f32 %v3179, %v3253
        %v3262 = vadd.f32 %v3220, %v3254
        %v3263 = vadd.f32 %v3222, %v3255
        %v3264 = vmul.f32 %v3256, 0.7978846
        %v3265 = vmul.f32 %v3257, 0.7978846
        %v3266 = vmul.f32 %v3258, 0.7978846
        %v3267 = vmul.f32 %v3259, 0.7978846
        %v3268 = vmul.f32 %v3260, 0.7978846
        %v3269 = vmul.f32 %v3261, 0.7978846
        %v3270 = vmul.f32 %v3262, 0.7978846
        %v3271 = vmul.f32 %v3263, 0.7978846
        %v3272 = vtanh.pop %v3264
        %v3273 = vtanh.pop %v3265
        %v3274 = vtanh.pop %v3266
        %v3275 = vtanh.pop %v3267
        %v3276 = vtanh.pop %v3268
        %v3277 = vtanh.pop %v3269
        %v3278 = vtanh.pop %v3270
        %v3279 = vtanh.pop %v3271
        %v3280 = vadd.f32 %v3272, 1.0
        %v3281 = vadd.f32 %v3273, 1.0
        %v3282 = vadd.f32 %v3274, 1.0
        %v3283 = vadd.f32 %v3275, 1.0
        %v3284 = vadd.f32 %v3276, 1.0
        %v3285 = vadd.f32 %v3277, 1.0
        %v3286 = vadd.f32 %v3278, 1.0
        %v3287 = vadd.f32 %v3279, 1.0
        %v3288 = vmul.f32 %v3224, %v3280
        %v3289 = vmul.f32 %v3225, %v3281
        %v3290 = vmul.f32 %v3226, %v3282
        %v3291 = vmul.f32 %v3227, %v3283
        %v3292 = vmul.f32 %v3228, %v3284
        %v3293 = vmul.f32 %v3229, %v3285
        %v3294 = vmul.f32 %v3230, %v3286
        %v3295 = vmul.f32 %v3231, %v3287
        %v3296 = vpack.c.bf16 %v3292, %v3288
        %v3297 = vpack.c.bf16 %v3293, %v3289
        %v3298 = vpack.c.bf16 %v3294, %v3290
        %v3299 = vpack.c.bf16 %v3295, %v3291
        %v3364 = vunpack.c.l.b16 %v2022
        %v3365 = vunpack.c.l.b16 %v2023
        %v3366 = vunpack.c.l.b16 %v2024
        %v3367 = vunpack.c.l.b16 %v2025
        %v3368 = vunpack.c.l.b16 %v2026
        %v3369 = vunpack.c.l.b16 %v2027
        %v3370 = vunpack.c.l.b16 %v2028
        %v3371 = vunpack.c.l.b16 %v2029
        %v3372 = vunpack.c.l.b16 %v2030
        %v3373 = vunpack.c.l.b16 %v2031
        %v3374 = vunpack.c.l.b16 %v2032
        %v3375 = vunpack.c.l.b16 %v2033
        %v3376 = vunpack.c.l.b16 %v2034
        %v3377 = vunpack.c.l.b16 %v2035
        %v3378 = vunpack.c.l.b16 %v2036
        %v3379 = vunpack.c.l.b16 %v2037
        %v3380 = vunpack.c.l.b16 %v2038
        %v3381 = vunpack.c.l.b16 %v2039
        %v3382 = vunpack.c.l.b16 %v2040
        %v3383 = vunpack.c.l.b16 %v2041
        %v3384 = vunpack.c.l.b16 %v2042
        %v3385 = vunpack.c.l.b16 %v2043
        %v3386 = vunpack.c.l.b16 %v2044
        %v3387 = vunpack.c.l.b16 %v2045
        %v3388 = vunpack.c.l.b16 %v2046
        %v3389 = vunpack.c.l.b16 %v2047
        %v3390 = vunpack.c.l.b16 %v2048
        %v3391 = vunpack.c.l.b16 %v2049
        %v3392 = vunpack.c.l.b16 %v2050
        %v3393 = vunpack.c.l.b16 %v2051
        %v3394 = vunpack.c.l.b16 %v2052
        %v3395 = vunpack.c.l.b16 %v2053
        %v3396 = vunpack.c.l.b16 %v2054
        %v3397 = vunpack.c.l.b16 %v2055
        %v3398 = vunpack.c.l.b16 %v2056
        %v3399 = vunpack.c.l.b16 %v2057
        %v3400 = vunpack.c.l.b16 %v2058
        %v3401 = vunpack.c.l.b16 %v2059
        %v3402 = vunpack.c.l.b16 %v2060
        %v3403 = vunpack.c.l.b16 %v2061
        %v3404 = vunpack.c.l.b16 %v2062
        %v3405 = vunpack.c.l.b16 %v2063
        %v3406 = vunpack.c.l.b16 %v2064
        %v3407 = vunpack.c.l.b16 %v2065
        %v3408 = vunpack.c.l.b16 %v2066
        %v3409 = vunpack.c.l.b16 %v2067
        %v3410 = vunpack.c.l.b16 %v2068
        %v3411 = vunpack.c.l.b16 %v2069
        %v3412 = vunpack.c.l.b16 %v2070
        %v3413 = vunpack.c.l.b16 %v2071
        %v3414 = vunpack.c.l.b16 %v2072
        %v3415 = vunpack.c.l.b16 %v2073
        %v3416 = vunpack.c.l.b16 %v2074
        %v3417 = vunpack.c.l.b16 %v2075
        %v3418 = vunpack.c.l.b16 %v2076
        %v3419 = vunpack.c.l.b16 %v2077
        %v3420 = vunpack.c.l.b16 %v2078
        %v3421 = vunpack.c.l.b16 %v2079
        %v3422 = vunpack.c.l.b16 %v2080
        %v3423 = vunpack.c.l.b16 %v2081
        %v3424 = vunpack.c.l.b16 %v2082
        %v3425 = vunpack.c.l.b16 %v2083
        %v3426 = vunpack.c.l.b16 %v2084
        %v3427 = vunpack.c.l.b16 %v2085
        %v3428 = vpack.c.b16 %v3365, %v3364
        %v3429 = vpack.c.b16 %v3367, %v3366
        %v3430 = vpack.c.b16 %v3369, %v3368
        %v3431 = vpack.c.b16 %v3371, %v3370
        %v3432 = vpack.c.b16 %v3373, %v3372
        %v3433 = vpack.c.b16 %v3375, %v3374
        %v3434 = vpack.c.b16 %v3377, %v3376
        %v3435 = vpack.c.b16 %v3379, %v3378
        %v3436 = vpack.c.b16 %v3381, %v3380
        %v3437 = vpack.c.b16 %v3383, %v3382
        %v3438 = vpack.c.b16 %v3385, %v3384
        %v3439 = vpack.c.b16 %v3387, %v3386
        %v3440 = vpack.c.b16 %v3389, %v3388
        %v3441 = vpack.c.b16 %v3391, %v3390
        %v3442 = vpack.c.b16 %v3393, %v3392
        %v3443 = vpack.c.b16 %v3395, %v3394
        %v3444 = vpack.c.b16 %v3397, %v3396
        %v3445 = vpack.c.b16 %v3399, %v3398
        %v3446 = vpack.c.b16 %v3401, %v3400
        %v3447 = vpack.c.b16 %v3403, %v3402
        %v3448 = vpack.c.b16 %v3405, %v3404
        %v3449 = vpack.c.b16 %v3407, %v3406
        %v3450 = vpack.c.b16 %v3409, %v3408
        %v3451 = vpack.c.b16 %v3411, %v3410
        %v3452 = vpack.c.b16 %v3413, %v3412
        %v3453 = vpack.c.b16 %v3415, %v3414
        %v3454 = vpack.c.b16 %v3417, %v3416
        %v3455 = vpack.c.b16 %v3419, %v3418
        %v3456 = vpack.c.b16 %v3421, %v3420
        %v3457 = vpack.c.b16 %v3423, %v3422
        %v3458 = vpack.c.b16 %v3425, %v3424
        %v3459 = vpack.c.b16 %v3427, %v3426
        %3492 = vmatprep.subr.bf16.mxu0 0
        %3493 = vmatpush1.bf16.msra.mxu0 %v3428
        %3494 = vmatprep.subr.bf16.mxu0 0
        %3495 = vmatpush1.bf16.msra.mxu0 %v3429
        %3496 = vmatprep.subr.bf16.mxu0 0
        %3497 = vmatpush1.bf16.msra.mxu0 %v3430
        %3498 = vmatprep.subr.bf16.mxu0 0
        %3499 = vmatpush1.bf16.msra.mxu0 %v3431
        %3500 = vmatprep.subr.bf16.mxu0 0
        %3501 = vmatpush1.bf16.msra.mxu0 %v3432
        %3502 = vmatprep.subr.bf16.mxu0 0
        %3503 = vmatpush1.bf16.msra.mxu0 %v3433
        %3504 = vmatprep.subr.bf16.mxu0 0
        %3505 = vmatpush1.bf16.msra.mxu0 %v3434
        %3506 = vmatprep.subr.bf16.mxu0 0
        %3507 = vmatpush1.bf16.msra.mxu0 %v3435
        %3508 = vmatprep.subr.bf16.mxu0 0
        %3509 = vmatpush1.bf16.msra.mxu0 %v3436
        %3510 = vmatprep.subr.bf16.mxu0 0
        %3511 = vmatpush1.bf16.msra.mxu0 %v3437
        %3512 = vmatprep.subr.bf16.mxu0 0
        %3513 = vmatpush1.bf16.msra.mxu0 %v3438
        %3514 = vmatprep.subr.bf16.mxu0 0
        %3515 = vmatpush1.bf16.msra.mxu0 %v3439
        %3516 = vmatprep.subr.bf16.mxu0 0
        %3517 = vmatpush1.bf16.msra.mxu0 %v3440
        %3518 = vmatprep.subr.bf16.mxu0 0
        %3519 = vmatpush1.bf16.msra.mxu0 %v3441
        %3520 = vmatprep.subr.bf16.mxu0 0
        %3521 = vmatpush1.bf16.msra.mxu0 %v3442
        %3522 = vmatprep.subr.bf16.mxu0 0
        %3523 = vmatpush1.bf16.msra.mxu0 %v3443
        %3524 = vmatprep.mubr.bf16.mxu0 %v3297
        %3525 = vmatmul.mubr.bf16.gmra.mrb[0].mxu0 %v3296
        %v3526 = vpop.f32.mrb[0].mxu0
        %v3527 = vadd.f32 %v2093, %v3526
        %v3528 = vpop.f32.mrb[0].mxu0
        %v3529 = vpop.f32.mrb[0].mxu0
        %v3530 = vpop.f32.mrb[0].mxu0
        %3531 = vdwg.mxu0
        %3532 = vmatprep.subr.bf16.mxu0 0
        %3533 = vmatpush1.bf16.msra.mxu0 %v3444
        %3534 = vmatprep.subr.bf16.mxu0 0
        %3535 = vmatpush1.bf16.msra.mxu0 %v3445
        %3536 = vmatprep.subr.bf16.mxu0 0
        %3537 = vmatpush1.bf16.msra.mxu0 %v3446
        %3538 = vmatprep.subr.bf16.mxu0 0
        %3539 = vmatpush1.bf16.msra.mxu0 %v3447
        %3540 = vmatprep.subr.bf16.mxu0 0
        %3541 = vmatpush1.bf16.msra.mxu0 %v3448
        %3542 = vmatprep.subr.bf16.mxu0 0
        %3543 = vmatpush1.bf16.msra.mxu0 %v3449
        %3544 = vmatprep.subr.bf16.mxu0 0
        %3545 = vmatpush1.bf16.msra.mxu0 %v3450
        %3546 = vmatprep.subr.bf16.mxu0 0
        %3547 = vmatpush1.bf16.msra.mxu0 %v3451
        %3548 = vmatprep.subr.bf16.mxu0 0
        %3549 = vmatpush1.bf16.msra.mxu0 %v3452
        %3550 = vmatprep.subr.bf16.mxu0 0
        %3551 = vmatpush1.bf16.msra.mxu0 %v3453
        %3552 = vmatprep.subr.bf16.mxu0 0
        %3553 = vmatpush1.bf16.msra.mxu0 %v3454
        %3554 = vmatprep.subr.bf16.mxu0 0
        %3555 = vmatpush1.bf16.msra.mxu0 %v3455
        %3556 = vmatprep.subr.bf16.mxu0 0
        %3557 = vmatpush1.bf16.msra.mxu0 %v3456
        %3558 = vmatprep.subr.bf16.mxu0 0
        %3559 = vmatpush1.bf16.msra.mxu0 %v3457
        %3560 = vmatprep.subr.bf16.mxu0 0
        %3561 = vmatpush1.bf16.msra.mxu0 %v3458
        %3562 = vmatprep.subr.bf16.mxu0 0
        %3563 = vmatpush1.bf16.msra.mxu0 %v3459
        %3564 = vmatprep.mubr.bf16.mxu0 %v3299
        %3565 = vmatmul.mubr.bf16.gmra.mrb[0].mxu0 %v3298
        %v3566 = vpop.f32.mrb[0].mxu0
        %v3567 = vadd.f32 %v3527, %v3566
        %v3568 = vpop.f32.mrb[0].mxu0
        %v3569 = vpop.f32.mrb[0].mxu0
        %v3570 = vpop.f32.mrb[0].mxu0
        %3571 = vdwg.mxu0
        %v3572 = vadd.f32 %v2954, %v3567
        %3573 = vadd.xlane.f32.xlu0 %v3572
        %v3574 = vpop.xlane.xlu0 %3573
        %v3575 = vmul.f32 %v3574, %v248
        %v3576 = vsub.f32 %v3572, %v3575
        %v3577 = vmul.f32 %v3576, %v3576
        %3578 = vadd.xlane.f32.xlu0 %v3577
        %v3579 = vpop.xlane.xlu0 %3578
        %v3580 = vmul.f32 %v3579, %v248
        %v3581 = vadd.f32 %v3580, 1e-12
        %v3582 = vrsqrt.pop %v3581
        %v3583 = vmul.f32 %v3576, %v3582
        %v3584 = vmul.f32 %v3583, %v2094
        %v3585 = vadd.f32 %v3584, %v2095
        %v3586 = vld [vmem:[#allocation2 + $0xe00] sm:$0xf]
        %v3587 = vld [vmem:[#allocation2 + $0xe10] sm:$0xf]
        %v3588 = vld [vmem:[#allocation2 + $0xe20] sm:$0xf]
        %v3589 = vld [vmem:[#allocation2 + $0xe30] sm:$0xf]
        %v3590 = vld [vmem:[#allocation2 + $0xe40] sm:$0xf]
        %v3591 = vld [vmem:[#allocation2 + $0xe50] sm:$0xf]
        %v3592 = vld [vmem:[#allocation2 + $0xe60] sm:$0xf]
        %v3593 = vld [vmem:[#allocation2 + $0xe70] sm:$0xf]
        %v3594 = vld [vmem:[#allocation2 + $0xe80] sm:$0xf]
        %v3595 = vld [vmem:[#allocation2 + $0xe90] sm:$0xf]
        %v3596 = vld [vmem:[#allocation2 + $0xea0] sm:$0xf]
        %v3597 = vld [vmem:[#allocation2 + $0xeb0] sm:$0xf]
        %v3598 = vld [vmem:[#allocation2 + $0xec0] sm:$0xf]
        %v3599 = vld [vmem:[#allocation2 + $0xed0] sm:$0xf]
        %v3600 = vld [vmem:[#allocation2 + $0xee0] sm:$0xf]
        %v3601 = vld [vmem:[#allocation2 + $0xef0] sm:$0xf]
        %v3602 = vld [vmem:[#allocation2 + $0xf00] sm:$0xf]
        %v3603 = vld [vmem:[#allocation2 + $0xf10] sm:$0xf]
        %v3604 = vld [vmem:[#allocation2 + $0xf20] sm:$0xf]
        %v3605 = vld [vmem:[#allocation2 + $0xf30] sm:$0xf]
        %v3606 = vld [vmem:[#allocation2 + $0xf40] sm:$0xf]
        %v3607 = vld [vmem:[#allocation2 + $0xf50] sm:$0xf]
        %v3608 = vld [vmem:[#allocation2 + $0xf60] sm:$0xf]
        %v3609 = vld [vmem:[#allocation2 + $0xf70] sm:$0xf]
        %v3610 = vld [vmem:[#allocation2 + $0xf80] sm:$0xf]
        %v3611 = vld [vmem:[#allocation2 + $0xf90] sm:$0xf]
        %v3612 = vld [vmem:[#allocation2 + $0xfa0] sm:$0xf]
        %v3613 = vld [vmem:[#allocation2 + $0xfb0] sm:$0xf]
        %v3614 = vld [vmem:[#allocation2 + $0xfc0] sm:$0xf]
        %v3615 = vld [vmem:[#allocation2 + $0xfd0] sm:$0xf]
        %v3616 = vld [vmem:[#allocation2 + $0xfe0] sm:$0xf]
        %v3617 = vld [vmem:[#allocation2 + $0xff0] sm:$0xf]
        %v3618 = vld [vmem:[#allocation5 + $0x42] ss:$0 sm:$0xff]
        %v3619 = vld [vmem:[#allocation5 + $0x43] ss:$0 sm:$0xff]
        %v3620 = vpack.c.bf16 %v3585, %v3585
        %v3637 = vunpack.c.l.b16 %v3586
        %v3638 = vunpack.c.l.b16 %v3587
        %v3639 = vunpack.c.l.b16 %v3588
        %v3640 = vunpack.c.l.b16 %v3589
        %v3641 = vunpack.c.l.b16 %v3590
        %v3642 = vunpack.c.l.b16 %v3591
        %v3643 = vunpack.c.l.b16 %v3592
        %v3644 = vunpack.c.l.b16 %v3593
        %v3645 = vunpack.c.l.b16 %v3594
        %v3646 = vunpack.c.l.b16 %v3595
        %v3647 = vunpack.c.l.b16 %v3596
        %v3648 = vunpack.c.l.b16 %v3597
        %v3649 = vunpack.c.l.b16 %v3598
        %v3650 = vunpack.c.l.b16 %v3599
        %v3651 = vunpack.c.l.b16 %v3600
        %v3652 = vunpack.c.l.b16 %v3601
        %v3653 = vpack.c.b16 %v3638, %v3637
        %v3654 = vpack.c.b16 %v3640, %v3639
        %v3655 = vpack.c.b16 %v3642, %v3641
        %v3656 = vpack.c.b16 %v3644, %v3643
        %v3657 = vpack.c.b16 %v3646, %v3645
        %v3658 = vpack.c.b16 %v3648, %v3647
        %v3659 = vpack.c.b16 %v3650, %v3649
        %v3660 = vpack.c.b16 %v3652, %v3651
        %3669 = vmatprep.subr.bf16.mxu0 0
        %3670 = vmatpush1.bf16.msra.mxu0 %v3653
        %3671 = vmatprep.subr.bf16.mxu0 0
        %3672 = vmatpush1.bf16.msra.mxu0 %v3654
        %3673 = vmatprep.subr.bf16.mxu0 0
        %3674 = vmatpush1.bf16.msra.mxu0 %v3655
        %3675 = vmatprep.subr.bf16.mxu0 0
        %3676 = vmatpush1.bf16.msra.mxu0 %v3656
        %3677 = vmatprep.subr.bf16.mxu0 0
        %3678 = vmatpush1.bf16.msra.mxu0 %v3657
        %3679 = vmatprep.subr.bf16.mxu0 0
        %3680 = vmatpush1.bf16.msra.mxu0 %v3658
        %3681 = vmatprep.subr.bf16.mxu0 0
        %3682 = vmatpush1.bf16.msra.mxu0 %v3659
        %3683 = vmatprep.subr.bf16.mxu0 0
        %3684 = vmatpush1.bf16.msra.mxu0 %v3660
        %3685 = vmatprep.subr.bf16.mxu0 0
        %3686 = vmatpush1.bf16.msra.mxu0 0
        %3687 = vmatprep.subr.bf16.mxu0 0
        %3688 = vmatpush1.bf16.msra.mxu0 0
        %3689 = vmatprep.subr.bf16.mxu0 0
        %3690 = vmatpush1.bf16.msra.mxu0 0
        %3691 = vmatprep.subr.bf16.mxu0 0
        %3692 = vmatpush1.bf16.msra.mxu0 0
        %3693 = vmatprep.subr.bf16.mxu0 0
        %3694 = vmatpush1.bf16.msra.mxu0 0
        %3695 = vmatprep.subr.bf16.mxu0 0
        %3696 = vmatpush1.bf16.msra.mxu0 0
        %3697 = vmatprep.subr.bf16.mxu0 0
        %3698 = vmatpush1.bf16.msra.mxu0 0
        %3699 = vmatprep.subr.bf16.mxu0 0
        %3700 = vmatpush1.bf16.msra.mxu0 0
        %3701 = vmatprep.mubr.bf16.mxu0 0
        %3702 = vmatmul.mubr.bf16.gmra.mrb[0].mxu0 %v3620
        %v3703 = vpop.f32.mrb[0].mxu0
        %v3704 = vadd.f32 %v3618, %v3703
        %v3705 = vpop.f32.mrb[0].mxu0
        %v3706 = vpop.f32.mrb[0].mxu0
        %v3707 = vpop.f32.mrb[0].mxu0
        %3708 = vdwg.mxu0
        %v3709 = vtanh.pop %v3704
        %v3710 = vpack.c.bf16 %v3709, %v3709
        %v3727 = vunpack.c.l.b16 %v3602
        %v3728 = vunpack.c.l.b16 %v3603
        %v3729 = vunpack.c.l.b16 %v3604
        %v3730 = vunpack.c.l.b16 %v3605
        %v3731 = vunpack.c.l.b16 %v3606
        %v3732 = vunpack.c.l.b16 %v3607
        %v3733 = vunpack.c.l.b16 %v3608
        %v3734 = vunpack.c.l.b16 %v3609
        %v3735 = vunpack.c.l.b16 %v3610
        %v3736 = vunpack.c.l.b16 %v3611
        %v3737 = vunpack.c.l.b16 %v3612
        %v3738 = vunpack.c.l.b16 %v3613
        %v3739 = vunpack.c.l.b16 %v3614
        %v3740 = vunpack.c.l.b16 %v3615
        %v3741 = vunpack.c.l.b16 %v3616
        %v3742 = vunpack.c.l.b16 %v3617
        %v3743 = vpack.c.b16 %v3728, %v3727
        %v3744 = vpack.c.b16 %v3730, %v3729
        %v3745 = vpack.c.b16 %v3732, %v3731
        %v3746 = vpack.c.b16 %v3734, %v3733
        %v3747 = vpack.c.b16 %v3736, %v3735
        %v3748 = vpack.c.b16 %v3738, %v3737
        %v3749 = vpack.c.b16 %v3740, %v3739
        %v3750 = vpack.c.b16 %v3742, %v3741
        %3759 = vmatprep.subr.bf16.mxu0 0
        %3760 = vmatpush1.bf16.msra.mxu0 %v3743
        %3761 = vmatprep.subr.bf16.mxu0 0
        %3762 = vmatpush1.bf16.msra.mxu0 %v3744
        %3763 = vmatprep.subr.bf16.mxu0 0
        %3764 = vmatpush1.bf16.msra.mxu0 %v3745
        %3765 = vmatprep.subr.bf16.mxu0 0
        %3766 = vmatpush1.bf16.msra.mxu0 %v3746
        %3767 = vmatprep.subr.bf16.mxu0 0
        %3768 = vmatpush1.bf16.msra.mxu0 %v3747
        %3769 = vmatprep.subr.bf16.mxu0 0
        %3770 = vmatpush1.bf16.msra.mxu0 %v3748
        %3771 = vmatprep.subr.bf16.mxu0 0
        %3772 = vmatpush1.bf16.msra.mxu0 %v3749
        %3773 = vmatprep.subr.bf16.mxu0 0
        %3774 = vmatpush1.bf16.msra.mxu0 %v3750
        %3775 = vmatprep.subr.bf16.mxu0 0
        %3776 = vmatpush1.bf16.msra.mxu0 0
        %3777 = vmatprep.subr.bf16.mxu0 0
        %3778 = vmatpush1.bf16.msra.mxu0 0
        %3779 = vmatprep.subr.bf16.mxu0 0
        %3780 = vmatpush1.bf16.msra.mxu0 0
        %3781 = vmatprep.subr.bf16.mxu0 0
        %3782 = vmatpush1.bf16.msra.mxu0 0
        %3783 = vmatprep.subr.bf16.mxu0 0
        %3784 = vmatpush1.bf16.msra.mxu0 0
        %3785 = vmatprep.subr.bf16.mxu0 0
        %3786 = vmatpush1.bf16.msra.mxu0 0
        %3787 = vmatprep.subr.bf16.mxu0 0
        %3788 = vmatpush1.bf16.msra.mxu0 0
        %3789 = vmatprep.subr.bf16.mxu0 0
        %3790 = vmatpush1.bf16.msra.mxu0 0
        %3791 = vmatprep.mubr.bf16.mxu0 0
        %3792 = vmatmul.mubr.bf16.gmra.mrb[0].mxu0 %v3710
        %v3793 = vpop.f32.mrb[0].mxu0
        %v3794 = vadd.f32 %v3619, %v3793
        %v3795 = vpop.f32.mrb[0].mxu0
        %v3796 = vpop.f32.mrb[0].mxu0
        %v3797 = vpop.f32.mrb[0].mxu0
        %3798 = vdwg.mxu0
        %3799 = vst [vmem:[%s230] sm:$0x1] %v3794
        %s3800 = sand.u32 %s122, 1
        %s3801 = scalar_lea.sflag [#allocation4], %s3800
        %s3802 = sand.u32 %s122, 1
        %s3803 = scalar_lea.vmem [#allocation7], %s3802
        // Predicated region
        $region45: #{text_classification_forward.1} parent=35 // pred_check
          %p3804 = pneg %p132
        $region46: #{text_classification_forward.1} parent=35 // pred_check_branch
          %3806 = sbr.rel (%p3804) target = $region48
        $region47: #{text_classification_forward.1} parent=35 // pred_region
          %s3808 = ssub.s32 16, 16
          %3809 = vsyncadd %s3801, %s3808
          %s3810 = smul.addr %s20, 16
          %s3811 = scalar_lea.hbm %s4, %s3810
          %s3813 = sshll.u32 %s3803, 4
          %s3814 = int_to_ptr.vmem [resolvable:$true] %s3813
          %3816 = dma.vmem_to_hbm [thread:$0]  %s3814, 16, %s3811, %s3801
        $region48: #{text_classification_forward.1} parent=35 // pred_fallthru
          _
      $region36: #{text_classification_forward.1} parent=5 // pred_fallthru
        _
      %p3817 = scmp.le.s32.totalorder 2, %s15
      // Predicated region
      $region49: #{text_classification_forward.1} parent=5 // pred_check
        %p3818 = pneg %p3817
      $region50: #{text_classification_forward.1} parent=5 // pred_check_branch
        %3820 = sbr.rel (%p3818) target = $region52
      $region51: #{text_classification_forward.1} parent=5 // pred_region
        %s3821 = ssub.s32 %s15, 2
        // Predicated region
        $region53: #{text_classification_forward.1} parent=51 // pred_check
          %p3822 = pneg %p138
        $region54: #{text_classification_forward.1} parent=51 // pred_check_branch
          %3824 = sbr.rel (%p3822) target = $region56
        $region55: #{text_classification_forward.1} parent=51 // pred_region
          %s3825 = sand.u32 %s123, 1
          %s3826 = scalar_lea.sflag [#allocation4], %s3825
          %s3827 = sand.u32 %s123, 1
          %s3828 = scalar_lea.vmem [#allocation7], %s3827
          %3829 = dma.done %s3826, 16
        $region56: #{text_classification_forward.1} parent=51 // pred_fallthru
          _
      $region52: #{text_classification_forward.1} parent=5 // pred_fallthru
        _
    $region6: #{text_classification_forward.1} parent=1 // loop_footer
      %s19 = sadd.s32 1, %s15
    $region7: #{text_classification_forward.1} parent=1 // loop_footer_branch
      %14 = sbr.rel target = $region3
    $region8: #{text_classification_forward.1} parent=1 // loop_exit
      _
    %3830 = vsyncpa [#allocation3], 1
    %s3831 = scalar_lea.sflag [#allocation3], 1
    %3832 = vsyncpa %s3831, 1
    %3833 = vsyncpa [#allocation6], 1
    %3834 = vsyncpa [#allocation4], 1
    %s3835 = scalar_lea.sflag [#allocation4], 1
    %3836 = vsyncpa %s3835, 1

</llo_original>
